<compile_context>
chip_gen: v5e
topology: v5e:2x2
jax: 0.10.0
libtpu: 0.0.40
codegen_flags: <defaults>
</compile_context>

<pallas_src>
import functools
import math

import jax
import jax.numpy as jnp
from jax.experimental import pallas as pl
from jax.experimental.pallas import tpu as pltpu


# ---------------------------------------------------------------------------
# Fused bidirectional GRU layer kernel (whole sequence, masked by length)
# ---------------------------------------------------------------------------
def bigru_layer_kernel(x_ref, len_ref,
                       wih_f_ref, whh_f_ref, bx_f_ref, bhn_f_ref,
                       wih_b_ref, whh_b_ref, bx_b_ref, bhn_b_ref,
                       *refs, T, H, write_seq):
    if write_seq:
        seq_ref, hfin_ref, xpf_ref, xpb_ref = refs
    else:
        hfin_ref, xpf_ref, xpb_ref = refs

    TB = x_ref.shape[1]          # batch tile (multiple of 8 sublanes)
    D = x_ref.shape[2]
    G = 3 * H                    # fused gate width (r, z, n)

    # --- hoisted, gate-fused input projection: one big GEMM per direction ---
    # x: [T, TB, D] -> [T*TB, D]  (TB is a multiple of 8, so this is a free
    # sublane-collapse relayout).  Folded biases are added here once.
    x2d = x_ref[...].reshape(T * TB, D)
    xpf_ref[...] = (jnp.dot(x2d, wih_f_ref[...],
                            preferred_element_type=jnp.float32)
                    + bx_f_ref[...]).reshape(T, TB, G)
    xpb_ref[...] = (jnp.dot(x2d, wih_b_ref[...],
                            preferred_element_type=jnp.float32)
                    + bx_b_ref[...]).reshape(T, TB, G)

    # hoist loop-invariant loads / broadcasts out of the recurrence
    whh_f = whh_f_ref[...]                                     # [H, 3H]
    whh_b = whh_b_ref[...]                                     # [H, 3H]
    bhn_f = jnp.broadcast_to(bhn_f_ref[...], (TB, H))          # [TB, H]
    bhn_b = jnp.broadcast_to(bhn_b_ref[...], (TB, H))          # [TB, H]
    lengths = len_ref[...]                                     # [TB, 1] int32

    def gru_step(xp_t, h, whh, bhn, t_idx):
        # PyTorch GRU equations, gate order (r, z, n); x-side already has
        # b_ir+b_hr / b_iz+b_hz / b_in folded in.
        hh = jnp.dot(h, whh, preferred_element_type=jnp.float32)   # [TB, 3H]
        r = jax.nn.sigmoid(xp_t[:, :H] + hh[:, :H])
        z = jax.nn.sigmoid(xp_t[:, H:2 * H] + hh[:, H:2 * H])
        n = jnp.tanh(xp_t[:, 2 * H:] + r * (hh[:, 2 * H:] + bhn))
        h_new = (1.0 - z) * n + z * h
        # packed-sequence masking: only update while t_idx < seq_len[b]
        return jnp.where(lengths > t_idx, h_new, h)

    def step(t, carry):
        h_f, h_b = carry
        tf = t                 # forward time index
        tb = T - 1 - t         # backward time index
        h_f = gru_step(xpf_ref[tf], h_f, whh_f, bhn_f, tf)
        h_b = gru_step(xpb_ref[tb], h_b, whh_b, bhn_b, tb)
        if write_seq:
            seq_ref[tf, :, pl.ds(0, H)] = h_f
            seq_ref[tb, :, pl.ds(H, H)] = h_b
        return h_f, h_b

    h0 = jnp.zeros((TB, H), dtype=jnp.float32)
    unroll = True if T <= 16 else 8
    h_f, h_b = jax.lax.fori_loop(0, T, step, (h0, h0), unroll=unroll)

    # final hidden states (== packed-GRU x_h for this layer): [fwd | bwd]
    hfin_ref[:, pl.ds(0, H)] = h_f
    hfin_ref[:, pl.ds(H, H)] = h_b


def run_bigru_layer(x_tm, lengths, layer_params, *, write_seq, batch_tile=8):
    """x_tm: [T, B_pad, D] time-major, lengths: [B_pad, 1] int32."""
    T, b_pad, D = x_tm.shape
    (wih_f, whh_f, bx_f, bhn_f, wih_b, whh_b, bx_b, bhn_b) = layer_params
    H = whh_f.shape[0]
    G = 3 * H
    TB = min(batch_tile, b_pad)
    assert b_pad % TB == 0
    grid = (b_pad // TB,)

    kernel = functools.partial(bigru_layer_kernel, T=T, H=H,
                               write_seq=write_seq)

    def const(shape):
        return pl.BlockSpec(shape, lambda i: (0, 0))

    in_specs = [
        pl.BlockSpec((T, TB, D), lambda i: (0, i, 0)),   # x
        pl.BlockSpec((TB, 1), lambda i: (i, 0)),         # lengths
        const((D, G)), const((H, G)), const((1, G)), const((1, H)),   # fwd
        const((D, G)), const((H, G)), const((1, G)), const((1, H)),   # bwd
    ]
    hfin_spec = pl.BlockSpec((TB, 2 * H), lambda i: (i, 0))
    hfin_shape = jax.ShapeDtypeStruct((b_pad, 2 * H), jnp.float32)
    if write_seq:
        out_shape = (jax.ShapeDtypeStruct((T, b_pad, 2 * H), jnp.float32),
                     hfin_shape)
        out_specs = (pl.BlockSpec((T, TB, 2 * H), lambda i: (0, i, 0)),
                     hfin_spec)
    else:
        out_shape = hfin_shape
        out_specs = hfin_spec

    # TODO(synk): for large T, tile the time axis with double-buffered DMA and
    # consider bf16 weights/activations (v6e/v7x) instead of keeping the whole
    # sequence resident in VMEM.
    return pl.pallas_call(
        kernel,
        out_shape=out_shape,
        grid_spec=pltpu.PrefetchScalarGridSpec(
            num_scalar_prefetch=0,
            grid=grid,
            in_specs=in_specs,
            out_specs=out_specs,
            scratch_shapes=[pltpu.VMEM((T, TB, G), jnp.float32),
                            pltpu.VMEM((T, TB, G), jnp.float32)]),
        compiler_params=pltpu.CompilerParams(
            dimension_semantics=("parallel",)),   # batch tiles -> v7x megacore
    )(x_tm, lengths, wih_f, whh_f, bx_f, bhn_f, wih_b, whh_b, bx_b, bhn_b)


# ---------------------------------------------------------------------------
# FC head kernel: (Dropout -> identity) -> Tanh -> Linear
# ---------------------------------------------------------------------------
def fc_kernel(h_ref, w_ref, b_ref, o_ref):
    h = jnp.tanh(h_ref[...])
    o_ref[...] = (jnp.dot(h, w_ref[...], preferred_element_type=jnp.float32)
                  + b_ref[...])


def run_fc(h_cat, w_t, b):
    B = h_cat.shape[0]
    C = w_t.shape[1]
    vmem = pl.BlockSpec(memory_space=pltpu.MemorySpace.VMEM)
    return pl.pallas_call(
        fc_kernel,
        out_shape=jax.ShapeDtypeStruct((B, C), jnp.float32),
        in_specs=[vmem, vmem, vmem],
        out_specs=vmem,
    )(h_cat, w_t, b)


# ---------------------------------------------------------------------------
# Parameter construction (PyTorch nn.GRU / nn.Linear layout + fused kernel layout)
# ---------------------------------------------------------------------------
def convert_gru_dir(wih, whh, bih, bhh, H):
    """torch layout (wih [3H,D], whh [3H,H], b [3H], gates r,z,n) -> kernel layout."""
    wih_t = wih.T                                    # [D, 3H]
    whh_t = whh.T                                    # [H, 3H]
    # fold b_hr, b_hz into the input-projection bias; b_hn stays separate
    bx = bih + jnp.concatenate([bhh[:2 * H], jnp.zeros((H,), bhh.dtype)])
    bhn = bhh[2 * H:]
    return wih_t, whh_t, bx.reshape(1, 3 * H), bhn.reshape(1, H)


def make_params(key, vocab, E, H, C, num_layers=2):
    k = 1.0 / math.sqrt(H)
    params = {"hidden_dim": H}
    key, sub = jax.random.split(key)
    params["embed"] = jax.random.normal(sub, (vocab, E), jnp.float32) * 0.1

    raw_layers, fused_layers = [], []
    for layer in range(num_layers):
        d_in = E if layer == 0 else 2 * H
        raw_dirs, fused = [], []
        for _direction in range(2):   # forward, backward
            key, k1, k2, k3, k4 = jax.random.split(key, 5)
            wih = jax.random.uniform(k1, (3 * H, d_in), jnp.float32, -k, k)
            whh = jax.random.uniform(k2, (3 * H, H), jnp.float32, -k, k)
            bih = jax.random.uniform(k3, (3 * H,), jnp.float32, -k, k)
            bhh = jax.random.uniform(k4, (3 * H,), jnp.float32, -k, k)
            raw_dirs.append((wih, whh, bih, bhh))
            fused.extend(convert_gru_dir(wih, whh, bih, bhh, H))
        raw_layers.append(raw_dirs)
        fused_layers.append(tuple(fused))
    params["gru_raw"] = raw_layers    # torch layout (for the pure-JAX reference)
    params["gru"] = fused_layers      # fused/folded kernel layout

    key, k1, k2 = jax.random.split(key, 3)
    kf = 1.0 / math.sqrt(2 * H)
    params["fc_w_t"] = jax.random.uniform(k1, (2 * H, C), jnp.float32, -kf, kf)
    params["fc_b"] = jax.random.uniform(k2, (1, C), jnp.float32, -kf, kf)
    return params


# ---------------------------------------------------------------------------
# Full forward pass (glue in JAX, hot path in Pallas)
# ---------------------------------------------------------------------------
def text_rnn_forward(text, seq_len, params):
    B, T = text.shape
    b_pad = ((B + 7) // 8) * 8                        # pad batch to f32 sublanes

    # time-major embedding gather (no separate transpose): [T, B, E]
    x = params["embed"][text.T]
    x = jnp.pad(x, ((0, 0), (0, b_pad - B), (0, 0)))
    lengths = jnp.pad(seq_len.astype(jnp.int32),
                      (0, b_pad - B)).reshape(b_pad, 1)   # pad rows: len 0

    n_layers = len(params["gru"])
    h_fin = None
    for li, layer_p in enumerate(params["gru"]):
        # TODO(synk): inter-layer GRU dropout (p=0.6) is training-only; eval identity.
        if li == n_layers - 1:
            # last layer: only the final hidden states are consumed downstream
            h_fin = run_bigru_layer(x, lengths, layer_p, write_seq=False)
        else:
            x, _ = run_bigru_layer(x, lengths, layer_p, write_seq=True)

    # fc_layer: Dropout (eval identity) -> Tanh -> Linear, on padded batch
    logits = run_fc(h_fin, params["fc_w_t"], params["fc_b"])   # [b_pad, C]
    return logits[:B]


# ---------------------------------------------------------------------------
# Pure-JAX reference (mirrors PyTorch packed bidirectional GRU semantics)
# ---------------------------------------------------------------------------
def _gru_cell_ref(x_t, h, wih, whh, bih, bhh, H):
    gi = jnp.dot(x_t, wih.T) + bih
    gh = jnp.dot(h, whh.T) + bhh
    r = jax.nn.sigmoid(gi[:, :H] + gh[:, :H])
    z = jax.nn.sigmoid(gi[:, H:2 * H] + gh[:, H:2 * H])
    n = jnp.tanh(gi[:, 2 * H:] + r * gh[:, 2 * H:])
    return (1.0 - z) * n + z * h


def reference_forward(text, seq_len, params):
    H = params["hidden_dim"]
    x = params["embed"][text]                  # [B, T, E]
    B, T, _ = x.shape
    lengths = seq_len.astype(jnp.int32)

    h_cat = None
    for raw_f, raw_b in params["gru_raw"]:
        outs, finals = [], []
        for (wih, whh, bih, bhh), reverse in ((raw_f, False), (raw_b, True)):
            h = jnp.zeros((B, H), jnp.float32)
            seq = [None] * T
            order = range(T - 1, -1, -1) if reverse else range(T)
            for t in order:
                h_new = _gru_cell_ref(x[:, t, :], h, wih, whh, bih, bhh, H)
                h = jnp.where((lengths > t)[:, None], h_new, h)
                seq[t] = h
            outs.append(jnp.stack(seq, axis=1))
            finals.append(h)
        x = jnp.concatenate(outs, axis=-1)
        h_cat = jnp.concatenate(finals, axis=-1)
    return jnp.tanh(h_cat) @ params["fc_w_t"] + params["fc_b"]


if __name__ == "__main__":
    vocab, E, H, C = 20, 32, 32, 4
    B, T = 2, 8

    key = jax.random.PRNGKey(0)
    key, k_text = jax.random.split(key)
    params = make_params(key, vocab, E, H, C)

    text = jax.random.randint(k_text, (B, T), 0, vocab, dtype=jnp.int32)
    seq_len = jnp.array([8, 5], dtype=jnp.int32)

    @jax.jit
    def forward(text_, seq_len_):
        return text_rnn_forward(text_, seq_len_, params)

    logits = forward(text, seq_len)
    jax.block_until_ready(logits)
    assert logits.shape == (B, C)

    ref = reference_forward(text, seq_len, params)
    err = float(jnp.max(jnp.abs(logits - ref)))
    assert err < 1e-3, f"kernel/reference mismatch: {err}"
    print("KERNEL_OK")
</pallas_src>

<mosaic_0001>
module attributes {stable_mosaic.version = 11 : i64} {
  func.func @fc_kernel(%arg0: memref<8x64xf32, #tpu.memory_space<vmem>>, %arg1: memref<64x4xf32, #tpu.memory_space<vmem>>, %arg2: memref<1x4xf32, #tpu.memory_space<vmem>>, %arg3: memref<8x4xf32, #tpu.memory_space<vmem>>) attributes {dimension_semantics = [], scalar_prefetch = 0 : i64, scratch_operands = 0 : i64, tpu.core_type = #tpu.core_type<tc>} {
    %c0 = arith.constant 0 : index
    %c0_0 = arith.constant 0 : index
    %0 = vector.load %arg0[%c0, %c0_0] : memref<8x64xf32, #tpu.memory_space<vmem>>, vector<8x64xf32>
    %1 = math.tanh %0 : vector<8x64xf32>
    %c0_1 = arith.constant 0 : index
    %c0_2 = arith.constant 0 : index
    %2 = vector.load %arg1[%c0_1, %c0_2] : memref<64x4xf32, #tpu.memory_space<vmem>>, vector<64x4xf32>
    %cst = arith.constant dense<0.000000e+00> : vector<8x4xf32>
    %3 = tpu.matmul %1, %2, %cst {dimension_numbers = #tpu.dot_dimension_numbers<[1], [0], [0], [1], [0, 0, 1, 1], [], []>} : vector<8x64xf32>, vector<64x4xf32>, vector<8x4xf32> -> vector<8x4xf32>
    %c0_3 = arith.constant 0 : index
    %c0_4 = arith.constant 0 : index
    %4 = vector.load %arg2[%c0_3, %c0_4] : memref<1x4xf32, #tpu.memory_space<vmem>>, vector<1x4xf32>
    %5 = vector.broadcast %4 : vector<1x4xf32> to vector<8x4xf32>
    %6 = arith.addf %3, %5 : vector<8x4xf32>
    %c0_5 = arith.constant 0 : index
    %c0_6 = arith.constant 0 : index
    %7 = vector.load %arg3[%c0_5, %c0_6] : memref<8x4xf32, #tpu.memory_space<vmem>>, vector<8x4xf32>
    tpu.vector_store %arg3[%c0_5, %c0_6], %6 {strides = array<i32>} : memref<8x4xf32, #tpu.memory_space<vmem>>, vector<8x4xf32>,
    return
  }
}

module attributes {stable_mosaic.version = 11 : i64} {
  func.func @bigru_layer_kernel(%arg0: i32, %arg1: memref<8x8x64xf32, #tpu.memory_space<vmem>>, %arg2: memref<8x1xi32, #tpu.memory_space<vmem>>, %arg3: memref<64x96xf32, #tpu.memory_space<vmem>>, %arg4: memref<32x96xf32, #tpu.memory_space<vmem>>, %arg5: memref<1x96xf32, #tpu.memory_space<vmem>>, %arg6: memref<1x32xf32, #tpu.memory_space<vmem>>, %arg7: memref<64x96xf32, #tpu.memory_space<vmem>>, %arg8: memref<32x96xf32, #tpu.memory_space<vmem>>, %arg9: memref<1x96xf32, #tpu.memory_space<vmem>>, %arg10: memref<1x32xf32, #tpu.memory_space<vmem>>, %arg11: memref<8x64xf32, #tpu.memory_space<vmem>>, %arg12: memref<8x8x96xf32, #tpu.memory_space<vmem>>, %arg13: memref<8x8x96xf32, #tpu.memory_space<vmem>>) attributes {dimension_semantics = [#tpu.dimension_semantics<parallel>], iteration_bounds = array<i64: 1>, scalar_prefetch = 0 : i64, scratch_operands = 2 : i64, tpu.core_type = #tpu.core_type<tc>, window_params = [{transform_indices = @transform_0, window_bounds = array<i64: 8, 8, 64>}, {transform_indices = @transform_1, window_bounds = array<i64: 8, 1>}, {pipeline_mode = #tpu.pipeline_mode<synchronous>, transform_indices = @transform_2, window_bounds = array<i64: 64, 96>}, {pipeline_mode = #tpu.pipeline_mode<synchronous>, transform_indices = @transform_3, window_bounds = array<i64: 32, 96>}, {pipeline_mode = #tpu.pipeline_mode<synchronous>, transform_indices = @transform_4, window_bounds = array<i64: 1, 96>}, {pipeline_mode = #tpu.pipeline_mode<synchronous>, transform_indices = @transform_5, window_bounds = array<i64: 1, 32>}, {pipeline_mode = #tpu.pipeline_mode<synchronous>, transform_indices = @transform_6, window_bounds = array<i64: 64, 96>}, {pipeline_mode = #tpu.pipeline_mode<synchronous>, transform_indices = @transform_7, window_bounds = array<i64: 32, 96>}, {pipeline_mode = #tpu.pipeline_mode<synchronous>, transform_indices = @transform_8, window_bounds = array<i64: 1, 96>}, {pipeline_mode = #tpu.pipeline_mode<synchronous>, transform_indices = @transform_9, window_bounds = array<i64: 1, 32>}, {transform_indices = @transform_10, window_bounds = array<i64: 8, 64>}]} {
    %c0 = arith.constant 0 : index
    %c0_0 = arith.constant 0 : index
    %c0_1 = arith.constant 0 : index
    %0 = vector.load %arg1[%c0, %c0_0, %c0_1] : memref<8x8x64xf32, #tpu.memory_space<vmem>>, vector<8x8x64xf32>
    %1 = vector.shape_cast %0 : vector<8x8x64xf32> to vector<64x64xf32>
    %c0_2 = arith.constant 0 : index
    %c0_3 = arith.constant 0 : index
    %2 = vector.load %arg3[%c0_2, %c0_3] : memref<64x96xf32, #tpu.memory_space<vmem>>, vector<64x96xf32>
    %cst = arith.constant dense<0.000000e+00> : vector<64x96xf32>
    %3 = tpu.matmul %1, %2, %cst {dimension_numbers = #tpu.dot_dimension_numbers<[1], [0], [0], [1], [0, 0, 1, 1], [], []>} : vector<64x64xf32>, vector<64x96xf32>, vector<64x96xf32> -> vector<64x96xf32>
    %c0_4 = arith.constant 0 : index
    %c0_5 = arith.constant 0 : index
    %4 = vector.load %arg5[%c0_4, %c0_5] : memref<1x96xf32, #tpu.memory_space<vmem>>, vector<1x96xf32>
    %5 = vector.broadcast %4 : vector<1x96xf32> to vector<64x96xf32>
    %6 = arith.addf %3, %5 : vector<64x96xf32>
    %7 = vector.shape_cast %6 : vector<64x96xf32> to vector<8x8x96xf32>
    %c0_6 = arith.constant 0 : index
    %c0_7 = arith.constant 0 : index
    %c0_8 = arith.constant 0 : index
    %8 = vector.load %arg12[%c0_6, %c0_7, %c0_8] : memref<8x8x96xf32, #tpu.memory_space<vmem>>, vector<8x8x96xf32>
    tpu.vector_store %arg12[%c0_6, %c0_7, %c0_8], %7 {strides = array<i32>} : memref<8x8x96xf32, #tpu.memory_space<vmem>>, vector<8x8x96xf32>,
    %c0_9 = arith.constant 0 : index
    %c0_10 = arith.constant 0 : index
    %9 = vector.load %arg7[%c0_9, %c0_10] : memref<64x96xf32, #tpu.memory_space<vmem>>, vector<64x96xf32>
    %cst_11 = arith.constant dense<0.000000e+00> : vector<64x96xf32>
    %10 = tpu.matmul %1, %9, %cst_11 {dimension_numbers = #tpu.dot_dimension_numbers<[1], [0], [0], [1], [0, 0, 1, 1], [], []>} : vector<64x64xf32>, vector<64x96xf32>, vector<64x96xf32> -> vector<64x96xf32>
    %c0_12 = arith.constant 0 : index
    %c0_13 = arith.constant 0 : index
    %11 = vector.load %arg9[%c0_12, %c0_13] : memref<1x96xf32, #tpu.memory_space<vmem>>, vector<1x96xf32>
    %12 = vector.broadcast %11 : vector<1x96xf32> to vector<64x96xf32>
    %13 = arith.addf %10, %12 : vector<64x96xf32>
    %14 = vector.shape_cast %13 : vector<64x96xf32> to vector<8x8x96xf32>
    %c0_14 = arith.constant 0 : index
    %c0_15 = arith.constant 0 : index
    %c0_16 = arith.constant 0 : index
    %15 = vector.load %arg13[%c0_14, %c0_15, %c0_16] : memref<8x8x96xf32, #tpu.memory_space<vmem>>, vector<8x8x96xf32>
    tpu.vector_store %arg13[%c0_14, %c0_15, %c0_16], %14 {strides = array<i32>} : memref<8x8x96xf32, #tpu.memory_space<vmem>>, vector<8x8x96xf32>,
    %c0_17 = arith.constant 0 : index
    %c0_18 = arith.constant 0 : index
    %16 = vector.load %arg4[%c0_17, %c0_18] : memref<32x96xf32, #tpu.memory_space<vmem>>, vector<32x96xf32>
    %c0_19 = arith.constant 0 : index
    %c0_20 = arith.constant 0 : index
    %17 = vector.load %arg8[%c0_19, %c0_20] : memref<32x96xf32, #tpu.memory_space<vmem>>, vector<32x96xf32>
    %c0_21 = arith.constant 0 : index
    %c0_22 = arith.constant 0 : index
    %18 = vector.load %arg6[%c0_21, %c0_22] : memref<1x32xf32, #tpu.memory_space<vmem>>, vector<1x32xf32>
    %19 = vector.shape_cast %18 : vector<1x32xf32> to vector<1x32xf32>
    %20 = vector.broadcast %19 : vector<1x32xf32> to vector<8x32xf32>
    %c0_23 = arith.constant 0 : index
    %c0_24 = arith.constant 0 : index
    %21 = vector.load %arg10[%c0_23, %c0_24] : memref<1x32xf32, #tpu.memory_space<vmem>>, vector<1x32xf32>
    %22 = vector.shape_cast %21 : vector<1x32xf32> to vector<1x32xf32>
    %23 = vector.broadcast %22 : vector<1x32xf32> to vector<8x32xf32>
    %c0_25 = arith.constant 0 : index
    %c0_26 = arith.constant 0 : index
    %24 = vector.load %arg2[%c0_25, %c0_26] : memref<8x1xi32, #tpu.memory_space<vmem>>, vector<8x1xi32>
    %cst_27 = arith.constant 0.000000e+00 : f32
    %25 = vector.broadcast %cst_27 : f32 to vector<8x32xf32>
    %c0_i32 = arith.constant 0 : i32
    %c7_i32 = arith.constant 7 : i32
    %26 = arith.subi %c7_i32, %c0_i32 : i32
    %27 = arith.index_cast %c0_i32 : i32 to index
    %c0_28 = arith.constant 0 : index
    %c0_29 = arith.constant 0 : index
    %28 = vector.load %arg12[%27, %c0_28, %c0_29] : memref<8x8x96xf32, #tpu.memory_space<vmem>>, vector<1x8x96xf32>
    %29 = vector.shape_cast %28 : vector<1x8x96xf32> to vector<8x96xf32>
    %cst_30 = arith.constant dense<0.000000e+00> : vector<8x96xf32>
    %30 = tpu.matmul %25, %16, %cst_30 {dimension_numbers = #tpu.dot_dimension_numbers<[1], [0], [0], [1], [0, 0, 1, 1], [], []>} : vector<8x32xf32>, vector<32x96xf32>, vector<8x96xf32> -> vector<8x96xf32>
    %31 = vector.extract_strided_slice %29 {offsets = [0, 0], sizes = [8, 32], strides = [1, 1]} : vector<8x96xf32> to vector<8x32xf32>
    %32 = vector.extract_strided_slice %30 {offsets = [0, 0], sizes = [8, 32], strides = [1, 1]} : vector<8x96xf32> to vector<8x32xf32>
    %33 = arith.addf %31, %32 : vector<8x32xf32>
    %34 = arith.negf %33 : vector<8x32xf32>
    %35 = math.exp %34 : vector<8x32xf32>
    %cst_31 = arith.constant 1.000000e+00 : f32
    %36 = vector.broadcast %cst_31 : f32 to vector<8x32xf32>
    %37 = arith.addf %36, %35 : vector<8x32xf32>
    %38 = arith.divf %36, %37 : vector<8x32xf32>
    %39 = vector.extract_strided_slice %29 {offsets = [0, 32], sizes = [8, 32], strides = [1, 1]} : vector<8x96xf32> to vector<8x32xf32>
    %40 = vector.extract_strided_slice %30 {offsets = [0, 32], sizes = [8, 32], strides = [1, 1]} : vector<8x96xf32> to vector<8x32xf32>
    %41 = arith.addf %39, %40 : vector<8x32xf32>
    %42 = arith.negf %41 : vector<8x32xf32>
    %43 = math.exp %42 : vector<8x32xf32>
    %cst_32 = arith.constant 1.000000e+00 : f32
    %44 = vector.broadcast %cst_32 : f32 to vector<8x32xf32>
    %45 = arith.addf %44, %43 : vector<8x32xf32>
    %46 = arith.divf %44, %45 : vector<8x32xf32>
    %47 = vector.extract_strided_slice %29 {offsets = [0, 64], sizes = [8, 32], strides = [1, 1]} : vector<8x96xf32> to vector<8x32xf32>
    %48 = vector.extract_strided_slice %30 {offsets = [0, 64], sizes = [8, 32], strides = [1, 1]} : vector<8x96xf32> to vector<8x32xf32>
    %49 = arith.addf %48, %20 : vector<8x32xf32>
    %50 = arith.mulf %38, %49 : vector<8x32xf32>
    %51 = arith.addf %47, %50 : vector<8x32xf32>
    %52 = math.tanh %51 : vector<8x32xf32>
    %cst_33 = arith.constant 1.000000e+00 : f32
    %53 = vector.broadcast %cst_33 : f32 to vector<8x32xf32>
    %54 = arith.subf %53, %46 : vector<8x32xf32>
    %55 = arith.mulf %54, %52 : vector<8x32xf32>
    %56 = arith.mulf %46, %25 : vector<8x32xf32>
    %57 = arith.addf %55, %56 : vector<8x32xf32>
    %58 = vector.broadcast %c0_i32 : i32 to vector<8x1xi32>
    %59 = arith.cmpi sgt, %24, %58 : vector<8x1xi32>
    %60 = vector.shape_cast %59 : vector<8x1xi1> to vector<8x1xi1>
    %61 = vector.broadcast %60 : vector<8x1xi1> to vector<8x32xi1>
    %62 = arith.select %61, %57, %25 : vector<8x32xi1>, vector<8x32xf32>
    %63 = arith.index_cast %26 : i32 to index
    %c0_34 = arith.constant 0 : index
    %c0_35 = arith.constant 0 : index
    %64 = vector.load %arg13[%63, %c0_34, %c0_35] : memref<8x8x96xf32, #tpu.memory_space<vmem>>, vector<1x8x96xf32>
    %65 = vector.shape_cast %64 : vector<1x8x96xf32> to vector<8x96xf32>
    %cst_36 = arith.constant dense<0.000000e+00> : vector<8x96xf32>
    %66 = tpu.matmul %25, %17, %cst_36 {dimension_numbers = #tpu.dot_dimension_numbers<[1], [0], [0], [1], [0, 0, 1, 1], [], []>} : vector<8x32xf32>, vector<32x96xf32>, vector<8x96xf32> -> vector<8x96xf32>
    %67 = vector.extract_strided_slice %65 {offsets = [0, 0], sizes = [8, 32], strides = [1, 1]} : vector<8x96xf32> to vector<8x32xf32>
    %68 = vector.extract_strided_slice %66 {offsets = [0, 0], sizes = [8, 32], strides = [1, 1]} : vector<8x96xf32> to vector<8x32xf32>
    %69 = arith.addf %67, %68 : vector<8x32xf32>
    %70 = arith.negf %69 : vector<8x32xf32>
    %71 = math.exp %70 : vector<8x32xf32>
    %cst_37 = arith.constant 1.000000e+00 : f32
    %72 = vector.broadcast %cst_37 : f32 to vector<8x32xf32>
    %73 = arith.addf %72, %71 : vector<8x32xf32>
    %74 = arith.divf %72, %73 : vector<8x32xf32>
    %75 = vector.extract_strided_slice %65 {offsets = [0, 32], sizes = [8, 32], strides = [1, 1]} : vector<8x96xf32> to vector<8x32xf32>
    %76 = vector.extract_strided_slice %66 {offsets = [0, 32], sizes = [8, 32], strides = [1, 1]} : vector<8x96xf32> to vector<8x32xf32>
    %77 = arith.addf %75, %76 : vector<8x32xf32>
    %78 = arith.negf %77 : vector<8x32xf32>
    %79 = math.exp %78 : vector<8x32xf32>
    %cst_38 = arith.constant 1.000000e+00 : f32
    %80 = vector.broadcast %cst_38 : f32 to vector<8x32xf32>
    %81 = arith.addf %80, %79 : vector<8x32xf32>
    %82 = arith.divf %80, %81 : vector<8x32xf32>
    %83 = vector.extract_strided_slice %65 {offsets = [0, 64], sizes = [8, 32], strides = [1, 1]} : vector<8x96xf32> to vector<8x32xf32>
    %84 = vector.extract_strided_slice %66 {offsets = [0, 64], sizes = [8, 32], strides = [1, 1]} : vector<8x96xf32> to vector<8x32xf32>
    %85 = arith.addf %84, %23 : vector<8x32xf32>
    %86 = arith.mulf %74, %85 : vector<8x32xf32>
    %87 = arith.addf %83, %86 : vector<8x32xf32>
    %88 = math.tanh %87 : vector<8x32xf32>
    %cst_39 = arith.constant 1.000000e+00 : f32
    %89 = vector.broadcast %cst_39 : f32 to vector<8x32xf32>
    %90 = arith.subf %89, %82 : vector<8x32xf32>
    %91 = arith.mulf %90, %88 : vector<8x32xf32>
    %92 = arith.mulf %82, %25 : vector<8x32xf32>
    %93 = arith.addf %91, %92 : vector<8x32xf32>
    %94 = vector.broadcast %26 : i32 to vector<8x1xi32>
    %95 = arith.cmpi sgt, %24, %94 : vector<8x1xi32>
    %96 = vector.shape_cast %95 : vector<8x1xi1> to vector<8x1xi1>
    %97 = vector.broadcast %96 : vector<8x1xi1> to vector<8x32xi1>
    %98 = arith.select %97, %93, %25 : vector<8x32xi1>, vector<8x32xf32>
    %c1_i32 = arith.constant 1 : i32
    %c7_i32_40 = arith.constant 7 : i32
    %99 = arith.subi %c7_i32_40, %c1_i32 : i32
    %100 = arith.index_cast %c1_i32 : i32 to index
    %c0_41 = arith.constant 0 : index
    %c0_42 = arith.constant 0 : index
    %101 = vector.load %arg12[%100, %c0_41, %c0_42] : memref<8x8x96xf32, #tpu.memory_space<vmem>>, vector<1x8x96xf32>
    %102 = vector.shape_cast %101 : vector<1x8x96xf32> to vector<8x96xf32>
    %cst_43 = arith.constant dense<0.000000e+00> : vector<8x96xf32>
    %103 = tpu.matmul %62, %16, %cst_43 {dimension_numbers = #tpu.dot_dimension_numbers<[1], [0], [0], [1], [0, 0, 1, 1], [], []>} : vector<8x32xf32>, vector<32x96xf32>, vector<8x96xf32> -> vector<8x96xf32>
    %104 = vector.extract_strided_slice %102 {offsets = [0, 0], sizes = [8, 32], strides = [1, 1]} : vector<8x96xf32> to vector<8x32xf32>
    %105 = vector.extract_strided_slice %103 {offsets = [0, 0], sizes = [8, 32], strides = [1, 1]} : vector<8x96xf32> to vector<8x32xf32>
    %106 = arith.addf %104, %105 : vector<8x32xf32>
    %107 = arith.negf %106 : vector<8x32xf32>
    %108 = math.exp %107 : vector<8x32xf32>
    %cst_44 = arith.constant 1.000000e+00 : f32
    %109 = vector.broadcast %cst_44 : f32 to vector<8x32xf32>
    %110 = arith.addf %109, %108 : vector<8x32xf32>
    %111 = arith.divf %109, %110 : vector<8x32xf32>
    %112 = vector.extract_strided_slice %102 {offsets = [0, 32], sizes = [8, 32], strides = [1, 1]} : vector<8x96xf32> to vector<8x32xf32>
    %113 = vector.extract_strided_slice %103 {offsets = [0, 32], sizes = [8, 32], strides = [1, 1]} : vector<8x96xf32> to vector<8x32xf32>
    %114 = arith.addf %112, %113 : vector<8x32xf32>
    %115 = arith.negf %114 : vector<8x32xf32>
    %116 = math.exp %115 : vector<8x32xf32>
    %cst_45 = arith.constant 1.000000e+00 : f32
    %117 = vector.broadcast %cst_45 : f32 to vector<8x32xf32>
    %118 = arith.addf %117, %116 : vector<8x32xf32>
    %119 = arith.divf %117, %118 : vector<8x32xf32>
    %120 = vector.extract_strided_slice %102 {offsets = [0, 64], sizes = [8, 32], strides = [1, 1]} : vector<8x96xf32> to vector<8x32xf32>
    %121 = vector.extract_strided_slice %103 {offsets = [0, 64], sizes = [8, 32], strides = [1, 1]} : vector<8x96xf32> to vector<8x32xf32>
    %122 = arith.addf %121, %20 : vector<8x32xf32>
    %123 = arith.mulf %111, %122 : vector<8x32xf32>
    %124 = arith.addf %120, %123 : vector<8x32xf32>
    %125 = math.tanh %124 : vector<8x32xf32>
    %cst_46 = arith.constant 1.000000e+00 : f32
    %126 = vector.broadcast %cst_46 : f32 to vector<8x32xf32>
    %127 = arith.subf %126, %119 : vector<8x32xf32>
    %128 = arith.mulf %127, %125 : vector<8x32xf32>
    %129 = arith.mulf %119, %62 : vector<8x32xf32>
    %130 = arith.addf %128, %129 : vector<8x32xf32>
    %131 = vector.broadcast %c1_i32 : i32 to vector<8x1xi32>
    %132 = arith.cmpi sgt, %24, %131 : vector<8x1xi32>
    %133 = vector.shape_cast %132 : vector<8x1xi1> to vector<8x1xi1>
    %134 = vector.broadcast %133 : vector<8x1xi1> to vector<8x32xi1>
    %135 = arith.select %134, %130, %62 : vector<8x32xi1>, vector<8x32xf32>
    %136 = arith.index_cast %99 : i32 to index
    %c0_47 = arith.constant 0 : index
    %c0_48 = arith.constant 0 : index
    %137 = vector.load %arg13[%136, %c0_47, %c0_48] : memref<8x8x96xf32, #tpu.memory_space<vmem>>, vector<1x8x96xf32>
    %138 = vector.shape_cast %137 : vector<1x8x96xf32> to vector<8x96xf32>
    %cst_49 = arith.constant dense<0.000000e+00> : vector<8x96xf32>
    %139 = tpu.matmul %98, %17, %cst_49 {dimension_numbers = #tpu.dot_dimension_numbers<[1], [0], [0], [1], [0, 0, 1, 1], [], []>} : vector<8x32xf32>, vector<32x96xf32>, vector<8x96xf32> -> vector<8x96xf32>
    %140 = vector.extract_strided_slice %138 {offsets = [0, 0], sizes = [8, 32], strides = [1, 1]} : vector<8x96xf32> to vector<8x32xf32>
    %141 = vector.extract_strided_slice %139 {offsets = [0, 0], sizes = [8, 32], strides = [1, 1]} : vector<8x96xf32> to vector<8x32xf32>
    %142 = arith.addf %140, %141 : vector<8x32xf32>
    %143 = arith.negf %142 : vector<8x32xf32>
    %144 = math.exp %143 : vector<8x32xf32>
    %cst_50 = arith.constant 1.000000e+00 : f32
    %145 = vector.broadcast %cst_50 : f32 to vector<8x32xf32>
    %146 = arith.addf %145, %144 : vector<8x32xf32>
    %147 = arith.divf %145, %146 : vector<8x32xf32>
    %148 = vector.extract_strided_slice %138 {offsets = [0, 32], sizes = [8, 32], strides = [1, 1]} : vector<8x96xf32> to vector<8x32xf32>
    %149 = vector.extract_strided_slice %139 {offsets = [0, 32], sizes = [8, 32], strides = [1, 1]} : vector<8x96xf32> to vector<8x32xf32>
    %150 = arith.addf %148, %149 : vector<8x32xf32>
    %151 = arith.negf %150 : vector<8x32xf32>
    %152 = math.exp %151 : vector<8x32xf32>
    %cst_51 = arith.constant 1.000000e+00 : f32
    %153 = vector.broadcast %cst_51 : f32 to vector<8x32xf32>
    %154 = arith.addf %153, %152 : vector<8x32xf32>
    %155 = arith.divf %153, %154 : vector<8x32xf32>
    %156 = vector.extract_strided_slice %138 {offsets = [0, 64], sizes = [8, 32], strides = [1, 1]} : vector<8x96xf32> to vector<8x32xf32>
    %157 = vector.extract_strided_slice %139 {offsets = [0, 64], sizes = [8, 32], strides = [1, 1]} : vector<8x96xf32> to vector<8x32xf32>
    %158 = arith.addf %157, %23 : vector<8x32xf32>
    %159 = arith.mulf %147, %158 : vector<8x32xf32>
    %160 = arith.addf %156, %159 : vector<8x32xf32>
    %161 = math.tanh %160 : vector<8x32xf32>
    %cst_52 = arith.constant 1.000000e+00 : f32
    %162 = vector.broadcast %cst_52 : f32 to vector<8x32xf32>
    %163 = arith.subf %162, %155 : vector<8x32xf32>
    %164 = arith.mulf %163, %161 : vector<8x32xf32>
    %165 = arith.mulf %155, %98 : vector<8x32xf32>
    %166 = arith.addf %164, %165 : vector<8x32xf32>
    %167 = vector.broadcast %99 : i32 to vector<8x1xi32>
    %168 = arith.cmpi sgt, %24, %167 : vector<8x1xi32>
    %169 = vector.shape_cast %168 : vector<8x1xi1> to vector<8x1xi1>
    %170 = vector.broadcast %169 : vector<8x1xi1> to vector<8x32xi1>
    %171 = arith.select %170, %166, %98 : vector<8x32xi1>, vector<8x32xf32>
    %c2_i32 = arith.constant 2 : i32
    %c7_i32_53 = arith.constant 7 : i32
    %172 = arith.subi %c7_i32_53, %c2_i32 : i32
    %173 = arith.index_cast %c2_i32 : i32 to index
    %c0_54 = arith.constant 0 : index
    %c0_55 = arith.constant 0 : index
    %174 = vector.load %arg12[%173, %c0_54, %c0_55] : memref<8x8x96xf32, #tpu.memory_space<vmem>>, vector<1x8x96xf32>
    %175 = vector.shape_cast %174 : vector<1x8x96xf32> to vector<8x96xf32>
    %cst_56 = arith.constant dense<0.000000e+00> : vector<8x96xf32>
    %176 = tpu.matmul %135, %16, %cst_56 {dimension_numbers = #tpu.dot_dimension_numbers<[1], [0], [0], [1], [0, 0, 1, 1], [], []>} : vector<8x32xf32>, vector<32x96xf32>, vector<8x96xf32> -> vector<8x96xf32>
    %177 = vector.extract_strided_slice %175 {offsets = [0, 0], sizes = [8, 32], strides = [1, 1]} : vector<8x96xf32> to vector<8x32xf32>
    %178 = vector.extract_strided_slice %176 {offsets = [0, 0], sizes = [8, 32], strides = [1, 1]} : vector<8x96xf32> to vector<8x32xf32>
    %179 = arith.addf %177, %178 : vector<8x32xf32>
    %180 = arith.negf %179 : vector<8x32xf32>
    %181 = math.exp %180 : vector<8x32xf32>
    %cst_57 = arith.constant 1.000000e+00 : f32
    %182 = vector.broadcast %cst_57 : f32 to vector<8x32xf32>
    %183 = arith.addf %182, %181 : vector<8x32xf32>
    %184 = arith.divf %182, %183 : vector<8x32xf32>
    %185 = vector.extract_strided_slice %175 {offsets = [0, 32], sizes = [8, 32], strides = [1, 1]} : vector<8x96xf32> to vector<8x32xf32>
    %186 = vector.extract_strided_slice %176 {offsets = [0, 32], sizes = [8, 32], strides = [1, 1]} : vector<8x96xf32> to vector<8x32xf32>
    %187 = arith.addf %185, %186 : vector<8x32xf32>
    %188 = arith.negf %187 : vector<8x32xf32>
    %189 = math.exp %188 : vector<8x32xf32>
    %cst_58 = arith.constant 1.000000e+00 : f32
    %190 = vector.broadcast %cst_58 : f32 to vector<8x32xf32>
    %191 = arith.addf %190, %189 : vector<8x32xf32>
    %192 = arith.divf %190, %191 : vector<8x32xf32>
    %193 = vector.extract_strided_slice %175 {offsets = [0, 64], sizes = [8, 32], strides = [1, 1]} : vector<8x96xf32> to vector<8x32xf32>
    %194 = vector.extract_strided_slice %176 {offsets = [0, 64], sizes = [8, 32], strides = [1, 1]} : vector<8x96xf32> to vector<8x32xf32>
    %195 = arith.addf %194, %20 : vector<8x32xf32>
    %196 = arith.mulf %184, %195 : vector<8x32xf32>
    %197 = arith.addf %193, %196 : vector<8x32xf32>
    %198 = math.tanh %197 : vector<8x32xf32>
    %cst_59 = arith.constant 1.000000e+00 : f32
    %199 = vector.broadcast %cst_59 : f32 to vector<8x32xf32>
    %200 = arith.subf %199, %192 : vector<8x32xf32>
    %201 = arith.mulf %200, %198 : vector<8x32xf32>
    %202 = arith.mulf %192, %135 : vector<8x32xf32>
    %203 = arith.addf %201, %202 : vector<8x32xf32>
    %204 = vector.broadcast %c2_i32 : i32 to vector<8x1xi32>
    %205 = arith.cmpi sgt, %24, %204 : vector<8x1xi32>
    %206 = vector.shape_cast %205 : vector<8x1xi1> to vector<8x1xi1>
    %207 = vector.broadcast %206 : vector<8x1xi1> to vector<8x32xi1>
    %208 = arith.select %207, %203, %135 : vector<8x32xi1>, vector<8x32xf32>
    %209 = arith.index_cast %172 : i32 to index
    %c0_60 = arith.constant 0 : index
    %c0_61 = arith.constant 0 : index
    %210 = vector.load %arg13[%209, %c0_60, %c0_61] : memref<8x8x96xf32, #tpu.memory_space<vmem>>, vector<1x8x96xf32>
    %211 = vector.shape_cast %210 : vector<1x8x96xf32> to vector<8x96xf32>
    %cst_62 = arith.constant dense<0.000000e+00> : vector<8x96xf32>
    %212 = tpu.matmul %171, %17, %cst_62 {dimension_numbers = #tpu.dot_dimension_numbers<[1], [0], [0], [1], [0, 0, 1, 1], [], []>} : vector<8x32xf32>, vector<32x96xf32>, vector<8x96xf32> -> vector<8x96xf32>
    %213 = vector.extract_strided_slice %211 {offsets = [0, 0], sizes = [8, 32], strides = [1, 1]} : vector<8x96xf32> to vector<8x32xf32>
    %214 = vector.extract_strided_slice %212 {offsets = [0, 0], sizes = [8, 32], strides = [1, 1]} : vector<8x96xf32> to vector<8x32xf32>
    %215 = arith.addf %213, %214 : vector<8x32xf32>
    %216 = arith.negf %215 : vector<8x32xf32>
    %217 = math.exp %216 : vector<8x32xf32>
    %cst_63 = arith.constant 1.000000e+00 : f32
    %218 = vector.broadcast %cst_63 : f32 to vector<8x32xf32>
    %219 = arith.addf %218, %217 : vector<8x32xf32>
    %220 = arith.divf %218, %219 : vector<8x32xf32>
    %221 = vector.extract_strided_slice %211 {offsets = [0, 32], sizes = [8, 32], strides = [1, 1]} : vector<8x96xf32> to vector<8x32xf32>
    %222 = vector.extract_strided_slice %212 {offsets = [0, 32], sizes = [8, 32], strides = [1, 1]} : vector<8x96xf32> to vector<8x32xf32>
    %223 = arith.addf %221, %222 : vector<8x32xf32>
    %224 = arith.negf %223 : vector<8x32xf32>
    %225 = math.exp %224 : vector<8x32xf32>
    %cst_64 = arith.constant 1.000000e+00 : f32
    %226 = vector.broadcast %cst_64 : f32 to vector<8x32xf32>
    %227 = arith.addf %226, %225 : vector<8x32xf32>
    %228 = arith.divf %226, %227 : vector<8x32xf32>
    %229 = vector.extract_strided_slice %211 {offsets = [0, 64], sizes = [8, 32], strides = [1, 1]} : vector<8x96xf32> to vector<8x32xf32>
    %230 = vector.extract_strided_slice %212 {offsets = [0, 64], sizes = [8, 32], strides = [1, 1]} : vector<8x96xf32> to vector<8x32xf32>
    %231 = arith.addf %230, %23 : vector<8x32xf32>
    %232 = arith.mulf %220, %231 : vector<8x32xf32>
    %233 = arith.addf %229, %232 : vector<8x32xf32>
    %234 = math.tanh %233 : vector<8x32xf32>
    %cst_65 = arith.constant 1.000000e+00 : f32
    %235 = vector.broadcast %cst_65 : f32 to vector<8x32xf32>
    %236 = arith.subf %235, %228 : vector<8x32xf32>
    %237 = arith.mulf %236, %234 : vector<8x32xf32>
    %238 = arith.mulf %228, %171 : vector<8x32xf32>
    %239 = arith.addf %237, %238 : vector<8x32xf32>
    %240 = vector.broadcast %172 : i32 to vector<8x1xi32>
    %241 = arith.cmpi sgt, %24, %240 : vector<8x1xi32>
    %242 = vector.shape_cast %241 : vector<8x1xi1> to vector<8x1xi1>
    %243 = vector.broadcast %242 : vector<8x1xi1> to vector<8x32xi1>
    %244 = arith.select %243, %239, %171 : vector<8x32xi1>, vector<8x32xf32>
    %c3_i32 = arith.constant 3 : i32
    %c7_i32_66 = arith.constant 7 : i32
    %245 = arith.subi %c7_i32_66, %c3_i32 : i32
    %246 = arith.index_cast %c3_i32 : i32 to index
    %c0_67 = arith.constant 0 : index
    %c0_68 = arith.constant 0 : index
    %247 = vector.load %arg12[%246, %c0_67, %c0_68] : memref<8x8x96xf32, #tpu.memory_space<vmem>>, vector<1x8x96xf32>
    %248 = vector.shape_cast %247 : vector<1x8x96xf32> to vector<8x96xf32>
    %cst_69 = arith.constant dense<0.000000e+00> : vector<8x96xf32>
    %249 = tpu.matmul %208, %16, %cst_69 {dimension_numbers = #tpu.dot_dimension_numbers<[1], [0], [0], [1], [0, 0, 1, 1], [], []>} : vector<8x32xf32>, vector<32x96xf32>, vector<8x96xf32> -> vector<8x96xf32>
    %250 = vector.extract_strided_slice %248 {offsets = [0, 0], sizes = [8, 32], strides = [1, 1]} : vector<8x96xf32> to vector<8x32xf32>
    %251 = vector.extract_strided_slice %249 {offsets = [0, 0], sizes = [8, 32], strides = [1, 1]} : vector<8x96xf32> to vector<8x32xf32>
    %252 = arith.addf %250, %251 : vector<8x32xf32>
    %253 = arith.negf %252 : vector<8x32xf32>
    %254 = math.exp %253 : vector<8x32xf32>
    %cst_70 = arith.constant 1.000000e+00 : f32
    %255 = vector.broadcast %cst_70 : f32 to vector<8x32xf32>
    %256 = arith.addf %255, %254 : vector<8x32xf32>
    %257 = arith.divf %255, %256 : vector<8x32xf32>
    %258 = vector.extract_strided_slice %248 {offsets = [0, 32], sizes = [8, 32], strides = [1, 1]} : vector<8x96xf32> to vector<8x32xf32>
    %259 = vector.extract_strided_slice %249 {offsets = [0, 32], sizes = [8, 32], strides = [1, 1]} : vector<8x96xf32> to vector<8x32xf32>
    %260 = arith.addf %258, %259 : vector<8x32xf32>
    %261 = arith.negf %260 : vector<8x32xf32>
    %262 = math.exp %261 : vector<8x32xf32>
    %cst_71 = arith.constant 1.000000e+00 : f32
    %263 = vector.broadcast %cst_71 : f32 to vector<8x32xf32>
    %264 = arith.addf %263, %262 : vector<8x32xf32>
    %265 = arith.divf %263, %264 : vector<8x32xf32>
    %266 = vector.extract_strided_slice %248 {offsets = [0, 64], sizes = [8, 32], strides = [1, 1]} : vector<8x96xf32> to vector<8x32xf32>
    %267 = vector.extract_strided_slice %249 {offsets = [0, 64], sizes = [8, 32], strides = [1, 1]} : vector<8x96xf32> to vector<8x32xf32>
    %268 = arith.addf %267, %20 : vector<8x32xf32>
    %269 = arith.mulf %257, %268 : vector<8x32xf32>
    %270 = arith.addf %266, %269 : vector<8x32xf32>
    %271 = math.tanh %270 : vector<8x32xf32>
    %cst_72 = arith.constant 1.000000e+00 : f32
    %272 = vector.broadcast %cst_72 : f32 to vector<8x32xf32>
    %273 = arith.subf %272, %265 : vector<8x32xf32>
    %274 = arith.mulf %273, %271 : vector<8x32xf32>
    %275 = arith.mulf %265, %208 : vector<8x32xf32>
    %276 = arith.addf %274, %275 : vector<8x32xf32>
    %277 = vector.broadcast %c3_i32 : i32 to vector<8x1xi32>
    %278 = arith.cmpi sgt, %24, %277 : vector<8x1xi32>
    %279 = vector.shape_cast %278 : vector<8x1xi1> to vector<8x1xi1>
    %280 = vector.broadcast %279 : vector<8x1xi1> to vector<8x32xi1>
    %281 = arith.select %280, %276, %208 : vector<8x32xi1>, vector<8x32xf32>
    %282 = arith.index_cast %245 : i32 to index
    %c0_73 = arith.constant 0 : index
    %c0_74 = arith.constant 0 : index
    %283 = vector.load %arg13[%282, %c0_73, %c0_74] : memref<8x8x96xf32, #tpu.memory_space<vmem>>, vector<1x8x96xf32>
    %284 = vector.shape_cast %283 : vector<1x8x96xf32> to vector<8x96xf32>
    %cst_75 = arith.constant dense<0.000000e+00> : vector<8x96xf32>
    %285 = tpu.matmul %244, %17, %cst_75 {dimension_numbers = #tpu.dot_dimension_numbers<[1], [0], [0], [1], [0, 0, 1, 1], [], []>} : vector<8x32xf32>, vector<32x96xf32>, vector<8x96xf32> -> vector<8x96xf32>
    %286 = vector.extract_strided_slice %284 {offsets = [0, 0], sizes = [8, 32], strides = [1, 1]} : vector<8x96xf32> to vector<8x32xf32>
    %287 = vector.extract_strided_slice %285 {offsets = [0, 0], sizes = [8, 32], strides = [1, 1]} : vector<8x96xf32> to vector<8x32xf32>
    %288 = arith.addf %286, %287 : vector<8x32xf32>
    %289 = arith.negf %288 : vector<8x32xf32>
    %290 = math.exp %289 : vector<8x32xf32>
    %cst_76 = arith.constant 1.000000e+00 : f32
    %291 = vector.broadcast %cst_76 : f32 to vector<8x32xf32>
    %292 = arith.addf %291, %290 : vector<8x32xf32>
    %293 = arith.divf %291, %292 : vector<8x32xf32>
    %294 = vector.extract_strided_slice %284 {offsets = [0, 32], sizes = [8, 32], strides = [1, 1]} : vector<8x96xf32> to vector<8x32xf32>
    %295 = vector.extract_strided_slice %285 {offsets = [0, 32], sizes = [8, 32], strides = [1, 1]} : vector<8x96xf32> to vector<8x32xf32>
    %296 = arith.addf %294, %295 : vector<8x32xf32>
    %297 = arith.negf %296 : vector<8x32xf32>
    %298 = math.exp %297 : vector<8x32xf32>
    %cst_77 = arith.constant 1.000000e+00 : f32
    %299 = vector.broadcast %cst_77 : f32 to vector<8x32xf32>
    %300 = arith.addf %299, %298 : vector<8x32xf32>
    %301 = arith.divf %299, %300 : vector<8x32xf32>
    %302 = vector.extract_strided_slice %284 {offsets = [0, 64], sizes = [8, 32], strides = [1, 1]} : vector<8x96xf32> to vector<8x32xf32>
    %303 = vector.extract_strided_slice %285 {offsets = [0, 64], sizes = [8, 32], strides = [1, 1]} : vector<8x96xf32> to vector<8x32xf32>
    %304 = arith.addf %303, %23 : vector<8x32xf32>
    %305 = arith.mulf %293, %304 : vector<8x32xf32>
    %306 = arith.addf %302, %305 : vector<8x32xf32>
    %307 = math.tanh %306 : vector<8x32xf32>
    %cst_78 = arith.constant 1.000000e+00 : f32
    %308 = vector.broadcast %cst_78 : f32 to vector<8x32xf32>
    %309 = arith.subf %308, %301 : vector<8x32xf32>
    %310 = arith.mulf %309, %307 : vector<8x32xf32>
    %311 = arith.mulf %301, %244 : vector<8x32xf32>
    %312 = arith.addf %310, %311 : vector<8x32xf32>
    %313 = vector.broadcast %245 : i32 to vector<8x1xi32>
    %314 = arith.cmpi sgt, %24, %313 : vector<8x1xi32>
    %315 = vector.shape_cast %314 : vector<8x1xi1> to vector<8x1xi1>
    %316 = vector.broadcast %315 : vector<8x1xi1> to vector<8x32xi1>
    %317 = arith.select %316, %312, %244 : vector<8x32xi1>, vector<8x32xf32>
    %c4_i32 = arith.constant 4 : i32
    %c7_i32_79 = arith.constant 7 : i32
    %318 = arith.subi %c7_i32_79, %c4_i32 : i32
    %319 = arith.index_cast %c4_i32 : i32 to index
    %c0_80 = arith.constant 0 : index
    %c0_81 = arith.constant 0 : index
    %320 = vector.load %arg12[%319, %c0_80, %c0_81] : memref<8x8x96xf32, #tpu.memory_space<vmem>>, vector<1x8x96xf32>
    %321 = vector.shape_cast %320 : vector<1x8x96xf32> to vector<8x96xf32>
    %cst_82 = arith.constant dense<0.000000e+00> : vector<8x96xf32>
    %322 = tpu.matmul %281, %16, %cst_82 {dimension_numbers = #tpu.dot_dimension_numbers<[1], [0], [0], [1], [0, 0, 1, 1], [], []>} : vector<8x32xf32>, vector<32x96xf32>, vector<8x96xf32> -> vector<8x96xf32>
    %323 = vector.extract_strided_slice %321 {offsets = [0, 0], sizes = [8, 32], strides = [1, 1]} : vector<8x96xf32> to vector<8x32xf32>
    %324 = vector.extract_strided_slice %322 {offsets = [0, 0], sizes = [8, 32], strides = [1, 1]} : vector<8x96xf32> to vector<8x32xf32>
    %325 = arith.addf %323, %324 : vector<8x32xf32>
    %326 = arith.negf %325 : vector<8x32xf32>
    %327 = math.exp %326 : vector<8x32xf32>
    %cst_83 = arith.constant 1.000000e+00 : f32
    %328 = vector.broadcast %cst_83 : f32 to vector<8x32xf32>
    %329 = arith.addf %328, %327 : vector<8x32xf32>
    %330 = arith.divf %328, %329 : vector<8x32xf32>
    %331 = vector.extract_strided_slice %321 {offsets = [0, 32], sizes = [8, 32], strides = [1, 1]} : vector<8x96xf32> to vector<8x32xf32>
    %332 = vector.extract_strided_slice %322 {offsets = [0, 32], sizes = [8, 32], strides = [1, 1]} : vector<8x96xf32> to vector<8x32xf32>
    %333 = arith.addf %331, %332 : vector<8x32xf32>
    %334 = arith.negf %333 : vector<8x32xf32>
    %335 = math.exp %334 : vector<8x32xf32>
    %cst_84 = arith.constant 1.000000e+00 : f32
    %336 = vector.broadcast %cst_84 : f32 to vector<8x32xf32>
    %337 = arith.addf %336, %335 : vector<8x32xf32>
    %338 = arith.divf %336, %337 : vector<8x32xf32>
    %339 = vector.extract_strided_slice %321 {offsets = [0, 64], sizes = [8, 32], strides = [1, 1]} : vector<8x96xf32> to vector<8x32xf32>
    %340 = vector.extract_strided_slice %322 {offsets = [0, 64], sizes = [8, 32], strides = [1, 1]} : vector<8x96xf32> to vector<8x32xf32>
    %341 = arith.addf %340, %20 : vector<8x32xf32>
    %342 = arith.mulf %330, %341 : vector<8x32xf32>
    %343 = arith.addf %339, %342 : vector<8x32xf32>
    %344 = math.tanh %343 : vector<8x32xf32>
    %cst_85 = arith.constant 1.000000e+00 : f32
    %345 = vector.broadcast %cst_85 : f32 to vector<8x32xf32>
    %346 = arith.subf %345, %338 : vector<8x32xf32>
    %347 = arith.mulf %346, %344 : vector<8x32xf32>
    %348 = arith.mulf %338, %281 : vector<8x32xf32>
    %349 = arith.addf %347, %348 : vector<8x32xf32>
    %350 = vector.broadcast %c4_i32 : i32 to vector<8x1xi32>
    %351 = arith.cmpi sgt, %24, %350 : vector<8x1xi32>
    %352 = vector.shape_cast %351 : vector<8x1xi1> to vector<8x1xi1>
    %353 = vector.broadcast %352 : vector<8x1xi1> to vector<8x32xi1>
    %354 = arith.select %353, %349, %281 : vector<8x32xi1>, vector<8x32xf32>
    %355 = arith.index_cast %318 : i32 to index
    %c0_86 = arith.constant 0 : index
    %c0_87 = arith.constant 0 : index
    %356 = vector.load %arg13[%355, %c0_86, %c0_87] : memref<8x8x96xf32, #tpu.memory_space<vmem>>, vector<1x8x96xf32>
    %357 = vector.shape_cast %356 : vector<1x8x96xf32> to vector<8x96xf32>
    %cst_88 = arith.constant dense<0.000000e+00> : vector<8x96xf32>
    %358 = tpu.matmul %317, %17, %cst_88 {dimension_numbers = #tpu.dot_dimension_numbers<[1], [0], [0], [1], [0, 0, 1, 1], [], []>} : vector<8x32xf32>, vector<32x96xf32>, vector<8x96xf32> -> vector<8x96xf32>
    %359 = vector.extract_strided_slice %357 {offsets = [0, 0], sizes = [8, 32], strides = [1, 1]} : vector<8x96xf32> to vector<8x32xf32>
    %360 = vector.extract_strided_slice %358 {offsets = [0, 0], sizes = [8, 32], strides = [1, 1]} : vector<8x96xf32> to vector<8x32xf32>
    %361 = arith.addf %359, %360 : vector<8x32xf32>
    %362 = arith.negf %361 : vector<8x32xf32>
    %363 = math.exp %362 : vector<8x32xf32>
    %cst_89 = arith.constant 1.000000e+00 : f32
    %364 = vector.broadcast %cst_89 : f32 to vector<8x32xf32>
    %365 = arith.addf %364, %363 : vector<8x32xf32>
    %366 = arith.divf %364, %365 : vector<8x32xf32>
    %367 = vector.extract_strided_slice %357 {offsets = [0, 32], sizes = [8, 32], strides = [1, 1]} : vector<8x96xf32> to vector<8x32xf32>
    %368 = vector.extract_strided_slice %358 {offsets = [0, 32], sizes = [8, 32], strides = [1, 1]} : vector<8x96xf32> to vector<8x32xf32>
    %369 = arith.addf %367, %368 : vector<8x32xf32>
    %370 = arith.negf %369 : vector<8x32xf32>
    %371 = math.exp %370 : vector<8x32xf32>
    %cst_90 = arith.constant 1.000000e+00 : f32
    %372 = vector.broadcast %cst_90 : f32 to vector<8x32xf32>
    %373 = arith.addf %372, %371 : vector<8x32xf32>
    %374 = arith.divf %372, %373 : vector<8x32xf32>
    %375 = vector.extract_strided_slice %357 {offsets = [0, 64], sizes = [8, 32], strides = [1, 1]} : vector<8x96xf32> to vector<8x32xf32>
    %376 = vector.extract_strided_slice %358 {offsets = [0, 64], sizes = [8, 32], strides = [1, 1]} : vector<8x96xf32> to vector<8x32xf32>
    %377 = arith.addf %376, %23 : vector<8x32xf32>
    %378 = arith.mulf %366, %377 : vector<8x32xf32>
    %379 = arith.addf %375, %378 : vector<8x32xf32>
    %380 = math.tanh %379 : vector<8x32xf32>
    %cst_91 = arith.constant 1.000000e+00 : f32
    %381 = vector.broadcast %cst_91 : f32 to vector<8x32xf32>
    %382 = arith.subf %381, %374 : vector<8x32xf32>
    %383 = arith.mulf %382, %380 : vector<8x32xf32>
    %384 = arith.mulf %374, %317 : vector<8x32xf32>
    %385 = arith.addf %383, %384 : vector<8x32xf32>
    %386 = vector.broadcast %318 : i32 to vector<8x1xi32>
    %387 = arith.cmpi sgt, %24, %386 : vector<8x1xi32>
    %388 = vector.shape_cast %387 : vector<8x1xi1> to vector<8x1xi1>
    %389 = vector.broadcast %388 : vector<8x1xi1> to vector<8x32xi1>
    %390 = arith.select %389, %385, %317 : vector<8x32xi1>, vector<8x32xf32>
    %c5_i32 = arith.constant 5 : i32
    %c7_i32_92 = arith.constant 7 : i32
    %391 = arith.subi %c7_i32_92, %c5_i32 : i32
    %392 = arith.index_cast %c5_i32 : i32 to index
    %c0_93 = arith.constant 0 : index
    %c0_94 = arith.constant 0 : index
    %393 = vector.load %arg12[%392, %c0_93, %c0_94] : memref<8x8x96xf32, #tpu.memory_space<vmem>>, vector<1x8x96xf32>
    %394 = vector.shape_cast %393 : vector<1x8x96xf32> to vector<8x96xf32>
    %cst_95 = arith.constant dense<0.000000e+00> : vector<8x96xf32>
    %395 = tpu.matmul %354, %16, %cst_95 {dimension_numbers = #tpu.dot_dimension_numbers<[1], [0], [0], [1], [0, 0, 1, 1], [], []>} : vector<8x32xf32>, vector<32x96xf32>, vector<8x96xf32> -> vector<8x96xf32>
    %396 = vector.extract_strided_slice %394 {offsets = [0, 0], sizes = [8, 32], strides = [1, 1]} : vector<8x96xf32> to vector<8x32xf32>
    %397 = vector.extract_strided_slice %395 {offsets = [0, 0], sizes = [8, 32], strides = [1, 1]} : vector<8x96xf32> to vector<8x32xf32>
    %398 = arith.addf %396, %397 : vector<8x32xf32>
    %399 = arith.negf %398 : vector<8x32xf32>
    %400 = math.exp %399 : vector<8x32xf32>
    %cst_96 = arith.constant 1.000000e+00 : f32
    %401 = vector.broadcast %cst_96 : f32 to vector<8x32xf32>
    %402 = arith.addf %401, %400 : vector<8x32xf32>
    %403 = arith.divf %401, %402 : vector<8x32xf32>
    %404 = vector.extract_strided_slice %394 {offsets = [0, 32], sizes = [8, 32], strides = [1, 1]} : vector<8x96xf32> to vector<8x32xf32>
    %405 = vector.extract_strided_slice %395 {offsets = [0, 32], sizes = [8, 32], strides = [1, 1]} : vector<8x96xf32> to vector<8x32xf32>
    %406 = arith.addf %404, %405 : vector<8x32xf32>
    %407 = arith.negf %406 : vector<8x32xf32>
    %408 = math.exp %407 : vector<8x32xf32>
    %cst_97 = arith.constant 1.000000e+00 : f32
    %409 = vector.broadcast %cst_97 : f32 to vector<8x32xf32>
    %410 = arith.addf %409, %408 : vector<8x32xf32>
    %411 = arith.divf %409, %410 : vector<8x32xf32>
    %412 = vector.extract_strided_slice %394 {offsets = [0, 64], sizes = [8, 32], strides = [1, 1]} : vector<8x96xf32> to vector<8x32xf32>
    %413 = vector.extract_strided_slice %395 {offsets = [0, 64], sizes = [8, 32], strides = [1, 1]} : vector<8x96xf32> to vector<8x32xf32>
    %414 = arith.addf %413, %20 : vector<8x32xf32>
    %415 = arith.mulf %403, %414 : vector<8x32xf32>
    %416 = arith.addf %412, %415 : vector<8x32xf32>
    %417 = math.tanh %416 : vector<8x32xf32>
    %cst_98 = arith.constant 1.000000e+00 : f32
    %418 = vector.broadcast %cst_98 : f32 to vector<8x32xf32>
    %419 = arith.subf %418, %411 : vector<8x32xf32>
    %420 = arith.mulf %419, %417 : vector<8x32xf32>
    %421 = arith.mulf %411, %354 : vector<8x32xf32>
    %422 = arith.addf %420, %421 : vector<8x32xf32>
    %423 = vector.broadcast %c5_i32 : i32 to vector<8x1xi32>
    %424 = arith.cmpi sgt, %24, %423 : vector<8x1xi32>
    %425 = vector.shape_cast %424 : vector<8x1xi1> to vector<8x1xi1>
    %426 = vector.broadcast %425 : vector<8x1xi1> to vector<8x32xi1>
    %427 = arith.select %426, %422, %354 : vector<8x32xi1>, vector<8x32xf32>
    %428 = arith.index_cast %391 : i32 to index
    %c0_99 = arith.constant 0 : index
    %c0_100 = arith.constant 0 : index
    %429 = vector.load %arg13[%428, %c0_99, %c0_100] : memref<8x8x96xf32, #tpu.memory_space<vmem>>, vector<1x8x96xf32>
    %430 = vector.shape_cast %429 : vector<1x8x96xf32> to vector<8x96xf32>
    %cst_101 = arith.constant dense<0.000000e+00> : vector<8x96xf32>
    %431 = tpu.matmul %390, %17, %cst_101 {dimension_numbers = #tpu.dot_dimension_numbers<[1], [0], [0], [1], [0, 0, 1, 1], [], []>} : vector<8x32xf32>, vector<32x96xf32>, vector<8x96xf32> -> vector<8x96xf32>
    %432 = vector.extract_strided_slice %430 {offsets = [0, 0], sizes = [8, 32], strides = [1, 1]} : vector<8x96xf32> to vector<8x32xf32>
    %433 = vector.extract_strided_slice %431 {offsets = [0, 0], sizes = [8, 32], strides = [1, 1]} : vector<8x96xf32> to vector<8x32xf32>
    %434 = arith.addf %432, %433 : vector<8x32xf32>
    %435 = arith.negf %434 : vector<8x32xf32>
    %436 = math.exp %435 : vector<8x32xf32>
    %cst_102 = arith.constant 1.000000e+00 : f32
    %437 = vector.broadcast %cst_102 : f32 to vector<8x32xf32>
    %438 = arith.addf %437, %436 : vector<8x32xf32>
    %439 = arith.divf %437, %438 : vector<8x32xf32>
    %440 = vector.extract_strided_slice %430 {offsets = [0, 32], sizes = [8, 32], strides = [1, 1]} : vector<8x96xf32> to vector<8x32xf32>
    %441 = vector.extract_strided_slice %431 {offsets = [0, 32], sizes = [8, 32], strides = [1, 1]} : vector<8x96xf32> to vector<8x32xf32>
    %442 = arith.addf %440, %441 : vector<8x32xf32>
    %443 = arith.negf %442 : vector<8x32xf32>
    %444 = math.exp %443 : vector<8x32xf32>
    %cst_103 = arith.constant 1.000000e+00 : f32
    %445 = vector.broadcast %cst_103 : f32 to vector<8x32xf32>
    %446 = arith.addf %445, %444 : vector<8x32xf32>
    %447 = arith.divf %445, %446 : vector<8x32xf32>
    %448 = vector.extract_strided_slice %430 {offsets = [0, 64], sizes = [8, 32], strides = [1, 1]} : vector<8x96xf32> to vector<8x32xf32>
    %449 = vector.extract_strided_slice %431 {offsets = [0, 64], sizes = [8, 32], strides = [1, 1]} : vector<8x96xf32> to vector<8x32xf32>
    %450 = arith.addf %449, %23 : vector<8x32xf32>
    %451 = arith.mulf %439, %450 : vector<8x32xf32>
    %452 = arith.addf %448, %451 : vector<8x32xf32>
    %453 = math.tanh %452 : vector<8x32xf32>
    %cst_104 = arith.constant 1.000000e+00 : f32
    %454 = vector.broadcast %cst_104 : f32 to vector<8x32xf32>
    %455 = arith.subf %454, %447 : vector<8x32xf32>
    %456 = arith.mulf %455, %453 : vector<8x32xf32>
    %457 = arith.mulf %447, %390 : vector<8x32xf32>
    %458 = arith.addf %456, %457 : vector<8x32xf32>
    %459 = vector.broadcast %391 : i32 to vector<8x1xi32>
    %460 = arith.cmpi sgt, %24, %459 : vector<8x1xi32>
    %461 = vector.shape_cast %460 : vector<8x1xi1> to vector<8x1xi1>
    %462 = vector.broadcast %461 : vector<8x1xi1> to vector<8x32xi1>
    %463 = arith.select %462, %458, %390 : vector<8x32xi1>, vector<8x32xf32>
    %c6_i32 = arith.constant 6 : i32
    %c7_i32_105 = arith.constant 7 : i32
    %464 = arith.subi %c7_i32_105, %c6_i32 : i32
    %465 = arith.index_cast %c6_i32 : i32 to index
    %c0_106 = arith.constant 0 : index
    %c0_107 = arith.constant 0 : index
    %466 = vector.load %arg12[%465, %c0_106, %c0_107] : memref<8x8x96xf32, #tpu.memory_space<vmem>>, vector<1x8x96xf32>
    %467 = vector.shape_cast %466 : vector<1x8x96xf32> to vector<8x96xf32>
    %cst_108 = arith.constant dense<0.000000e+00> : vector<8x96xf32>
    %468 = tpu.matmul %427, %16, %cst_108 {dimension_numbers = #tpu.dot_dimension_numbers<[1], [0], [0], [1], [0, 0, 1, 1], [], []>} : vector<8x32xf32>, vector<32x96xf32>, vector<8x96xf32> -> vector<8x96xf32>
    %469 = vector.extract_strided_slice %467 {offsets = [0, 0], sizes = [8, 32], strides = [1, 1]} : vector<8x96xf32> to vector<8x32xf32>
    %470 = vector.extract_strided_slice %468 {offsets = [0, 0], sizes = [8, 32], strides = [1, 1]} : vector<8x96xf32> to vector<8x32xf32>
    %471 = arith.addf %469, %470 : vector<8x32xf32>
    %472 = arith.negf %471 : vector<8x32xf32>
    %473 = math.exp %472 : vector<8x32xf32>
    %cst_109 = arith.constant 1.000000e+00 : f32
    %474 = vector.broadcast %cst_109 : f32 to vector<8x32xf32>
    %475 = arith.addf %474, %473 : vector<8x32xf32>
    %476 = arith.divf %474, %475 : vector<8x32xf32>
    %477 = vector.extract_strided_slice %467 {offsets = [0, 32], sizes = [8, 32], strides = [1, 1]} : vector<8x96xf32> to vector<8x32xf32>
    %478 = vector.extract_strided_slice %468 {offsets = [0, 32], sizes = [8, 32], strides = [1, 1]} : vector<8x96xf32> to vector<8x32xf32>
    %479 = arith.addf %477, %478 : vector<8x32xf32>
    %480 = arith.negf %479 : vector<8x32xf32>
    %481 = math.exp %480 : vector<8x32xf32>
    %cst_110 = arith.constant 1.000000e+00 : f32
    %482 = vector.broadcast %cst_110 : f32 to vector<8x32xf32>
    %483 = arith.addf %482, %481 : vector<8x32xf32>
    %484 = arith.divf %482, %483 : vector<8x32xf32>
    %485 = vector.extract_strided_slice %467 {offsets = [0, 64], sizes = [8, 32], strides = [1, 1]} : vector<8x96xf32> to vector<8x32xf32>
    %486 = vector.extract_strided_slice %468 {offsets = [0, 64], sizes = [8, 32], strides = [1, 1]} : vector<8x96xf32> to vector<8x32xf32>
    %487 = arith.addf %486, %20 : vector<8x32xf32>
    %488 = arith.mulf %476, %487 : vector<8x32xf32>
    %489 = arith.addf %485, %488 : vector<8x32xf32>
    %490 = math.tanh %489 : vector<8x32xf32>
    %cst_111 = arith.constant 1.000000e+00 : f32
    %491 = vector.broadcast %cst_111 : f32 to vector<8x32xf32>
    %492 = arith.subf %491, %484 : vector<8x32xf32>
    %493 = arith.mulf %492, %490 : vector<8x32xf32>
    %494 = arith.mulf %484, %427 : vector<8x32xf32>
    %495 = arith.addf %493, %494 : vector<8x32xf32>
    %496 = vector.broadcast %c6_i32 : i32 to vector<8x1xi32>
    %497 = arith.cmpi sgt, %24, %496 : vector<8x1xi32>
    %498 = vector.shape_cast %497 : vector<8x1xi1> to vector<8x1xi1>
    %499 = vector.broadcast %498 : vector<8x1xi1> to vector<8x32xi1>
    %500 = arith.select %499, %495, %427 : vector<8x32xi1>, vector<8x32xf32>
    %501 = arith.index_cast %464 : i32 to index
    %c0_112 = arith.constant 0 : index
    %c0_113 = arith.constant 0 : index
    %502 = vector.load %arg13[%501, %c0_112, %c0_113] : memref<8x8x96xf32, #tpu.memory_space<vmem>>, vector<1x8x96xf32>
    %503 = vector.shape_cast %502 : vector<1x8x96xf32> to vector<8x96xf32>
    %cst_114 = arith.constant dense<0.000000e+00> : vector<8x96xf32>
    %504 = tpu.matmul %463, %17, %cst_114 {dimension_numbers = #tpu.dot_dimension_numbers<[1], [0], [0], [1], [0, 0, 1, 1], [], []>} : vector<8x32xf32>, vector<32x96xf32>, vector<8x96xf32> -> vector<8x96xf32>
    %505 = vector.extract_strided_slice %503 {offsets = [0, 0], sizes = [8, 32], strides = [1, 1]} : vector<8x96xf32> to vector<8x32xf32>
    %506 = vector.extract_strided_slice %504 {offsets = [0, 0], sizes = [8, 32], strides = [1, 1]} : vector<8x96xf32> to vector<8x32xf32>
    %507 = arith.addf %505, %506 : vector<8x32xf32>
    %508 = arith.negf %507 : vector<8x32xf32>
    %509 = math.exp %508 : vector<8x32xf32>
    %cst_115 = arith.constant 1.000000e+00 : f32
    %510 = vector.broadcast %cst_115 : f32 to vector<8x32xf32>
    %511 = arith.addf %510, %509 : vector<8x32xf32>
    %512 = arith.divf %510, %511 : vector<8x32xf32>
    %513 = vector.extract_strided_slice %503 {offsets = [0, 32], sizes = [8, 32], strides = [1, 1]} : vector<8x96xf32> to vector<8x32xf32>
    %514 = vector.extract_strided_slice %504 {offsets = [0, 32], sizes = [8, 32], strides = [1, 1]} : vector<8x96xf32> to vector<8x32xf32>
    %515 = arith.addf %513, %514 : vector<8x32xf32>
    %516 = arith.negf %515 : vector<8x32xf32>
    %517 = math.exp %516 : vector<8x32xf32>
    %cst_116 = arith.constant 1.000000e+00 : f32
    %518 = vector.broadcast %cst_116 : f32 to vector<8x32xf32>
    %519 = arith.addf %518, %517 : vector<8x32xf32>
    %520 = arith.divf %518, %519 : vector<8x32xf32>
    %521 = vector.extract_strided_slice %503 {offsets = [0, 64], sizes = [8, 32], strides = [1, 1]} : vector<8x96xf32> to vector<8x32xf32>
    %522 = vector.extract_strided_slice %504 {offsets = [0, 64], sizes = [8, 32], strides = [1, 1]} : vector<8x96xf32> to vector<8x32xf32>
    %523 = arith.addf %522, %23 : vector<8x32xf32>
    %524 = arith.mulf %512, %523 : vector<8x32xf32>
    %525 = arith.addf %521, %524 : vector<8x32xf32>
    %526 = math.tanh %525 : vector<8x32xf32>
    %cst_117 = arith.constant 1.000000e+00 : f32
    %527 = vector.broadcast %cst_117 : f32 to vector<8x32xf32>
    %528 = arith.subf %527, %520 : vector<8x32xf32>
    %529 = arith.mulf %528, %526 : vector<8x32xf32>
    %530 = arith.mulf %520, %463 : vector<8x32xf32>
    %531 = arith.addf %529, %530 : vector<8x32xf32>
    %532 = vector.broadcast %464 : i32 to vector<8x1xi32>
    %533 = arith.cmpi sgt, %24, %532 : vector<8x1xi32>
    %534 = vector.shape_cast %533 : vector<8x1xi1> to vector<8x1xi1>
    %535 = vector.broadcast %534 : vector<8x1xi1> to vector<8x32xi1>
    %536 = arith.select %535, %531, %463 : vector<8x32xi1>, vector<8x32xf32>
    %c7_i32_118 = arith.constant 7 : i32
    %c7_i32_119 = arith.constant 7 : i32
    %537 = arith.subi %c7_i32_119, %c7_i32_118 : i32
    %538 = arith.index_cast %c7_i32_118 : i32 to index
    %c0_120 = arith.constant 0 : index
    %c0_121 = arith.constant 0 : index
    %539 = vector.load %arg12[%538, %c0_120, %c0_121] : memref<8x8x96xf32, #tpu.memory_space<vmem>>, vector<1x8x96xf32>
    %540 = vector.shape_cast %539 : vector<1x8x96xf32> to vector<8x96xf32>
    %cst_122 = arith.constant dense<0.000000e+00> : vector<8x96xf32>
    %541 = tpu.matmul %500, %16, %cst_122 {dimension_numbers = #tpu.dot_dimension_numbers<[1], [0], [0], [1], [0, 0, 1, 1], [], []>} : vector<8x32xf32>, vector<32x96xf32>, vector<8x96xf32> -> vector<8x96xf32>
    %542 = vector.extract_strided_slice %540 {offsets = [0, 0], sizes = [8, 32], strides = [1, 1]} : vector<8x96xf32> to vector<8x32xf32>
    %543 = vector.extract_strided_slice %541 {offsets = [0, 0], sizes = [8, 32], strides = [1, 1]} : vector<8x96xf32> to vector<8x32xf32>
    %544 = arith.addf %542, %543 : vector<8x32xf32>
    %545 = arith.negf %544 : vector<8x32xf32>
    %546 = math.exp %545 : vector<8x32xf32>
    %cst_123 = arith.constant 1.000000e+00 : f32
    %547 = vector.broadcast %cst_123 : f32 to vector<8x32xf32>
    %548 = arith.addf %547, %546 : vector<8x32xf32>
    %549 = arith.divf %547, %548 : vector<8x32xf32>
    %550 = vector.extract_strided_slice %540 {offsets = [0, 32], sizes = [8, 32], strides = [1, 1]} : vector<8x96xf32> to vector<8x32xf32>
    %551 = vector.extract_strided_slice %541 {offsets = [0, 32], sizes = [8, 32], strides = [1, 1]} : vector<8x96xf32> to vector<8x32xf32>
    %552 = arith.addf %550, %551 : vector<8x32xf32>
    %553 = arith.negf %552 : vector<8x32xf32>
    %554 = math.exp %553 : vector<8x32xf32>
    %cst_124 = arith.constant 1.000000e+00 : f32
    %555 = vector.broadcast %cst_124 : f32 to vector<8x32xf32>
    %556 = arith.addf %555, %554 : vector<8x32xf32>
    %557 = arith.divf %555, %556 : vector<8x32xf32>
    %558 = vector.extract_strided_slice %540 {offsets = [0, 64], sizes = [8, 32], strides = [1, 1]} : vector<8x96xf32> to vector<8x32xf32>
    %559 = vector.extract_strided_slice %541 {offsets = [0, 64], sizes = [8, 32], strides = [1, 1]} : vector<8x96xf32> to vector<8x32xf32>
    %560 = arith.addf %559, %20 : vector<8x32xf32>
    %561 = arith.mulf %549, %560 : vector<8x32xf32>
    %562 = arith.addf %558, %561 : vector<8x32xf32>
    %563 = math.tanh %562 : vector<8x32xf32>
    %cst_125 = arith.constant 1.000000e+00 : f32
    %564 = vector.broadcast %cst_125 : f32 to vector<8x32xf32>
    %565 = arith.subf %564, %557 : vector<8x32xf32>
    %566 = arith.mulf %565, %563 : vector<8x32xf32>
    %567 = arith.mulf %557, %500 : vector<8x32xf32>
    %568 = arith.addf %566, %567 : vector<8x32xf32>
    %569 = vector.broadcast %c7_i32_118 : i32 to vector<8x1xi32>
    %570 = arith.cmpi sgt, %24, %569 : vector<8x1xi32>
    %571 = vector.shape_cast %570 : vector<8x1xi1> to vector<8x1xi1>
    %572 = vector.broadcast %571 : vector<8x1xi1> to vector<8x32xi1>
    %573 = arith.select %572, %568, %500 : vector<8x32xi1>, vector<8x32xf32>
    %574 = arith.index_cast %537 : i32 to index
    %c0_126 = arith.constant 0 : index
    %c0_127 = arith.constant 0 : index
    %575 = vector.load %arg13[%574, %c0_126, %c0_127] : memref<8x8x96xf32, #tpu.memory_space<vmem>>, vector<1x8x96xf32>
    %576 = vector.shape_cast %575 : vector<1x8x96xf32> to vector<8x96xf32>
    %cst_128 = arith.constant dense<0.000000e+00> : vector<8x96xf32>
    %577 = tpu.matmul %536, %17, %cst_128 {dimension_numbers = #tpu.dot_dimension_numbers<[1], [0], [0], [1], [0, 0, 1, 1], [], []>} : vector<8x32xf32>, vector<32x96xf32>, vector<8x96xf32> -> vector<8x96xf32>
    %578 = vector.extract_strided_slice %576 {offsets = [0, 0], sizes = [8, 32], strides = [1, 1]} : vector<8x96xf32> to vector<8x32xf32>
    %579 = vector.extract_strided_slice %577 {offsets = [0, 0], sizes = [8, 32], strides = [1, 1]} : vector<8x96xf32> to vector<8x32xf32>
    %580 = arith.addf %578, %579 : vector<8x32xf32>
    %581 = arith.negf %580 : vector<8x32xf32>
    %582 = math.exp %581 : vector<8x32xf32>
    %cst_129 = arith.constant 1.000000e+00 : f32
    %583 = vector.broadcast %cst_129 : f32 to vector<8x32xf32>
    %584 = arith.addf %583, %582 : vector<8x32xf32>
    %585 = arith.divf %583, %584 : vector<8x32xf32>
    %586 = vector.extract_strided_slice %576 {offsets = [0, 32], sizes = [8, 32], strides = [1, 1]} : vector<8x96xf32> to vector<8x32xf32>
    %587 = vector.extract_strided_slice %577 {offsets = [0, 32], sizes = [8, 32], strides = [1, 1]} : vector<8x96xf32> to vector<8x32xf32>
    %588 = arith.addf %586, %587 : vector<8x32xf32>
    %589 = arith.negf %588 : vector<8x32xf32>
    %590 = math.exp %589 : vector<8x32xf32>
    %cst_130 = arith.constant 1.000000e+00 : f32
    %591 = vector.broadcast %cst_130 : f32 to vector<8x32xf32>
    %592 = arith.addf %591, %590 : vector<8x32xf32>
    %593 = arith.divf %591, %592 : vector<8x32xf32>
    %594 = vector.extract_strided_slice %576 {offsets = [0, 64], sizes = [8, 32], strides = [1, 1]} : vector<8x96xf32> to vector<8x32xf32>
    %595 = vector.extract_strided_slice %577 {offsets = [0, 64], sizes = [8, 32], strides = [1, 1]} : vector<8x96xf32> to vector<8x32xf32>
    %596 = arith.addf %595, %23 : vector<8x32xf32>
    %597 = arith.mulf %585, %596 : vector<8x32xf32>
    %598 = arith.addf %594, %597 : vector<8x32xf32>
    %599 = math.tanh %598 : vector<8x32xf32>
    %cst_131 = arith.constant 1.000000e+00 : f32
    %600 = vector.broadcast %cst_131 : f32 to vector<8x32xf32>
    %601 = arith.subf %600, %593 : vector<8x32xf32>
    %602 = arith.mulf %601, %599 : vector<8x32xf32>
    %603 = arith.mulf %593, %536 : vector<8x32xf32>
    %604 = arith.addf %602, %603 : vector<8x32xf32>
    %605 = vector.broadcast %537 : i32 to vector<8x1xi32>
    %606 = arith.cmpi sgt, %24, %605 : vector<8x1xi32>
    %607 = vector.shape_cast %606 : vector<8x1xi1> to vector<8x1xi1>
    %608 = vector.broadcast %607 : vector<8x1xi1> to vector<8x32xi1>
    %609 = arith.select %608, %604, %536 : vector<8x32xi1>, vector<8x32xf32>
    %c8_i32 = arith.constant 8 : i32
    %c0_132 = arith.constant 0 : index
    %c0_133 = arith.constant 0 : index
    %610 = vector.load %arg11[%c0_132, %c0_133] : memref<8x64xf32, #tpu.memory_space<vmem>>, vector<8x32xf32>
    tpu.vector_store %arg11[%c0_132, %c0_133], %573 {strides = array<i32>} : memref<8x64xf32, #tpu.memory_space<vmem>>, vector<8x32xf32>,
    %c0_134 = arith.constant 0 : index
    %c32 = arith.constant 32 : index
    %611 = vector.load %arg11[%c0_134, %c32] : memref<8x64xf32, #tpu.memory_space<vmem>>, vector<8x32xf32>
    tpu.vector_store %arg11[%c0_134, %c32], %609 {strides = array<i32>} : memref<8x64xf32, #tpu.memory_space<vmem>>, vector<8x32xf32>,
    return
  }
  func.func @transform_0(%arg0: i32) -> (i32, i32, i32) {
    %c0_i32 = arith.constant 0 : i32
    %c0_i32_0 = arith.constant 0 : i32
    %c0_i32_1 = arith.constant 0 : i32
    return %c0_i32, %arg0, %c0_i32_0 : i32, i32, i32
  }
  func.func @transform_1(%arg0: i32) -> (i32, i32) {
    %c0_i32 = arith.constant 0 : i32
    %c0_i32_0 = arith.constant 0 : i32
    return %arg0, %c0_i32 : i32, i32
  }
  func.func @transform_2(%arg0: i32) -> (i32, i32) {
    %c0_i32 = arith.constant 0 : i32
    %c0_i32_0 = arith.constant 0 : i32
    %c0_i32_1 = arith.constant 0 : i32
    return %c0_i32, %c0_i32_0 : i32, i32
  }
  func.func @transform_3(%arg0: i32) -> (i32, i32) {
    %c0_i32 = arith.constant 0 : i32
    %c0_i32_0 = arith.constant 0 : i32
    %c0_i32_1 = arith.constant 0 : i32
    return %c0_i32, %c0_i32_0 : i32, i32
  }
  func.func @transform_4(%arg0: i32) -> (i32, i32) {
    %c0_i32 = arith.constant 0 : i32
    %c0_i32_0 = arith.constant 0 : i32
    %c0_i32_1 = arith.constant 0 : i32
    return %c0_i32, %c0_i32_0 : i32, i32
  }
  func.func @transform_5(%arg0: i32) -> (i32, i32) {
    %c0_i32 = arith.constant 0 : i32
    %c0_i32_0 = arith.constant 0 : i32
    %c0_i32_1 = arith.constant 0 : i32
    return %c0_i32, %c0_i32_0 : i32, i32
  }
  func.func @transform_6(%arg0: i32) -> (i32, i32) {
    %c0_i32 = arith.constant 0 : i32
    %c0_i32_0 = arith.constant 0 : i32
    %c0_i32_1 = arith.constant 0 : i32
    return %c0_i32, %c0_i32_0 : i32, i32
  }
  func.func @transform_7(%arg0: i32) -> (i32, i32) {
    %c0_i32 = arith.constant 0 : i32
    %c0_i32_0 = arith.constant 0 : i32
    %c0_i32_1 = arith.constant 0 : i32
    return %c0_i32, %c0_i32_0 : i32, i32
  }
  func.func @transform_8(%arg0: i32) -> (i32, i32) {
    %c0_i32 = arith.constant 0 : i32
    %c0_i32_0 = arith.constant 0 : i32
    %c0_i32_1 = arith.constant 0 : i32
    return %c0_i32, %c0_i32_0 : i32, i32
  }
  func.func @transform_9(%arg0: i32) -> (i32, i32) {
    %c0_i32 = arith.constant 0 : i32
    %c0_i32_0 = arith.constant 0 : i32
    %c0_i32_1 = arith.constant 0 : i32
    return %c0_i32, %c0_i32_0 : i32, i32
  }
  func.func @transform_10(%arg0: i32) -> (i32, i32) {
    %c0_i32 = arith.constant 0 : i32
    %c0_i32_0 = arith.constant 0 : i32
    return %arg0, %c0_i32 : i32, i32
  }
}

module attributes {stable_mosaic.version = 11 : i64} {
  func.func @bigru_layer_kernel(%arg0: i32, %arg1: memref<8x8x32xf32, #tpu.memory_space<vmem>>, %arg2: memref<8x1xi32, #tpu.memory_space<vmem>>, %arg3: memref<32x96xf32, #tpu.memory_space<vmem>>, %arg4: memref<32x96xf32, #tpu.memory_space<vmem>>, %arg5: memref<1x96xf32, #tpu.memory_space<vmem>>, %arg6: memref<1x32xf32, #tpu.memory_space<vmem>>, %arg7: memref<32x96xf32, #tpu.memory_space<vmem>>, %arg8: memref<32x96xf32, #tpu.memory_space<vmem>>, %arg9: memref<1x96xf32, #tpu.memory_space<vmem>>, %arg10: memref<1x32xf32, #tpu.memory_space<vmem>>, %arg11: memref<8x8x64xf32, #tpu.memory_space<vmem>>, %arg12: memref<8x64xf32, #tpu.memory_space<vmem>>, %arg13: memref<8x8x96xf32, #tpu.memory_space<vmem>>, %arg14: memref<8x8x96xf32, #tpu.memory_space<vmem>>) attributes {dimension_semantics = [#tpu.dimension_semantics<parallel>], iteration_bounds = array<i64: 1>, scalar_prefetch = 0 : i64, scratch_operands = 2 : i64, tpu.core_type = #tpu.core_type<tc>, window_params = [{transform_indices = @transform_0, window_bounds = array<i64: 8, 8, 32>}, {transform_indices = @transform_1, window_bounds = array<i64: 8, 1>}, {pipeline_mode = #tpu.pipeline_mode<synchronous>, transform_indices = @transform_2, window_bounds = array<i64: 32, 96>}, {pipeline_mode = #tpu.pipeline_mode<synchronous>, transform_indices = @transform_3, window_bounds = array<i64: 32, 96>}, {pipeline_mode = #tpu.pipeline_mode<synchronous>, transform_indices = @transform_4, window_bounds = array<i64: 1, 96>}, {pipeline_mode = #tpu.pipeline_mode<synchronous>, transform_indices = @transform_5, window_bounds = array<i64: 1, 32>}, {pipeline_mode = #tpu.pipeline_mode<synchronous>, transform_indices = @transform_6, window_bounds = array<i64: 32, 96>}, {pipeline_mode = #tpu.pipeline_mode<synchronous>, transform_indices = @transform_7, window_bounds = array<i64: 32, 96>}, {pipeline_mode = #tpu.pipeline_mode<synchronous>, transform_indices = @transform_8, window_bounds = array<i64: 1, 96>}, {pipeline_mode = #tpu.pipeline_mode<synchronous>, transform_indices = @transform_9, window_bounds = array<i64: 1, 32>}, {transform_indices = @transform_10, window_bounds = array<i64: 8, 8, 64>}, {transform_indices = @transform_11, window_bounds = array<i64: 8, 64>}]} {
    %c0 = arith.constant 0 : index
    %c0_0 = arith.constant 0 : index
    %c0_1 = arith.constant 0 : index
    %0 = vector.load %arg1[%c0, %c0_0, %c0_1] : memref<8x8x32xf32, #tpu.memory_space<vmem>>, vector<8x8x32xf32>
    %1 = vector.shape_cast %0 : vector<8x8x32xf32> to vector<64x32xf32>
    %c0_2 = arith.constant 0 : index
    %c0_3 = arith.constant 0 : index
    %2 = vector.load %arg3[%c0_2, %c0_3] : memref<32x96xf32, #tpu.memory_space<vmem>>, vector<32x96xf32>
    %cst = arith.constant dense<0.000000e+00> : vector<64x96xf32>
    %3 = tpu.matmul %1, %2, %cst {dimension_numbers = #tpu.dot_dimension_numbers<[1], [0], [0], [1], [0, 0, 1, 1], [], []>} : vector<64x32xf32>, vector<32x96xf32>, vector<64x96xf32> -> vector<64x96xf32>
    %c0_4 = arith.constant 0 : index
    %c0_5 = arith.constant 0 : index
    %4 = vector.load %arg5[%c0_4, %c0_5] : memref<1x96xf32, #tpu.memory_space<vmem>>, vector<1x96xf32>
    %5 = vector.broadcast %4 : vector<1x96xf32> to vector<64x96xf32>
    %6 = arith.addf %3, %5 : vector<64x96xf32>
    %7 = vector.shape_cast %6 : vector<64x96xf32> to vector<8x8x96xf32>
    %c0_6 = arith.constant 0 : index
    %c0_7 = arith.constant 0 : index
    %c0_8 = arith.constant 0 : index
    %8 = vector.load %arg13[%c0_6, %c0_7, %c0_8] : memref<8x8x96xf32, #tpu.memory_space<vmem>>, vector<8x8x96xf32>
    tpu.vector_store %arg13[%c0_6, %c0_7, %c0_8], %7 {strides = array<i32>} : memref<8x8x96xf32, #tpu.memory_space<vmem>>, vector<8x8x96xf32>,
    %c0_9 = arith.constant 0 : index
    %c0_10 = arith.constant 0 : index
    %9 = vector.load %arg7[%c0_9, %c0_10] : memref<32x96xf32, #tpu.memory_space<vmem>>, vector<32x96xf32>
    %cst_11 = arith.constant dense<0.000000e+00> : vector<64x96xf32>
    %10 = tpu.matmul %1, %9, %cst_11 {dimension_numbers = #tpu.dot_dimension_numbers<[1], [0], [0], [1], [0, 0, 1, 1], [], []>} : vector<64x32xf32>, vector<32x96xf32>, vector<64x96xf32> -> vector<64x96xf32>
    %c0_12 = arith.constant 0 : index
    %c0_13 = arith.constant 0 : index
    %11 = vector.load %arg9[%c0_12, %c0_13] : memref<1x96xf32, #tpu.memory_space<vmem>>, vector<1x96xf32>
    %12 = vector.broadcast %11 : vector<1x96xf32> to vector<64x96xf32>
    %13 = arith.addf %10, %12 : vector<64x96xf32>
    %14 = vector.shape_cast %13 : vector<64x96xf32> to vector<8x8x96xf32>
    %c0_14 = arith.constant 0 : index
    %c0_15 = arith.constant 0 : index
    %c0_16 = arith.constant 0 : index
    %15 = vector.load %arg14[%c0_14, %c0_15, %c0_16] : memref<8x8x96xf32, #tpu.memory_space<vmem>>, vector<8x8x96xf32>
    tpu.vector_store %arg14[%c0_14, %c0_15, %c0_16], %14 {strides = array<i32>} : memref<8x8x96xf32, #tpu.memory_space<vmem>>, vector<8x8x96xf32>,
    %c0_17 = arith.constant 0 : index
    %c0_18 = arith.constant 0 : index
    %16 = vector.load %arg4[%c0_17, %c0_18] : memref<32x96xf32, #tpu.memory_space<vmem>>, vector<32x96xf32>
    %c0_19 = arith.constant 0 : index
    %c0_20 = arith.constant 0 : index
    %17 = vector.load %arg8[%c0_19, %c0_20] : memref<32x96xf32, #tpu.memory_space<vmem>>, vector<32x96xf32>
    %c0_21 = arith.constant 0 : index
    %c0_22 = arith.constant 0 : index
    %18 = vector.load %arg6[%c0_21, %c0_22] : memref<1x32xf32, #tpu.memory_space<vmem>>, vector<1x32xf32>
    %19 = vector.shape_cast %18 : vector<1x32xf32> to vector<1x32xf32>
    %20 = vector.broadcast %19 : vector<1x32xf32> to vector<8x32xf32>
    %c0_23 = arith.constant 0 : index
    %c0_24 = arith.constant 0 : index
    %21 = vector.load %arg10[%c0_23, %c0_24] : memref<1x32xf32, #tpu.memory_space<vmem>>, vector<1x32xf32>
    %22 = vector.shape_cast %21 : vector<1x32xf32> to vector<1x32xf32>
    %23 = vector.broadcast %22 : vector<1x32xf32> to vector<8x32xf32>
    %c0_25 = arith.constant 0 : index
    %c0_26 = arith.constant 0 : index
    %24 = vector.load %arg2[%c0_25, %c0_26] : memref<8x1xi32, #tpu.memory_space<vmem>>, vector<8x1xi32>
    %cst_27 = arith.constant 0.000000e+00 : f32
    %25 = vector.broadcast %cst_27 : f32 to vector<8x32xf32>
    %c0_i32 = arith.constant 0 : i32
    %c7_i32 = arith.constant 7 : i32
    %26 = arith.subi %c7_i32, %c0_i32 : i32
    %27 = arith.index_cast %c0_i32 : i32 to index
    %c0_28 = arith.constant 0 : index
    %c0_29 = arith.constant 0 : index
    %28 = vector.load %arg13[%27, %c0_28, %c0_29] : memref<8x8x96xf32, #tpu.memory_space<vmem>>, vector<1x8x96xf32>
    %29 = vector.shape_cast %28 : vector<1x8x96xf32> to vector<8x96xf32>
    %cst_30 = arith.constant dense<0.000000e+00> : vector<8x96xf32>
    %30 = tpu.matmul %25, %16, %cst_30 {dimension_numbers = #tpu.dot_dimension_numbers<[1], [0], [0], [1], [0, 0, 1, 1], [], []>} : vector<8x32xf32>, vector<32x96xf32>, vector<8x96xf32> -> vector<8x96xf32>
    %31 = vector.extract_strided_slice %29 {offsets = [0, 0], sizes = [8, 32], strides = [1, 1]} : vector<8x96xf32> to vector<8x32xf32>
    %32 = vector.extract_strided_slice %30 {offsets = [0, 0], sizes = [8, 32], strides = [1, 1]} : vector<8x96xf32> to vector<8x32xf32>
    %33 = arith.addf %31, %32 : vector<8x32xf32>
    %34 = arith.negf %33 : vector<8x32xf32>
    %35 = math.exp %34 : vector<8x32xf32>
    %cst_31 = arith.constant 1.000000e+00 : f32
    %36 = vector.broadcast %cst_31 : f32 to vector<8x32xf32>
    %37 = arith.addf %36, %35 : vector<8x32xf32>
    %38 = arith.divf %36, %37 : vector<8x32xf32>
    %39 = vector.extract_strided_slice %29 {offsets = [0, 32], sizes = [8, 32], strides = [1, 1]} : vector<8x96xf32> to vector<8x32xf32>
    %40 = vector.extract_strided_slice %30 {offsets = [0, 32], sizes = [8, 32], strides = [1, 1]} : vector<8x96xf32> to vector<8x32xf32>
    %41 = arith.addf %39, %40 : vector<8x32xf32>
    %42 = arith.negf %41 : vector<8x32xf32>
    %43 = math.exp %42 : vector<8x32xf32>
    %cst_32 = arith.constant 1.000000e+00 : f32
    %44 = vector.broadcast %cst_32 : f32 to vector<8x32xf32>
    %45 = arith.addf %44, %43 : vector<8x32xf32>
    %46 = arith.divf %44, %45 : vector<8x32xf32>
    %47 = vector.extract_strided_slice %29 {offsets = [0, 64], sizes = [8, 32], strides = [1, 1]} : vector<8x96xf32> to vector<8x32xf32>
    %48 = vector.extract_strided_slice %30 {offsets = [0, 64], sizes = [8, 32], strides = [1, 1]} : vector<8x96xf32> to vector<8x32xf32>
    %49 = arith.addf %48, %20 : vector<8x32xf32>
    %50 = arith.mulf %38, %49 : vector<8x32xf32>
    %51 = arith.addf %47, %50 : vector<8x32xf32>
    %52 = math.tanh %51 : vector<8x32xf32>
    %cst_33 = arith.constant 1.000000e+00 : f32
    %53 = vector.broadcast %cst_33 : f32 to vector<8x32xf32>
    %54 = arith.subf %53, %46 : vector<8x32xf32>
    %55 = arith.mulf %54, %52 : vector<8x32xf32>
    %56 = arith.mulf %46, %25 : vector<8x32xf32>
    %57 = arith.addf %55, %56 : vector<8x32xf32>
    %58 = vector.broadcast %c0_i32 : i32 to vector<8x1xi32>
    %59 = arith.cmpi sgt, %24, %58 : vector<8x1xi32>
    %60 = vector.shape_cast %59 : vector<8x1xi1> to vector<8x1xi1>
    %61 = vector.broadcast %60 : vector<8x1xi1> to vector<8x32xi1>
    %62 = arith.select %61, %57, %25 : vector<8x32xi1>, vector<8x32xf32>
    %63 = arith.index_cast %26 : i32 to index
    %c0_34 = arith.constant 0 : index
    %c0_35 = arith.constant 0 : index
    %64 = vector.load %arg14[%63, %c0_34, %c0_35] : memref<8x8x96xf32, #tpu.memory_space<vmem>>, vector<1x8x96xf32>
    %65 = vector.shape_cast %64 : vector<1x8x96xf32> to vector<8x96xf32>
    %cst_36 = arith.constant dense<0.000000e+00> : vector<8x96xf32>
    %66 = tpu.matmul %25, %17, %cst_36 {dimension_numbers = #tpu.dot_dimension_numbers<[1], [0], [0], [1], [0, 0, 1, 1], [], []>} : vector<8x32xf32>, vector<32x96xf32>, vector<8x96xf32> -> vector<8x96xf32>
    %67 = vector.extract_strided_slice %65 {offsets = [0, 0], sizes = [8, 32], strides = [1, 1]} : vector<8x96xf32> to vector<8x32xf32>
    %68 = vector.extract_strided_slice %66 {offsets = [0, 0], sizes = [8, 32], strides = [1, 1]} : vector<8x96xf32> to vector<8x32xf32>
    %69 = arith.addf %67, %68 : vector<8x32xf32>
    %70 = arith.negf %69 : vector<8x32xf32>
    %71 = math.exp %70 : vector<8x32xf32>
    %cst_37 = arith.constant 1.000000e+00 : f32
    %72 = vector.broadcast %cst_37 : f32 to vector<8x32xf32>
    %73 = arith.addf %72, %71 : vector<8x32xf32>
    %74 = arith.divf %72, %73 : vector<8x32xf32>
    %75 = vector.extract_strided_slice %65 {offsets = [0, 32], sizes = [8, 32], strides = [1, 1]} : vector<8x96xf32> to vector<8x32xf32>
    %76 = vector.extract_strided_slice %66 {offsets = [0, 32], sizes = [8, 32], strides = [1, 1]} : vector<8x96xf32> to vector<8x32xf32>
    %77 = arith.addf %75, %76 : vector<8x32xf32>
    %78 = arith.negf %77 : vector<8x32xf32>
    %79 = math.exp %78 : vector<8x32xf32>
    %cst_38 = arith.constant 1.000000e+00 : f32
    %80 = vector.broadcast %cst_38 : f32 to vector<8x32xf32>
    %81 = arith.addf %80, %79 : vector<8x32xf32>
    %82 = arith.divf %80, %81 : vector<8x32xf32>
    %83 = vector.extract_strided_slice %65 {offsets = [0, 64], sizes = [8, 32], strides = [1, 1]} : vector<8x96xf32> to vector<8x32xf32>
    %84 = vector.extract_strided_slice %66 {offsets = [0, 64], sizes = [8, 32], strides = [1, 1]} : vector<8x96xf32> to vector<8x32xf32>
    %85 = arith.addf %84, %23 : vector<8x32xf32>
    %86 = arith.mulf %74, %85 : vector<8x32xf32>
    %87 = arith.addf %83, %86 : vector<8x32xf32>
    %88 = math.tanh %87 : vector<8x32xf32>
    %cst_39 = arith.constant 1.000000e+00 : f32
    %89 = vector.broadcast %cst_39 : f32 to vector<8x32xf32>
    %90 = arith.subf %89, %82 : vector<8x32xf32>
    %91 = arith.mulf %90, %88 : vector<8x32xf32>
    %92 = arith.mulf %82, %25 : vector<8x32xf32>
    %93 = arith.addf %91, %92 : vector<8x32xf32>
    %94 = vector.broadcast %26 : i32 to vector<8x1xi32>
    %95 = arith.cmpi sgt, %24, %94 : vector<8x1xi32>
    %96 = vector.shape_cast %95 : vector<8x1xi1> to vector<8x1xi1>
    %97 = vector.broadcast %96 : vector<8x1xi1> to vector<8x32xi1>
    %98 = arith.select %97, %93, %25 : vector<8x32xi1>, vector<8x32xf32>
    %99 = arith.index_cast %c0_i32 : i32 to index
    %c0_40 = arith.constant 0 : index
    %c0_41 = arith.constant 0 : index
    %100 = vector.load %arg11[%99, %c0_40, %c0_41] : memref<8x8x64xf32, #tpu.memory_space<vmem>>, vector<1x8x32xf32>
    %101 = vector.shape_cast %100 : vector<1x8x32xf32> to vector<8x32xf32>
    %102 = vector.shape_cast %62 : vector<8x32xf32> to vector<1x8x32xf32>
    tpu.vector_store %arg11[%99, %c0_40, %c0_41], %102 {strides = array<i32>} : memref<8x8x64xf32, #tpu.memory_space<vmem>>, vector<1x8x32xf32>,
    %103 = arith.index_cast %26 : i32 to index
    %c0_42 = arith.constant 0 : index
    %c32 = arith.constant 32 : index
    %104 = vector.load %arg11[%103, %c0_42, %c32] : memref<8x8x64xf32, #tpu.memory_space<vmem>>, vector<1x8x32xf32>
    %105 = vector.shape_cast %104 : vector<1x8x32xf32> to vector<8x32xf32>
    %106 = vector.shape_cast %98 : vector<8x32xf32> to vector<1x8x32xf32>
    tpu.vector_store %arg11[%103, %c0_42, %c32], %106 {strides = array<i32>} : memref<8x8x64xf32, #tpu.memory_space<vmem>>, vector<1x8x32xf32>,
    %c1_i32 = arith.constant 1 : i32
    %c7_i32_43 = arith.constant 7 : i32
    %107 = arith.subi %c7_i32_43, %c1_i32 : i32
    %108 = arith.index_cast %c1_i32 : i32 to index
    %c0_44 = arith.constant 0 : index
    %c0_45 = arith.constant 0 : index
    %109 = vector.load %arg13[%108, %c0_44, %c0_45] : memref<8x8x96xf32, #tpu.memory_space<vmem>>, vector<1x8x96xf32>
    %110 = vector.shape_cast %109 : vector<1x8x96xf32> to vector<8x96xf32>
    %cst_46 = arith.constant dense<0.000000e+00> : vector<8x96xf32>
    %111 = tpu.matmul %62, %16, %cst_46 {dimension_numbers = #tpu.dot_dimension_numbers<[1], [0], [0], [1], [0, 0, 1, 1], [], []>} : vector<8x32xf32>, vector<32x96xf32>, vector<8x96xf32> -> vector<8x96xf32>
    %112 = vector.extract_strided_slice %110 {offsets = [0, 0], sizes = [8, 32], strides = [1, 1]} : vector<8x96xf32> to vector<8x32xf32>
    %113 = vector.extract_strided_slice %111 {offsets = [0, 0], sizes = [8, 32], strides = [1, 1]} : vector<8x96xf32> to vector<8x32xf32>
    %114 = arith.addf %112, %113 : vector<8x32xf32>
    %115 = arith.negf %114 : vector<8x32xf32>
    %116 = math.exp %115 : vector<8x32xf32>
    %cst_47 = arith.constant 1.000000e+00 : f32
    %117 = vector.broadcast %cst_47 : f32 to vector<8x32xf32>
    %118 = arith.addf %117, %116 : vector<8x32xf32>
    %119 = arith.divf %117, %118 : vector<8x32xf32>
    %120 = vector.extract_strided_slice %110 {offsets = [0, 32], sizes = [8, 32], strides = [1, 1]} : vector<8x96xf32> to vector<8x32xf32>
    %121 = vector.extract_strided_slice %111 {offsets = [0, 32], sizes = [8, 32], strides = [1, 1]} : vector<8x96xf32> to vector<8x32xf32>
    %122 = arith.addf %120, %121 : vector<8x32xf32>
    %123 = arith.negf %122 : vector<8x32xf32>
    %124 = math.exp %123 : vector<8x32xf32>
    %cst_48 = arith.constant 1.000000e+00 : f32
    %125 = vector.broadcast %cst_48 : f32 to vector<8x32xf32>
    %126 = arith.addf %125, %124 : vector<8x32xf32>
    %127 = arith.divf %125, %126 : vector<8x32xf32>
    %128 = vector.extract_strided_slice %110 {offsets = [0, 64], sizes = [8, 32], strides = [1, 1]} : vector<8x96xf32> to vector<8x32xf32>
    %129 = vector.extract_strided_slice %111 {offsets = [0, 64], sizes = [8, 32], strides = [1, 1]} : vector<8x96xf32> to vector<8x32xf32>
    %130 = arith.addf %129, %20 : vector<8x32xf32>
    %131 = arith.mulf %119, %130 : vector<8x32xf32>
    %132 = arith.addf %128, %131 : vector<8x32xf32>
    %133 = math.tanh %132 : vector<8x32xf32>
    %cst_49 = arith.constant 1.000000e+00 : f32
    %134 = vector.broadcast %cst_49 : f32 to vector<8x32xf32>
    %135 = arith.subf %134, %127 : vector<8x32xf32>
    %136 = arith.mulf %135, %133 : vector<8x32xf32>
    %137 = arith.mulf %127, %62 : vector<8x32xf32>
    %138 = arith.addf %136, %137 : vector<8x32xf32>
    %139 = vector.broadcast %c1_i32 : i32 to vector<8x1xi32>
    %140 = arith.cmpi sgt, %24, %139 : vector<8x1xi32>
    %141 = vector.shape_cast %140 : vector<8x1xi1> to vector<8x1xi1>
    %142 = vector.broadcast %141 : vector<8x1xi1> to vector<8x32xi1>
    %143 = arith.select %142, %138, %62 : vector<8x32xi1>, vector<8x32xf32>
    %144 = arith.index_cast %107 : i32 to index
    %c0_50 = arith.constant 0 : index
    %c0_51 = arith.constant 0 : index
    %145 = vector.load %arg14[%144, %c0_50, %c0_51] : memref<8x8x96xf32, #tpu.memory_space<vmem>>, vector<1x8x96xf32>
    %146 = vector.shape_cast %145 : vector<1x8x96xf32> to vector<8x96xf32>
    %cst_52 = arith.constant dense<0.000000e+00> : vector<8x96xf32>
    %147 = tpu.matmul %98, %17, %cst_52 {dimension_numbers = #tpu.dot_dimension_numbers<[1], [0], [0], [1], [0, 0, 1, 1], [], []>} : vector<8x32xf32>, vector<32x96xf32>, vector<8x96xf32> -> vector<8x96xf32>
    %148 = vector.extract_strided_slice %146 {offsets = [0, 0], sizes = [8, 32], strides = [1, 1]} : vector<8x96xf32> to vector<8x32xf32>
    %149 = vector.extract_strided_slice %147 {offsets = [0, 0], sizes = [8, 32], strides = [1, 1]} : vector<8x96xf32> to vector<8x32xf32>
    %150 = arith.addf %148, %149 : vector<8x32xf32>
    %151 = arith.negf %150 : vector<8x32xf32>
    %152 = math.exp %151 : vector<8x32xf32>
    %cst_53 = arith.constant 1.000000e+00 : f32
    %153 = vector.broadcast %cst_53 : f32 to vector<8x32xf32>
    %154 = arith.addf %153, %152 : vector<8x32xf32>
    %155 = arith.divf %153, %154 : vector<8x32xf32>
    %156 = vector.extract_strided_slice %146 {offsets = [0, 32], sizes = [8, 32], strides = [1, 1]} : vector<8x96xf32> to vector<8x32xf32>
    %157 = vector.extract_strided_slice %147 {offsets = [0, 32], sizes = [8, 32], strides = [1, 1]} : vector<8x96xf32> to vector<8x32xf32>
    %158 = arith.addf %156, %157 : vector<8x32xf32>
    %159 = arith.negf %158 : vector<8x32xf32>
    %160 = math.exp %159 : vector<8x32xf32>
    %cst_54 = arith.constant 1.000000e+00 : f32
    %161 = vector.broadcast %cst_54 : f32 to vector<8x32xf32>
    %162 = arith.addf %161, %160 : vector<8x32xf32>
    %163 = arith.divf %161, %162 : vector<8x32xf32>
    %164 = vector.extract_strided_slice %146 {offsets = [0, 64], sizes = [8, 32], strides = [1, 1]} : vector<8x96xf32> to vector<8x32xf32>
    %165 = vector.extract_strided_slice %147 {offsets = [0, 64], sizes = [8, 32], strides = [1, 1]} : vector<8x96xf32> to vector<8x32xf32>
    %166 = arith.addf %165, %23 : vector<8x32xf32>
    %167 = arith.mulf %155, %166 : vector<8x32xf32>
    %168 = arith.addf %164, %167 : vector<8x32xf32>
    %169 = math.tanh %168 : vector<8x32xf32>
    %cst_55 = arith.constant 1.000000e+00 : f32
    %170 = vector.broadcast %cst_55 : f32 to vector<8x32xf32>
    %171 = arith.subf %170, %163 : vector<8x32xf32>
    %172 = arith.mulf %171, %169 : vector<8x32xf32>
    %173 = arith.mulf %163, %98 : vector<8x32xf32>
    %174 = arith.addf %172, %173 : vector<8x32xf32>
    %175 = vector.broadcast %107 : i32 to vector<8x1xi32>
    %176 = arith.cmpi sgt, %24, %175 : vector<8x1xi32>
    %177 = vector.shape_cast %176 : vector<8x1xi1> to vector<8x1xi1>
    %178 = vector.broadcast %177 : vector<8x1xi1> to vector<8x32xi1>
    %179 = arith.select %178, %174, %98 : vector<8x32xi1>, vector<8x32xf32>
    %180 = arith.index_cast %c1_i32 : i32 to index
    %c0_56 = arith.constant 0 : index
    %c0_57 = arith.constant 0 : index
    %181 = vector.load %arg11[%180, %c0_56, %c0_57] : memref<8x8x64xf32, #tpu.memory_space<vmem>>, vector<1x8x32xf32>
    %182 = vector.shape_cast %181 : vector<1x8x32xf32> to vector<8x32xf32>
    %183 = vector.shape_cast %143 : vector<8x32xf32> to vector<1x8x32xf32>
    tpu.vector_store %arg11[%180, %c0_56, %c0_57], %183 {strides = array<i32>} : memref<8x8x64xf32, #tpu.memory_space<vmem>>, vector<1x8x32xf32>,
    %184 = arith.index_cast %107 : i32 to index
    %c0_58 = arith.constant 0 : index
    %c32_59 = arith.constant 32 : index
    %185 = vector.load %arg11[%184, %c0_58, %c32_59] : memref<8x8x64xf32, #tpu.memory_space<vmem>>, vector<1x8x32xf32>
    %186 = vector.shape_cast %185 : vector<1x8x32xf32> to vector<8x32xf32>
    %187 = vector.shape_cast %179 : vector<8x32xf32> to vector<1x8x32xf32>
    tpu.vector_store %arg11[%184, %c0_58, %c32_59], %187 {strides = array<i32>} : memref<8x8x64xf32, #tpu.memory_space<vmem>>, vector<1x8x32xf32>,
    %c2_i32 = arith.constant 2 : i32
    %c7_i32_60 = arith.constant 7 : i32
    %188 = arith.subi %c7_i32_60, %c2_i32 : i32
    %189 = arith.index_cast %c2_i32 : i32 to index
    %c0_61 = arith.constant 0 : index
    %c0_62 = arith.constant 0 : index
    %190 = vector.load %arg13[%189, %c0_61, %c0_62] : memref<8x8x96xf32, #tpu.memory_space<vmem>>, vector<1x8x96xf32>
    %191 = vector.shape_cast %190 : vector<1x8x96xf32> to vector<8x96xf32>
    %cst_63 = arith.constant dense<0.000000e+00> : vector<8x96xf32>
    %192 = tpu.matmul %143, %16, %cst_63 {dimension_numbers = #tpu.dot_dimension_numbers<[1], [0], [0], [1], [0, 0, 1, 1], [], []>} : vector<8x32xf32>, vector<32x96xf32>, vector<8x96xf32> -> vector<8x96xf32>
    %193 = vector.extract_strided_slice %191 {offsets = [0, 0], sizes = [8, 32], strides = [1, 1]} : vector<8x96xf32> to vector<8x32xf32>
    %194 = vector.extract_strided_slice %192 {offsets = [0, 0], sizes = [8, 32], strides = [1, 1]} : vector<8x96xf32> to vector<8x32xf32>
    %195 = arith.addf %193, %194 : vector<8x32xf32>
    %196 = arith.negf %195 : vector<8x32xf32>
    %197 = math.exp %196 : vector<8x32xf32>
    %cst_64 = arith.constant 1.000000e+00 : f32
    %198 = vector.broadcast %cst_64 : f32 to vector<8x32xf32>
    %199 = arith.addf %198, %197 : vector<8x32xf32>
    %200 = arith.divf %198, %199 : vector<8x32xf32>
    %201 = vector.extract_strided_slice %191 {offsets = [0, 32], sizes = [8, 32], strides = [1, 1]} : vector<8x96xf32> to vector<8x32xf32>
    %202 = vector.extract_strided_slice %192 {offsets = [0, 32], sizes = [8, 32], strides = [1, 1]} : vector<8x96xf32> to vector<8x32xf32>
    %203 = arith.addf %201, %202 : vector<8x32xf32>
    %204 = arith.negf %203 : vector<8x32xf32>
    %205 = math.exp %204 : vector<8x32xf32>
    %cst_65 = arith.constant 1.000000e+00 : f32
    %206 = vector.broadcast %cst_65 : f32 to vector<8x32xf32>
    %207 = arith.addf %206, %205 : vector<8x32xf32>
    %208 = arith.divf %206, %207 : vector<8x32xf32>
    %209 = vector.extract_strided_slice %191 {offsets = [0, 64], sizes = [8, 32], strides = [1, 1]} : vector<8x96xf32> to vector<8x32xf32>
    %210 = vector.extract_strided_slice %192 {offsets = [0, 64], sizes = [8, 32], strides = [1, 1]} : vector<8x96xf32> to vector<8x32xf32>
    %211 = arith.addf %210, %20 : vector<8x32xf32>
    %212 = arith.mulf %200, %211 : vector<8x32xf32>
    %213 = arith.addf %209, %212 : vector<8x32xf32>
    %214 = math.tanh %213 : vector<8x32xf32>
    %cst_66 = arith.constant 1.000000e+00 : f32
    %215 = vector.broadcast %cst_66 : f32 to vector<8x32xf32>
    %216 = arith.subf %215, %208 : vector<8x32xf32>
    %217 = arith.mulf %216, %214 : vector<8x32xf32>
    %218 = arith.mulf %208, %143 : vector<8x32xf32>
    %219 = arith.addf %217, %218 : vector<8x32xf32>
    %220 = vector.broadcast %c2_i32 : i32 to vector<8x1xi32>
    %221 = arith.cmpi sgt, %24, %220 : vector<8x1xi32>
    %222 = vector.shape_cast %221 : vector<8x1xi1> to vector<8x1xi1>
    %223 = vector.broadcast %222 : vector<8x1xi1> to vector<8x32xi1>
    %224 = arith.select %223, %219, %143 : vector<8x32xi1>, vector<8x32xf32>
    %225 = arith.index_cast %188 : i32 to index
    %c0_67 = arith.constant 0 : index
    %c0_68 = arith.constant 0 : index
    %226 = vector.load %arg14[%225, %c0_67, %c0_68] : memref<8x8x96xf32, #tpu.memory_space<vmem>>, vector<1x8x96xf32>
    %227 = vector.shape_cast %226 : vector<1x8x96xf32> to vector<8x96xf32>
    %cst_69 = arith.constant dense<0.000000e+00> : vector<8x96xf32>
    %228 = tpu.matmul %179, %17, %cst_69 {dimension_numbers = #tpu.dot_dimension_numbers<[1], [0], [0], [1], [0, 0, 1, 1], [], []>} : vector<8x32xf32>, vector<32x96xf32>, vector<8x96xf32> -> vector<8x96xf32>
    %229 = vector.extract_strided_slice %227 {offsets = [0, 0], sizes = [8, 32], strides = [1, 1]} : vector<8x96xf32> to vector<8x32xf32>
    %230 = vector.extract_strided_slice %228 {offsets = [0, 0], sizes = [8, 32], strides = [1, 1]} : vector<8x96xf32> to vector<8x32xf32>
    %231 = arith.addf %229, %230 : vector<8x32xf32>
    %232 = arith.negf %231 : vector<8x32xf32>
    %233 = math.exp %232 : vector<8x32xf32>
    %cst_70 = arith.constant 1.000000e+00 : f32
    %234 = vector.broadcast %cst_70 : f32 to vector<8x32xf32>
    %235 = arith.addf %234, %233 : vector<8x32xf32>
    %236 = arith.divf %234, %235 : vector<8x32xf32>
    %237 = vector.extract_strided_slice %227 {offsets = [0, 32], sizes = [8, 32], strides = [1, 1]} : vector<8x96xf32> to vector<8x32xf32>
    %238 = vector.extract_strided_slice %228 {offsets = [0, 32], sizes = [8, 32], strides = [1, 1]} : vector<8x96xf32> to vector<8x32xf32>
    %239 = arith.addf %237, %238 : vector<8x32xf32>
    %240 = arith.negf %239 : vector<8x32xf32>
    %241 = math.exp %240 : vector<8x32xf32>
    %cst_71 = arith.constant 1.000000e+00 : f32
    %242 = vector.broadcast %cst_71 : f32 to vector<8x32xf32>
    %243 = arith.addf %242, %241 : vector<8x32xf32>
    %244 = arith.divf %242, %243 : vector<8x32xf32>
    %245 = vector.extract_strided_slice %227 {offsets = [0, 64], sizes = [8, 32], strides = [1, 1]} : vector<8x96xf32> to vector<8x32xf32>
    %246 = vector.extract_strided_slice %228 {offsets = [0, 64], sizes = [8, 32], strides = [1, 1]} : vector<8x96xf32> to vector<8x32xf32>
    %247 = arith.addf %246, %23 : vector<8x32xf32>
    %248 = arith.mulf %236, %247 : vector<8x32xf32>
    %249 = arith.addf %245, %248 : vector<8x32xf32>
    %250 = math.tanh %249 : vector<8x32xf32>
    %cst_72 = arith.constant 1.000000e+00 : f32
    %251 = vector.broadcast %cst_72 : f32 to vector<8x32xf32>
    %252 = arith.subf %251, %244 : vector<8x32xf32>
    %253 = arith.mulf %252, %250 : vector<8x32xf32>
    %254 = arith.mulf %244, %179 : vector<8x32xf32>
    %255 = arith.addf %253, %254 : vector<8x32xf32>
    %256 = vector.broadcast %188 : i32 to vector<8x1xi32>
    %257 = arith.cmpi sgt, %24, %256 : vector<8x1xi32>
    %258 = vector.shape_cast %257 : vector<8x1xi1> to vector<8x1xi1>
    %259 = vector.broadcast %258 : vector<8x1xi1> to vector<8x32xi1>
    %260 = arith.select %259, %255, %179 : vector<8x32xi1>, vector<8x32xf32>
    %261 = arith.index_cast %c2_i32 : i32 to index
    %c0_73 = arith.constant 0 : index
    %c0_74 = arith.constant 0 : index
    %262 = vector.load %arg11[%261, %c0_73, %c0_74] : memref<8x8x64xf32, #tpu.memory_space<vmem>>, vector<1x8x32xf32>
    %263 = vector.shape_cast %262 : vector<1x8x32xf32> to vector<8x32xf32>
    %264 = vector.shape_cast %224 : vector<8x32xf32> to vector<1x8x32xf32>
    tpu.vector_store %arg11[%261, %c0_73, %c0_74], %264 {strides = array<i32>} : memref<8x8x64xf32, #tpu.memory_space<vmem>>, vector<1x8x32xf32>,
    %265 = arith.index_cast %188 : i32 to index
    %c0_75 = arith.constant 0 : index
    %c32_76 = arith.constant 32 : index
    %266 = vector.load %arg11[%265, %c0_75, %c32_76] : memref<8x8x64xf32, #tpu.memory_space<vmem>>, vector<1x8x32xf32>
    %267 = vector.shape_cast %266 : vector<1x8x32xf32> to vector<8x32xf32>
    %268 = vector.shape_cast %260 : vector<8x32xf32> to vector<1x8x32xf32>
    tpu.vector_store %arg11[%265, %c0_75, %c32_76], %268 {strides = array<i32>} : memref<8x8x64xf32, #tpu.memory_space<vmem>>, vector<1x8x32xf32>,
    %c3_i32 = arith.constant 3 : i32
    %c7_i32_77 = arith.constant 7 : i32
    %269 = arith.subi %c7_i32_77, %c3_i32 : i32
    %270 = arith.index_cast %c3_i32 : i32 to index
    %c0_78 = arith.constant 0 : index
    %c0_79 = arith.constant 0 : index
    %271 = vector.load %arg13[%270, %c0_78, %c0_79] : memref<8x8x96xf32, #tpu.memory_space<vmem>>, vector<1x8x96xf32>
    %272 = vector.shape_cast %271 : vector<1x8x96xf32> to vector<8x96xf32>
    %cst_80 = arith.constant dense<0.000000e+00> : vector<8x96xf32>
    %273 = tpu.matmul %224, %16, %cst_80 {dimension_numbers = #tpu.dot_dimension_numbers<[1], [0], [0], [1], [0, 0, 1, 1], [], []>} : vector<8x32xf32>, vector<32x96xf32>, vector<8x96xf32> -> vector<8x96xf32>
    %274 = vector.extract_strided_slice %272 {offsets = [0, 0], sizes = [8, 32], strides = [1, 1]} : vector<8x96xf32> to vector<8x32xf32>
    %275 = vector.extract_strided_slice %273 {offsets = [0, 0], sizes = [8, 32], strides = [1, 1]} : vector<8x96xf32> to vector<8x32xf32>
    %276 = arith.addf %274, %275 : vector<8x32xf32>
    %277 = arith.negf %276 : vector<8x32xf32>
    %278 = math.exp %277 : vector<8x32xf32>
    %cst_81 = arith.constant 1.000000e+00 : f32
    %279 = vector.broadcast %cst_81 : f32 to vector<8x32xf32>
    %280 = arith.addf %279, %278 : vector<8x32xf32>
    %281 = arith.divf %279, %280 : vector<8x32xf32>
    %282 = vector.extract_strided_slice %272 {offsets = [0, 32], sizes = [8, 32], strides = [1, 1]} : vector<8x96xf32> to vector<8x32xf32>
    %283 = vector.extract_strided_slice %273 {offsets = [0, 32], sizes = [8, 32], strides = [1, 1]} : vector<8x96xf32> to vector<8x32xf32>
    %284 = arith.addf %282, %283 : vector<8x32xf32>
    %285 = arith.negf %284 : vector<8x32xf32>
    %286 = math.exp %285 : vector<8x32xf32>
    %cst_82 = arith.constant 1.000000e+00 : f32
    %287 = vector.broadcast %cst_82 : f32 to vector<8x32xf32>
    %288 = arith.addf %287, %286 : vector<8x32xf32>
    %289 = arith.divf %287, %288 : vector<8x32xf32>
    %290 = vector.extract_strided_slice %272 {offsets = [0, 64], sizes = [8, 32], strides = [1, 1]} : vector<8x96xf32> to vector<8x32xf32>
    %291 = vector.extract_strided_slice %273 {offsets = [0, 64], sizes = [8, 32], strides = [1, 1]} : vector<8x96xf32> to vector<8x32xf32>
    %292 = arith.addf %291, %20 : vector<8x32xf32>
    %293 = arith.mulf %281, %292 : vector<8x32xf32>
    %294 = arith.addf %290, %293 : vector<8x32xf32>
    %295 = math.tanh %294 : vector<8x32xf32>
    %cst_83 = arith.constant 1.000000e+00 : f32
    %296 = vector.broadcast %cst_83 : f32 to vector<8x32xf32>
    %297 = arith.subf %296, %289 : vector<8x32xf32>
    %298 = arith.mulf %297, %295 : vector<8x32xf32>
    %299 = arith.mulf %289, %224 : vector<8x32xf32>
    %300 = arith.addf %298, %299 : vector<8x32xf32>
    %301 = vector.broadcast %c3_i32 : i32 to vector<8x1xi32>
    %302 = arith.cmpi sgt, %24, %301 : vector<8x1xi32>
    %303 = vector.shape_cast %302 : vector<8x1xi1> to vector<8x1xi1>
    %304 = vector.broadcast %303 : vector<8x1xi1> to vector<8x32xi1>
    %305 = arith.select %304, %300, %224 : vector<8x32xi1>, vector<8x32xf32>
    %306 = arith.index_cast %269 : i32 to index
    %c0_84 = arith.constant 0 : index
    %c0_85 = arith.constant 0 : index
    %307 = vector.load %arg14[%306, %c0_84, %c0_85] : memref<8x8x96xf32, #tpu.memory_space<vmem>>, vector<1x8x96xf32>
    %308 = vector.shape_cast %307 : vector<1x8x96xf32> to vector<8x96xf32>
    %cst_86 = arith.constant dense<0.000000e+00> : vector<8x96xf32>
    %309 = tpu.matmul %260, %17, %cst_86 {dimension_numbers = #tpu.dot_dimension_numbers<[1], [0], [0], [1], [0, 0, 1, 1], [], []>} : vector<8x32xf32>, vector<32x96xf32>, vector<8x96xf32> -> vector<8x96xf32>
    %310 = vector.extract_strided_slice %308 {offsets = [0, 0], sizes = [8, 32], strides = [1, 1]} : vector<8x96xf32> to vector<8x32xf32>
    %311 = vector.extract_strided_slice %309 {offsets = [0, 0], sizes = [8, 32], strides = [1, 1]} : vector<8x96xf32> to vector<8x32xf32>
    %312 = arith.addf %310, %311 : vector<8x32xf32>
    %313 = arith.negf %312 : vector<8x32xf32>
    %314 = math.exp %313 : vector<8x32xf32>
    %cst_87 = arith.constant 1.000000e+00 : f32
    %315 = vector.broadcast %cst_87 : f32 to vector<8x32xf32>
    %316 = arith.addf %315, %314 : vector<8x32xf32>
    %317 = arith.divf %315, %316 : vector<8x32xf32>
    %318 = vector.extract_strided_slice %308 {offsets = [0, 32], sizes = [8, 32], strides = [1, 1]} : vector<8x96xf32> to vector<8x32xf32>
    %319 = vector.extract_strided_slice %309 {offsets = [0, 32], sizes = [8, 32], strides = [1, 1]} : vector<8x96xf32> to vector<8x32xf32>
    %320 = arith.addf %318, %319 : vector<8x32xf32>
    %321 = arith.negf %320 : vector<8x32xf32>
    %322 = math.exp %321 : vector<8x32xf32>
    %cst_88 = arith.constant 1.000000e+00 : f32
    %323 = vector.broadcast %cst_88 : f32 to vector<8x32xf32>
    %324 = arith.addf %323, %322 : vector<8x32xf32>
    %325 = arith.divf %323, %324 : vector<8x32xf32>
    %326 = vector.extract_strided_slice %308 {offsets = [0, 64], sizes = [8, 32], strides = [1, 1]} : vector<8x96xf32> to vector<8x32xf32>
    %327 = vector.extract_strided_slice %309 {offsets = [0, 64], sizes = [8, 32], strides = [1, 1]} : vector<8x96xf32> to vector<8x32xf32>
    %328 = arith.addf %327, %23 : vector<8x32xf32>
    %329 = arith.mulf %317, %328 : vector<8x32xf32>
    %330 = arith.addf %326, %329 : vector<8x32xf32>
    %331 = math.tanh %330 : vector<8x32xf32>
    %cst_89 = arith.constant 1.000000e+00 : f32
    %332 = vector.broadcast %cst_89 : f32 to vector<8x32xf32>
    %333 = arith.subf %332, %325 : vector<8x32xf32>
    %334 = arith.mulf %333, %331 : vector<8x32xf32>
    %335 = arith.mulf %325, %260 : vector<8x32xf32>
    %336 = arith.addf %334, %335 : vector<8x32xf32>
    %337 = vector.broadcast %269 : i32 to vector<8x1xi32>
    %338 = arith.cmpi sgt, %24, %337 : vector<8x1xi32>
    %339 = vector.shape_cast %338 : vector<8x1xi1> to vector<8x1xi1>
    %340 = vector.broadcast %339 : vector<8x1xi1> to vector<8x32xi1>
    %341 = arith.select %340, %336, %260 : vector<8x32xi1>, vector<8x32xf32>
    %342 = arith.index_cast %c3_i32 : i32 to index
    %c0_90 = arith.constant 0 : index
    %c0_91 = arith.constant 0 : index
    %343 = vector.load %arg11[%342, %c0_90, %c0_91] : memref<8x8x64xf32, #tpu.memory_space<vmem>>, vector<1x8x32xf32>
    %344 = vector.shape_cast %343 : vector<1x8x32xf32> to vector<8x32xf32>
    %345 = vector.shape_cast %305 : vector<8x32xf32> to vector<1x8x32xf32>
    tpu.vector_store %arg11[%342, %c0_90, %c0_91], %345 {strides = array<i32>} : memref<8x8x64xf32, #tpu.memory_space<vmem>>, vector<1x8x32xf32>,
    %346 = arith.index_cast %269 : i32 to index
    %c0_92 = arith.constant 0 : index
    %c32_93 = arith.constant 32 : index
    %347 = vector.load %arg11[%346, %c0_92, %c32_93] : memref<8x8x64xf32, #tpu.memory_space<vmem>>, vector<1x8x32xf32>
    %348 = vector.shape_cast %347 : vector<1x8x32xf32> to vector<8x32xf32>
    %349 = vector.shape_cast %341 : vector<8x32xf32> to vector<1x8x32xf32>
    tpu.vector_store %arg11[%346, %c0_92, %c32_93], %349 {strides = array<i32>} : memref<8x8x64xf32, #tpu.memory_space<vmem>>, vector<1x8x32xf32>,
    %c4_i32 = arith.constant 4 : i32
    %c7_i32_94 = arith.constant 7 : i32
    %350 = arith.subi %c7_i32_94, %c4_i32 : i32
    %351 = arith.index_cast %c4_i32 : i32 to index
    %c0_95 = arith.constant 0 : index
    %c0_96 = arith.constant 0 : index
    %352 = vector.load %arg13[%351, %c0_95, %c0_96] : memref<8x8x96xf32, #tpu.memory_space<vmem>>, vector<1x8x96xf32>
    %353 = vector.shape_cast %352 : vector<1x8x96xf32> to vector<8x96xf32>
    %cst_97 = arith.constant dense<0.000000e+00> : vector<8x96xf32>
    %354 = tpu.matmul %305, %16, %cst_97 {dimension_numbers = #tpu.dot_dimension_numbers<[1], [0], [0], [1], [0, 0, 1, 1], [], []>} : vector<8x32xf32>, vector<32x96xf32>, vector<8x96xf32> -> vector<8x96xf32>
    %355 = vector.extract_strided_slice %353 {offsets = [0, 0], sizes = [8, 32], strides = [1, 1]} : vector<8x96xf32> to vector<8x32xf32>
    %356 = vector.extract_strided_slice %354 {offsets = [0, 0], sizes = [8, 32], strides = [1, 1]} : vector<8x96xf32> to vector<8x32xf32>
    %357 = arith.addf %355, %356 : vector<8x32xf32>
    %358 = arith.negf %357 : vector<8x32xf32>
    %359 = math.exp %358 : vector<8x32xf32>
    %cst_98 = arith.constant 1.000000e+00 : f32
    %360 = vector.broadcast %cst_98 : f32 to vector<8x32xf32>
    %361 = arith.addf %360, %359 : vector<8x32xf32>
    %362 = arith.divf %360, %361 : vector<8x32xf32>
    %363 = vector.extract_strided_slice %353 {offsets = [0, 32], sizes = [8, 32], strides = [1, 1]} : vector<8x96xf32> to vector<8x32xf32>
    %364 = vector.extract_strided_slice %354 {offsets = [0, 32], sizes = [8, 32], strides = [1, 1]} : vector<8x96xf32> to vector<8x32xf32>
    %365 = arith.addf %363, %364 : vector<8x32xf32>
    %366 = arith.negf %365 : vector<8x32xf32>
    %367 = math.exp %366 : vector<8x32xf32>
    %cst_99 = arith.constant 1.000000e+00 : f32
    %368 = vector.broadcast %cst_99 : f32 to vector<8x32xf32>
    %369 = arith.addf %368, %367 : vector<8x32xf32>
    %370 = arith.divf %368, %369 : vector<8x32xf32>
    %371 = vector.extract_strided_slice %353 {offsets = [0, 64], sizes = [8, 32], strides = [1, 1]} : vector<8x96xf32> to vector<8x32xf32>
    %372 = vector.extract_strided_slice %354 {offsets = [0, 64], sizes = [8, 32], strides = [1, 1]} : vector<8x96xf32> to vector<8x32xf32>
    %373 = arith.addf %372, %20 : vector<8x32xf32>
    %374 = arith.mulf %362, %373 : vector<8x32xf32>
    %375 = arith.addf %371, %374 : vector<8x32xf32>
    %376 = math.tanh %375 : vector<8x32xf32>
    %cst_100 = arith.constant 1.000000e+00 : f32
    %377 = vector.broadcast %cst_100 : f32 to vector<8x32xf32>
    %378 = arith.subf %377, %370 : vector<8x32xf32>
    %379 = arith.mulf %378, %376 : vector<8x32xf32>
    %380 = arith.mulf %370, %305 : vector<8x32xf32>
    %381 = arith.addf %379, %380 : vector<8x32xf32>
    %382 = vector.broadcast %c4_i32 : i32 to vector<8x1xi32>
    %383 = arith.cmpi sgt, %24, %382 : vector<8x1xi32>
    %384 = vector.shape_cast %383 : vector<8x1xi1> to vector<8x1xi1>
    %385 = vector.broadcast %384 : vector<8x1xi1> to vector<8x32xi1>
    %386 = arith.select %385, %381, %305 : vector<8x32xi1>, vector<8x32xf32>
    %387 = arith.index_cast %350 : i32 to index
    %c0_101 = arith.constant 0 : index
    %c0_102 = arith.constant 0 : index
    %388 = vector.load %arg14[%387, %c0_101, %c0_102] : memref<8x8x96xf32, #tpu.memory_space<vmem>>, vector<1x8x96xf32>
    %389 = vector.shape_cast %388 : vector<1x8x96xf32> to vector<8x96xf32>
    %cst_103 = arith.constant dense<0.000000e+00> : vector<8x96xf32>
    %390 = tpu.matmul %341, %17, %cst_103 {dimension_numbers = #tpu.dot_dimension_numbers<[1], [0], [0], [1], [0, 0, 1, 1], [], []>} : vector<8x32xf32>, vector<32x96xf32>, vector<8x96xf32> -> vector<8x96xf32>
    %391 = vector.extract_strided_slice %389 {offsets = [0, 0], sizes = [8, 32], strides = [1, 1]} : vector<8x96xf32> to vector<8x32xf32>
    %392 = vector.extract_strided_slice %390 {offsets = [0, 0], sizes = [8, 32], strides = [1, 1]} : vector<8x96xf32> to vector<8x32xf32>
    %393 = arith.addf %391, %392 : vector<8x32xf32>
    %394 = arith.negf %393 : vector<8x32xf32>
    %395 = math.exp %394 : vector<8x32xf32>
    %cst_104 = arith.constant 1.000000e+00 : f32
    %396 = vector.broadcast %cst_104 : f32 to vector<8x32xf32>
    %397 = arith.addf %396, %395 : vector<8x32xf32>
    %398 = arith.divf %396, %397 : vector<8x32xf32>
    %399 = vector.extract_strided_slice %389 {offsets = [0, 32], sizes = [8, 32], strides = [1, 1]} : vector<8x96xf32> to vector<8x32xf32>
    %400 = vector.extract_strided_slice %390 {offsets = [0, 32], sizes = [8, 32], strides = [1, 1]} : vector<8x96xf32> to vector<8x32xf32>
    %401 = arith.addf %399, %400 : vector<8x32xf32>
    %402 = arith.negf %401 : vector<8x32xf32>
    %403 = math.exp %402 : vector<8x32xf32>
    %cst_105 = arith.constant 1.000000e+00 : f32
    %404 = vector.broadcast %cst_105 : f32 to vector<8x32xf32>
    %405 = arith.addf %404, %403 : vector<8x32xf32>
    %406 = arith.divf %404, %405 : vector<8x32xf32>
    %407 = vector.extract_strided_slice %389 {offsets = [0, 64], sizes = [8, 32], strides = [1, 1]} : vector<8x96xf32> to vector<8x32xf32>
    %408 = vector.extract_strided_slice %390 {offsets = [0, 64], sizes = [8, 32], strides = [1, 1]} : vector<8x96xf32> to vector<8x32xf32>
    %409 = arith.addf %408, %23 : vector<8x32xf32>
    %410 = arith.mulf %398, %409 : vector<8x32xf32>
    %411 = arith.addf %407, %410 : vector<8x32xf32>
    %412 = math.tanh %411 : vector<8x32xf32>
    %cst_106 = arith.constant 1.000000e+00 : f32
    %413 = vector.broadcast %cst_106 : f32 to vector<8x32xf32>
    %414 = arith.subf %413, %406 : vector<8x32xf32>
    %415 = arith.mulf %414, %412 : vector<8x32xf32>
    %416 = arith.mulf %406, %341 : vector<8x32xf32>
    %417 = arith.addf %415, %416 : vector<8x32xf32>
    %418 = vector.broadcast %350 : i32 to vector<8x1xi32>
    %419 = arith.cmpi sgt, %24, %418 : vector<8x1xi32>
    %420 = vector.shape_cast %419 : vector<8x1xi1> to vector<8x1xi1>
    %421 = vector.broadcast %420 : vector<8x1xi1> to vector<8x32xi1>
    %422 = arith.select %421, %417, %341 : vector<8x32xi1>, vector<8x32xf32>
    %423 = arith.index_cast %c4_i32 : i32 to index
    %c0_107 = arith.constant 0 : index
    %c0_108 = arith.constant 0 : index
    %424 = vector.load %arg11[%423, %c0_107, %c0_108] : memref<8x8x64xf32, #tpu.memory_space<vmem>>, vector<1x8x32xf32>
    %425 = vector.shape_cast %424 : vector<1x8x32xf32> to vector<8x32xf32>
    %426 = vector.shape_cast %386 : vector<8x32xf32> to vector<1x8x32xf32>
    tpu.vector_store %arg11[%423, %c0_107, %c0_108], %426 {strides = array<i32>} : memref<8x8x64xf32, #tpu.memory_space<vmem>>, vector<1x8x32xf32>,
    %427 = arith.index_cast %350 : i32 to index
    %c0_109 = arith.constant 0 : index
    %c32_110 = arith.constant 32 : index
    %428 = vector.load %arg11[%427, %c0_109, %c32_110] : memref<8x8x64xf32, #tpu.memory_space<vmem>>, vector<1x8x32xf32>
    %429 = vector.shape_cast %428 : vector<1x8x32xf32> to vector<8x32xf32>
    %430 = vector.shape_cast %422 : vector<8x32xf32> to vector<1x8x32xf32>
    tpu.vector_store %arg11[%427, %c0_109, %c32_110], %430 {strides = array<i32>} : memref<8x8x64xf32, #tpu.memory_space<vmem>>, vector<1x8x32xf32>,
    %c5_i32 = arith.constant 5 : i32
    %c7_i32_111 = arith.constant 7 : i32
    %431 = arith.subi %c7_i32_111, %c5_i32 : i32
    %432 = arith.index_cast %c5_i32 : i32 to index
    %c0_112 = arith.constant 0 : index
    %c0_113 = arith.constant 0 : index
    %433 = vector.load %arg13[%432, %c0_112, %c0_113] : memref<8x8x96xf32, #tpu.memory_space<vmem>>, vector<1x8x96xf32>
    %434 = vector.shape_cast %433 : vector<1x8x96xf32> to vector<8x96xf32>
    %cst_114 = arith.constant dense<0.000000e+00> : vector<8x96xf32>
    %435 = tpu.matmul %386, %16, %cst_114 {dimension_numbers = #tpu.dot_dimension_numbers<[1], [0], [0], [1], [0, 0, 1, 1], [], []>} : vector<8x32xf32>, vector<32x96xf32>, vector<8x96xf32> -> vector<8x96xf32>
    %436 = vector.extract_strided_slice %434 {offsets = [0, 0], sizes = [8, 32], strides = [1, 1]} : vector<8x96xf32> to vector<8x32xf32>
    %437 = vector.extract_strided_slice %435 {offsets = [0, 0], sizes = [8, 32], strides = [1, 1]} : vector<8x96xf32> to vector<8x32xf32>
    %438 = arith.addf %436, %437 : vector<8x32xf32>
    %439 = arith.negf %438 : vector<8x32xf32>
    %440 = math.exp %439 : vector<8x32xf32>
    %cst_115 = arith.constant 1.000000e+00 : f32
    %441 = vector.broadcast %cst_115 : f32 to vector<8x32xf32>
    %442 = arith.addf %441, %440 : vector<8x32xf32>
    %443 = arith.divf %441, %442 : vector<8x32xf32>
    %444 = vector.extract_strided_slice %434 {offsets = [0, 32], sizes = [8, 32], strides = [1, 1]} : vector<8x96xf32> to vector<8x32xf32>
    %445 = vector.extract_strided_slice %435 {offsets = [0, 32], sizes = [8, 32], strides = [1, 1]} : vector<8x96xf32> to vector<8x32xf32>
    %446 = arith.addf %444, %445 : vector<8x32xf32>
    %447 = arith.negf %446 : vector<8x32xf32>
    %448 = math.exp %447 : vector<8x32xf32>
    %cst_116 = arith.constant 1.000000e+00 : f32
    %449 = vector.broadcast %cst_116 : f32 to vector<8x32xf32>
    %450 = arith.addf %449, %448 : vector<8x32xf32>
    %451 = arith.divf %449, %450 : vector<8x32xf32>
    %452 = vector.extract_strided_slice %434 {offsets = [0, 64], sizes = [8, 32], strides = [1, 1]} : vector<8x96xf32> to vector<8x32xf32>
    %453 = vector.extract_strided_slice %435 {offsets = [0, 64], sizes = [8, 32], strides = [1, 1]} : vector<8x96xf32> to vector<8x32xf32>
    %454 = arith.addf %453, %20 : vector<8x32xf32>
    %455 = arith.mulf %443, %454 : vector<8x32xf32>
    %456 = arith.addf %452, %455 : vector<8x32xf32>
    %457 = math.tanh %456 : vector<8x32xf32>
    %cst_117 = arith.constant 1.000000e+00 : f32
    %458 = vector.broadcast %cst_117 : f32 to vector<8x32xf32>
    %459 = arith.subf %458, %451 : vector<8x32xf32>
    %460 = arith.mulf %459, %457 : vector<8x32xf32>
    %461 = arith.mulf %451, %386 : vector<8x32xf32>
    %462 = arith.addf %460, %461 : vector<8x32xf32>
    %463 = vector.broadcast %c5_i32 : i32 to vector<8x1xi32>
    %464 = arith.cmpi sgt, %24, %463 : vector<8x1xi32>
    %465 = vector.shape_cast %464 : vector<8x1xi1> to vector<8x1xi1>
    %466 = vector.broadcast %465 : vector<8x1xi1> to vector<8x32xi1>
    %467 = arith.select %466, %462, %386 : vector<8x32xi1>, vector<8x32xf32>
    %468 = arith.index_cast %431 : i32 to index
    %c0_118 = arith.constant 0 : index
    %c0_119 = arith.constant 0 : index
    %469 = vector.load %arg14[%468, %c0_118, %c0_119] : memref<8x8x96xf32, #tpu.memory_space<vmem>>, vector<1x8x96xf32>
    %470 = vector.shape_cast %469 : vector<1x8x96xf32> to vector<8x96xf32>
    %cst_120 = arith.constant dense<0.000000e+00> : vector<8x96xf32>
    %471 = tpu.matmul %422, %17, %cst_120 {dimension_numbers = #tpu.dot_dimension_numbers<[1], [0], [0], [1], [0, 0, 1, 1], [], []>} : vector<8x32xf32>, vector<32x96xf32>, vector<8x96xf32> -> vector<8x96xf32>
    %472 = vector.extract_strided_slice %470 {offsets = [0, 0], sizes = [8, 32], strides = [1, 1]} : vector<8x96xf32> to vector<8x32xf32>
    %473 = vector.extract_strided_slice %471 {offsets = [0, 0], sizes = [8, 32], strides = [1, 1]} : vector<8x96xf32> to vector<8x32xf32>
    %474 = arith.addf %472, %473 : vector<8x32xf32>
    %475 = arith.negf %474 : vector<8x32xf32>
    %476 = math.exp %475 : vector<8x32xf32>
    %cst_121 = arith.constant 1.000000e+00 : f32
    %477 = vector.broadcast %cst_121 : f32 to vector<8x32xf32>
    %478 = arith.addf %477, %476 : vector<8x32xf32>
    %479 = arith.divf %477, %478 : vector<8x32xf32>
    %480 = vector.extract_strided_slice %470 {offsets = [0, 32], sizes = [8, 32], strides = [1, 1]} : vector<8x96xf32> to vector<8x32xf32>
    %481 = vector.extract_strided_slice %471 {offsets = [0, 32], sizes = [8, 32], strides = [1, 1]} : vector<8x96xf32> to vector<8x32xf32>
    %482 = arith.addf %480, %481 : vector<8x32xf32>
    %483 = arith.negf %482 : vector<8x32xf32>
    %484 = math.exp %483 : vector<8x32xf32>
    %cst_122 = arith.constant 1.000000e+00 : f32
    %485 = vector.broadcast %cst_122 : f32 to vector<8x32xf32>
    %486 = arith.addf %485, %484 : vector<8x32xf32>
    %487 = arith.divf %485, %486 : vector<8x32xf32>
    %488 = vector.extract_strided_slice %470 {offsets = [0, 64], sizes = [8, 32], strides = [1, 1]} : vector<8x96xf32> to vector<8x32xf32>
    %489 = vector.extract_strided_slice %471 {offsets = [0, 64], sizes = [8, 32], strides = [1, 1]} : vector<8x96xf32> to vector<8x32xf32>
    %490 = arith.addf %489, %23 : vector<8x32xf32>
    %491 = arith.mulf %479, %490 : vector<8x32xf32>
    %492 = arith.addf %488, %491 : vector<8x32xf32>
    %493 = math.tanh %492 : vector<8x32xf32>
    %cst_123 = arith.constant 1.000000e+00 : f32
    %494 = vector.broadcast %cst_123 : f32 to vector<8x32xf32>
    %495 = arith.subf %494, %487 : vector<8x32xf32>
    %496 = arith.mulf %495, %493 : vector<8x32xf32>
    %497 = arith.mulf %487, %422 : vector<8x32xf32>
    %498 = arith.addf %496, %497 : vector<8x32xf32>
    %499 = vector.broadcast %431 : i32 to vector<8x1xi32>
    %500 = arith.cmpi sgt, %24, %499 : vector<8x1xi32>
    %501 = vector.shape_cast %500 : vector<8x1xi1> to vector<8x1xi1>
    %502 = vector.broadcast %501 : vector<8x1xi1> to vector<8x32xi1>
    %503 = arith.select %502, %498, %422 : vector<8x32xi1>, vector<8x32xf32>
    %504 = arith.index_cast %c5_i32 : i32 to index
    %c0_124 = arith.constant 0 : index
    %c0_125 = arith.constant 0 : index
    %505 = vector.load %arg11[%504, %c0_124, %c0_125] : memref<8x8x64xf32, #tpu.memory_space<vmem>>, vector<1x8x32xf32>
    %506 = vector.shape_cast %505 : vector<1x8x32xf32> to vector<8x32xf32>
    %507 = vector.shape_cast %467 : vector<8x32xf32> to vector<1x8x32xf32>
    tpu.vector_store %arg11[%504, %c0_124, %c0_125], %507 {strides = array<i32>} : memref<8x8x64xf32, #tpu.memory_space<vmem>>, vector<1x8x32xf32>,
    %508 = arith.index_cast %431 : i32 to index
    %c0_126 = arith.constant 0 : index
    %c32_127 = arith.constant 32 : index
    %509 = vector.load %arg11[%508, %c0_126, %c32_127] : memref<8x8x64xf32, #tpu.memory_space<vmem>>, vector<1x8x32xf32>
    %510 = vector.shape_cast %509 : vector<1x8x32xf32> to vector<8x32xf32>
    %511 = vector.shape_cast %503 : vector<8x32xf32> to vector<1x8x32xf32>
    tpu.vector_store %arg11[%508, %c0_126, %c32_127], %511 {strides = array<i32>} : memref<8x8x64xf32, #tpu.memory_space<vmem>>, vector<1x8x32xf32>,
    %c6_i32 = arith.constant 6 : i32
    %c7_i32_128 = arith.constant 7 : i32
    %512 = arith.subi %c7_i32_128, %c6_i32 : i32
    %513 = arith.index_cast %c6_i32 : i32 to index
    %c0_129 = arith.constant 0 : index
    %c0_130 = arith.constant 0 : index
    %514 = vector.load %arg13[%513, %c0_129, %c0_130] : memref<8x8x96xf32, #tpu.memory_space<vmem>>, vector<1x8x96xf32>
    %515 = vector.shape_cast %514 : vector<1x8x96xf32> to vector<8x96xf32>
    %cst_131 = arith.constant dense<0.000000e+00> : vector<8x96xf32>
    %516 = tpu.matmul %467, %16, %cst_131 {dimension_numbers = #tpu.dot_dimension_numbers<[1], [0], [0], [1], [0, 0, 1, 1], [], []>} : vector<8x32xf32>, vector<32x96xf32>, vector<8x96xf32> -> vector<8x96xf32>
    %517 = vector.extract_strided_slice %515 {offsets = [0, 0], sizes = [8, 32], strides = [1, 1]} : vector<8x96xf32> to vector<8x32xf32>
    %518 = vector.extract_strided_slice %516 {offsets = [0, 0], sizes = [8, 32], strides = [1, 1]} : vector<8x96xf32> to vector<8x32xf32>
    %519 = arith.addf %517, %518 : vector<8x32xf32>
    %520 = arith.negf %519 : vector<8x32xf32>
    %521 = math.exp %520 : vector<8x32xf32>
    %cst_132 = arith.constant 1.000000e+00 : f32
    %522 = vector.broadcast %cst_132 : f32 to vector<8x32xf32>
    %523 = arith.addf %522, %521 : vector<8x32xf32>
    %524 = arith.divf %522, %523 : vector<8x32xf32>
    %525 = vector.extract_strided_slice %515 {offsets = [0, 32], sizes = [8, 32], strides = [1, 1]} : vector<8x96xf32> to vector<8x32xf32>
    %526 = vector.extract_strided_slice %516 {offsets = [0, 32], sizes = [8, 32], strides = [1, 1]} : vector<8x96xf32> to vector<8x32xf32>
    %527 = arith.addf %525, %526 : vector<8x32xf32>
    %528 = arith.negf %527 : vector<8x32xf32>
    %529 = math.exp %528 : vector<8x32xf32>
    %cst_133 = arith.constant 1.000000e+00 : f32
    %530 = vector.broadcast %cst_133 : f32 to vector<8x32xf32>
    %531 = arith.addf %530, %529 : vector<8x32xf32>
    %532 = arith.divf %530, %531 : vector<8x32xf32>
    %533 = vector.extract_strided_slice %515 {offsets = [0, 64], sizes = [8, 32], strides = [1, 1]} : vector<8x96xf32> to vector<8x32xf32>
    %534 = vector.extract_strided_slice %516 {offsets = [0, 64], sizes = [8, 32], strides = [1, 1]} : vector<8x96xf32> to vector<8x32xf32>
    %535 = arith.addf %534, %20 : vector<8x32xf32>
    %536 = arith.mulf %524, %535 : vector<8x32xf32>
    %537 = arith.addf %533, %536 : vector<8x32xf32>
    %538 = math.tanh %537 : vector<8x32xf32>
    %cst_134 = arith.constant 1.000000e+00 : f32
    %539 = vector.broadcast %cst_134 : f32 to vector<8x32xf32>
    %540 = arith.subf %539, %532 : vector<8x32xf32>
    %541 = arith.mulf %540, %538 : vector<8x32xf32>
    %542 = arith.mulf %532, %467 : vector<8x32xf32>
    %543 = arith.addf %541, %542 : vector<8x32xf32>
    %544 = vector.broadcast %c6_i32 : i32 to vector<8x1xi32>
    %545 = arith.cmpi sgt, %24, %544 : vector<8x1xi32>
    %546 = vector.shape_cast %545 : vector<8x1xi1> to vector<8x1xi1>
    %547 = vector.broadcast %546 : vector<8x1xi1> to vector<8x32xi1>
    %548 = arith.select %547, %543, %467 : vector<8x32xi1>, vector<8x32xf32>
    %549 = arith.index_cast %512 : i32 to index
    %c0_135 = arith.constant 0 : index
    %c0_136 = arith.constant 0 : index
    %550 = vector.load %arg14[%549, %c0_135, %c0_136] : memref<8x8x96xf32, #tpu.memory_space<vmem>>, vector<1x8x96xf32>
    %551 = vector.shape_cast %550 : vector<1x8x96xf32> to vector<8x96xf32>
    %cst_137 = arith.constant dense<0.000000e+00> : vector<8x96xf32>
    %552 = tpu.matmul %503, %17, %cst_137 {dimension_numbers = #tpu.dot_dimension_numbers<[1], [0], [0], [1], [0, 0, 1, 1], [], []>} : vector<8x32xf32>, vector<32x96xf32>, vector<8x96xf32> -> vector<8x96xf32>
    %553 = vector.extract_strided_slice %551 {offsets = [0, 0], sizes = [8, 32], strides = [1, 1]} : vector<8x96xf32> to vector<8x32xf32>
    %554 = vector.extract_strided_slice %552 {offsets = [0, 0], sizes = [8, 32], strides = [1, 1]} : vector<8x96xf32> to vector<8x32xf32>
    %555 = arith.addf %553, %554 : vector<8x32xf32>
    %556 = arith.negf %555 : vector<8x32xf32>
    %557 = math.exp %556 : vector<8x32xf32>
    %cst_138 = arith.constant 1.000000e+00 : f32
    %558 = vector.broadcast %cst_138 : f32 to vector<8x32xf32>
    %559 = arith.addf %558, %557 : vector<8x32xf32>
    %560 = arith.divf %558, %559 : vector<8x32xf32>
    %561 = vector.extract_strided_slice %551 {offsets = [0, 32], sizes = [8, 32], strides = [1, 1]} : vector<8x96xf32> to vector<8x32xf32>
    %562 = vector.extract_strided_slice %552 {offsets = [0, 32], sizes = [8, 32], strides = [1, 1]} : vector<8x96xf32> to vector<8x32xf32>
    %563 = arith.addf %561, %562 : vector<8x32xf32>
    %564 = arith.negf %563 : vector<8x32xf32>
    %565 = math.exp %564 : vector<8x32xf32>
    %cst_139 = arith.constant 1.000000e+00 : f32
    %566 = vector.broadcast %cst_139 : f32 to vector<8x32xf32>
    %567 = arith.addf %566, %565 : vector<8x32xf32>
    %568 = arith.divf %566, %567 : vector<8x32xf32>
    %569 = vector.extract_strided_slice %551 {offsets = [0, 64], sizes = [8, 32], strides = [1, 1]} : vector<8x96xf32> to vector<8x32xf32>
    %570 = vector.extract_strided_slice %552 {offsets = [0, 64], sizes = [8, 32], strides = [1, 1]} : vector<8x96xf32> to vector<8x32xf32>
    %571 = arith.addf %570, %23 : vector<8x32xf32>
    %572 = arith.mulf %560, %571 : vector<8x32xf32>
    %573 = arith.addf %569, %572 : vector<8x32xf32>
    %574 = math.tanh %573 : vector<8x32xf32>
    %cst_140 = arith.constant 1.000000e+00 : f32
    %575 = vector.broadcast %cst_140 : f32 to vector<8x32xf32>
    %576 = arith.subf %575, %568 : vector<8x32xf32>
    %577 = arith.mulf %576, %574 : vector<8x32xf32>
    %578 = arith.mulf %568, %503 : vector<8x32xf32>
    %579 = arith.addf %577, %578 : vector<8x32xf32>
    %580 = vector.broadcast %512 : i32 to vector<8x1xi32>
    %581 = arith.cmpi sgt, %24, %580 : vector<8x1xi32>
    %582 = vector.shape_cast %581 : vector<8x1xi1> to vector<8x1xi1>
    %583 = vector.broadcast %582 : vector<8x1xi1> to vector<8x32xi1>
    %584 = arith.select %583, %579, %503 : vector<8x32xi1>, vector<8x32xf32>
    %585 = arith.index_cast %c6_i32 : i32 to index
    %c0_141 = arith.constant 0 : index
    %c0_142 = arith.constant 0 : index
    %586 = vector.load %arg11[%585, %c0_141, %c0_142] : memref<8x8x64xf32, #tpu.memory_space<vmem>>, vector<1x8x32xf32>
    %587 = vector.shape_cast %586 : vector<1x8x32xf32> to vector<8x32xf32>
    %588 = vector.shape_cast %548 : vector<8x32xf32> to vector<1x8x32xf32>
    tpu.vector_store %arg11[%585, %c0_141, %c0_142], %588 {strides = array<i32>} : memref<8x8x64xf32, #tpu.memory_space<vmem>>, vector<1x8x32xf32>,
    %589 = arith.index_cast %512 : i32 to index
    %c0_143 = arith.constant 0 : index
    %c32_144 = arith.constant 32 : index
    %590 = vector.load %arg11[%589, %c0_143, %c32_144] : memref<8x8x64xf32, #tpu.memory_space<vmem>>, vector<1x8x32xf32>
    %591 = vector.shape_cast %590 : vector<1x8x32xf32> to vector<8x32xf32>
    %592 = vector.shape_cast %584 : vector<8x32xf32> to vector<1x8x32xf32>
    tpu.vector_store %arg11[%589, %c0_143, %c32_144], %592 {strides = array<i32>} : memref<8x8x64xf32, #tpu.memory_space<vmem>>, vector<1x8x32xf32>,
    %c7_i32_145 = arith.constant 7 : i32
    %c7_i32_146 = arith.constant 7 : i32
    %593 = arith.subi %c7_i32_146, %c7_i32_145 : i32
    %594 = arith.index_cast %c7_i32_145 : i32 to index
    %c0_147 = arith.constant 0 : index
    %c0_148 = arith.constant 0 : index
    %595 = vector.load %arg13[%594, %c0_147, %c0_148] : memref<8x8x96xf32, #tpu.memory_space<vmem>>, vector<1x8x96xf32>
    %596 = vector.shape_cast %595 : vector<1x8x96xf32> to vector<8x96xf32>
    %cst_149 = arith.constant dense<0.000000e+00> : vector<8x96xf32>
    %597 = tpu.matmul %548, %16, %cst_149 {dimension_numbers = #tpu.dot_dimension_numbers<[1], [0], [0], [1], [0, 0, 1, 1], [], []>} : vector<8x32xf32>, vector<32x96xf32>, vector<8x96xf32> -> vector<8x96xf32>
    %598 = vector.extract_strided_slice %596 {offsets = [0, 0], sizes = [8, 32], strides = [1, 1]} : vector<8x96xf32> to vector<8x32xf32>
    %599 = vector.extract_strided_slice %597 {offsets = [0, 0], sizes = [8, 32], strides = [1, 1]} : vector<8x96xf32> to vector<8x32xf32>
    %600 = arith.addf %598, %599 : vector<8x32xf32>
    %601 = arith.negf %600 : vector<8x32xf32>
    %602 = math.exp %601 : vector<8x32xf32>
    %cst_150 = arith.constant 1.000000e+00 : f32
    %603 = vector.broadcast %cst_150 : f32 to vector<8x32xf32>
    %604 = arith.addf %603, %602 : vector<8x32xf32>
    %605 = arith.divf %603, %604 : vector<8x32xf32>
    %606 = vector.extract_strided_slice %596 {offsets = [0, 32], sizes = [8, 32], strides = [1, 1]} : vector<8x96xf32> to vector<8x32xf32>
    %607 = vector.extract_strided_slice %597 {offsets = [0, 32], sizes = [8, 32], strides = [1, 1]} : vector<8x96xf32> to vector<8x32xf32>
    %608 = arith.addf %606, %607 : vector<8x32xf32>
    %609 = arith.negf %608 : vector<8x32xf32>
    %610 = math.exp %609 : vector<8x32xf32>
    %cst_151 = arith.constant 1.000000e+00 : f32
    %611 = vector.broadcast %cst_151 : f32 to vector<8x32xf32>
    %612 = arith.addf %611, %610 : vector<8x32xf32>
    %613 = arith.divf %611, %612 : vector<8x32xf32>
    %614 = vector.extract_strided_slice %596 {offsets = [0, 64], sizes = [8, 32], strides = [1, 1]} : vector<8x96xf32> to vector<8x32xf32>
    %615 = vector.extract_strided_slice %597 {offsets = [0, 64], sizes = [8, 32], strides = [1, 1]} : vector<8x96xf32> to vector<8x32xf32>
    %616 = arith.addf %615, %20 : vector<8x32xf32>
    %617 = arith.mulf %605, %616 : vector<8x32xf32>
    %618 = arith.addf %614, %617 : vector<8x32xf32>
    %619 = math.tanh %618 : vector<8x32xf32>
    %cst_152 = arith.constant 1.000000e+00 : f32
    %620 = vector.broadcast %cst_152 : f32 to vector<8x32xf32>
    %621 = arith.subf %620, %613 : vector<8x32xf32>
    %622 = arith.mulf %621, %619 : vector<8x32xf32>
    %623 = arith.mulf %613, %548 : vector<8x32xf32>
    %624 = arith.addf %622, %623 : vector<8x32xf32>
    %625 = vector.broadcast %c7_i32_145 : i32 to vector<8x1xi32>
    %626 = arith.cmpi sgt, %24, %625 : vector<8x1xi32>
    %627 = vector.shape_cast %626 : vector<8x1xi1> to vector<8x1xi1>
    %628 = vector.broadcast %627 : vector<8x1xi1> to vector<8x32xi1>
    %629 = arith.select %628, %624, %548 : vector<8x32xi1>, vector<8x32xf32>
    %630 = arith.index_cast %593 : i32 to index
    %c0_153 = arith.constant 0 : index
    %c0_154 = arith.constant 0 : index
    %631 = vector.load %arg14[%630, %c0_153, %c0_154] : memref<8x8x96xf32, #tpu.memory_space<vmem>>, vector<1x8x96xf32>
    %632 = vector.shape_cast %631 : vector<1x8x96xf32> to vector<8x96xf32>
    %cst_155 = arith.constant dense<0.000000e+00> : vector<8x96xf32>
    %633 = tpu.matmul %584, %17, %cst_155 {dimension_numbers = #tpu.dot_dimension_numbers<[1], [0], [0], [1], [0, 0, 1, 1], [], []>} : vector<8x32xf32>, vector<32x96xf32>, vector<8x96xf32> -> vector<8x96xf32>
    %634 = vector.extract_strided_slice %632 {offsets = [0, 0], sizes = [8, 32], strides = [1, 1]} : vector<8x96xf32> to vector<8x32xf32>
    %635 = vector.extract_strided_slice %633 {offsets = [0, 0], sizes = [8, 32], strides = [1, 1]} : vector<8x96xf32> to vector<8x32xf32>
    %636 = arith.addf %634, %635 : vector<8x32xf32>
    %637 = arith.negf %636 : vector<8x32xf32>
    %638 = math.exp %637 : vector<8x32xf32>
    %cst_156 = arith.constant 1.000000e+00 : f32
    %639 = vector.broadcast %cst_156 : f32 to vector<8x32xf32>
    %640 = arith.addf %639, %638 : vector<8x32xf32>
    %641 = arith.divf %639, %640 : vector<8x32xf32>
    %642 = vector.extract_strided_slice %632 {offsets = [0, 32], sizes = [8, 32], strides = [1, 1]} : vector<8x96xf32> to vector<8x32xf32>
    %643 = vector.extract_strided_slice %633 {offsets = [0, 32], sizes = [8, 32], strides = [1, 1]} : vector<8x96xf32> to vector<8x32xf32>
    %644 = arith.addf %642, %643 : vector<8x32xf32>
    %645 = arith.negf %644 : vector<8x32xf32>
    %646 = math.exp %645 : vector<8x32xf32>
    %cst_157 = arith.constant 1.000000e+00 : f32
    %647 = vector.broadcast %cst_157 : f32 to vector<8x32xf32>
    %648 = arith.addf %647, %646 : vector<8x32xf32>
    %649 = arith.divf %647, %648 : vector<8x32xf32>
    %650 = vector.extract_strided_slice %632 {offsets = [0, 64], sizes = [8, 32], strides = [1, 1]} : vector<8x96xf32> to vector<8x32xf32>
    %651 = vector.extract_strided_slice %633 {offsets = [0, 64], sizes = [8, 32], strides = [1, 1]} : vector<8x96xf32> to vector<8x32xf32>
    %652 = arith.addf %651, %23 : vector<8x32xf32>
    %653 = arith.mulf %641, %652 : vector<8x32xf32>
    %654 = arith.addf %650, %653 : vector<8x32xf32>
    %655 = math.tanh %654 : vector<8x32xf32>
    %cst_158 = arith.constant 1.000000e+00 : f32
    %656 = vector.broadcast %cst_158 : f32 to vector<8x32xf32>
    %657 = arith.subf %656, %649 : vector<8x32xf32>
    %658 = arith.mulf %657, %655 : vector<8x32xf32>
    %659 = arith.mulf %649, %584 : vector<8x32xf32>
    %660 = arith.addf %658, %659 : vector<8x32xf32>
    %661 = vector.broadcast %593 : i32 to vector<8x1xi32>
    %662 = arith.cmpi sgt, %24, %661 : vector<8x1xi32>
    %663 = vector.shape_cast %662 : vector<8x1xi1> to vector<8x1xi1>
    %664 = vector.broadcast %663 : vector<8x1xi1> to vector<8x32xi1>
    %665 = arith.select %664, %660, %584 : vector<8x32xi1>, vector<8x32xf32>
    %666 = arith.index_cast %c7_i32_145 : i32 to index
    %c0_159 = arith.constant 0 : index
    %c0_160 = arith.constant 0 : index
    %667 = vector.load %arg11[%666, %c0_159, %c0_160] : memref<8x8x64xf32, #tpu.memory_space<vmem>>, vector<1x8x32xf32>
    %668 = vector.shape_cast %667 : vector<1x8x32xf32> to vector<8x32xf32>
    %669 = vector.shape_cast %629 : vector<8x32xf32> to vector<1x8x32xf32>
    tpu.vector_store %arg11[%666, %c0_159, %c0_160], %669 {strides = array<i32>} : memref<8x8x64xf32, #tpu.memory_space<vmem>>, vector<1x8x32xf32>,
    %670 = arith.index_cast %593 : i32 to index
    %c0_161 = arith.constant 0 : index
    %c32_162 = arith.constant 32 : index
    %671 = vector.load %arg11[%670, %c0_161, %c32_162] : memref<8x8x64xf32, #tpu.memory_space<vmem>>, vector<1x8x32xf32>
    %672 = vector.shape_cast %671 : vector<1x8x32xf32> to vector<8x32xf32>
    %673 = vector.shape_cast %665 : vector<8x32xf32> to vector<1x8x32xf32>
    tpu.vector_store %arg11[%670, %c0_161, %c32_162], %673 {strides = array<i32>} : memref<8x8x64xf32, #tpu.memory_space<vmem>>, vector<1x8x32xf32>,
    %c8_i32 = arith.constant 8 : i32
    %c0_163 = arith.constant 0 : index
    %c0_164 = arith.constant 0 : index
    %674 = vector.load %arg12[%c0_163, %c0_164] : memref<8x64xf32, #tpu.memory_space<vmem>>, vector<8x32xf32>
    tpu.vector_store %arg12[%c0_163, %c0_164], %629 {strides = array<i32>} : memref<8x64xf32, #tpu.memory_space<vmem>>, vector<8x32xf32>,
    %c0_165 = arith.constant 0 : index
    %c32_166 = arith.constant 32 : index
    %675 = vector.load %arg12[%c0_165, %c32_166] : memref<8x64xf32, #tpu.memory_space<vmem>>, vector<8x32xf32>
    tpu.vector_store %arg12[%c0_165, %c32_166], %665 {strides = array<i32>} : memref<8x64xf32, #tpu.memory_space<vmem>>, vector<8x32xf32>,
    return
  }
  func.func @transform_0(%arg0: i32) -> (i32, i32, i32) {
    %c0_i32 = arith.constant 0 : i32
    %c0_i32_0 = arith.constant 0 : i32
    %c0_i32_1 = arith.constant 0 : i32
    return %c0_i32, %arg0, %c0_i32_0 : i32, i32, i32
  }
  func.func @transform_1(%arg0: i32) -> (i32, i32) {
    %c0_i32 = arith.constant 0 : i32
    %c0_i32_0 = arith.constant 0 : i32
    return %arg0, %c0_i32 : i32, i32
  }
  func.func @transform_2(%arg0: i32) -> (i32, i32) {
    %c0_i32 = arith.constant 0 : i32
    %c0_i32_0 = arith.constant 0 : i32
    %c0_i32_1 = arith.constant 0 : i32
    return %c0_i32, %c0_i32_0 : i32, i32
  }
  func.func @transform_3(%arg0: i32) -> (i32, i32) {
    %c0_i32 = arith.constant 0 : i32
    %c0_i32_0 = arith.constant 0 : i32
    %c0_i32_1 = arith.constant 0 : i32
    return %c0_i32, %c0_i32_0 : i32, i32
  }
  func.func @transform_4(%arg0: i32) -> (i32, i32) {
    %c0_i32 = arith.constant 0 : i32
    %c0_i32_0 = arith.constant 0 : i32
    %c0_i32_1 = arith.constant 0 : i32
    return %c0_i32, %c0_i32_0 : i32, i32
  }
  func.func @transform_5(%arg0: i32) -> (i32, i32) {
    %c0_i32 = arith.constant 0 : i32
    %c0_i32_0 = arith.constant 0 : i32
    %c0_i32_1 = arith.constant 0 : i32
    return %c0_i32, %c0_i32_0 : i32, i32
  }
  func.func @transform_6(%arg0: i32) -> (i32, i32) {
    %c0_i32 = arith.constant 0 : i32
    %c0_i32_0 = arith.constant 0 : i32
    %c0_i32_1 = arith.constant 0 : i32
    return %c0_i32, %c0_i32_0 : i32, i32
  }
  func.func @transform_7(%arg0: i32) -> (i32, i32) {
    %c0_i32 = arith.constant 0 : i32
    %c0_i32_0 = arith.constant 0 : i32
    %c0_i32_1 = arith.constant 0 : i32
    return %c0_i32, %c0_i32_0 : i32, i32
  }
  func.func @transform_8(%arg0: i32) -> (i32, i32) {
    %c0_i32 = arith.constant 0 : i32
    %c0_i32_0 = arith.constant 0 : i32
    %c0_i32_1 = arith.constant 0 : i32
    return %c0_i32, %c0_i32_0 : i32, i32
  }
  func.func @transform_9(%arg0: i32) -> (i32, i32) {
    %c0_i32 = arith.constant 0 : i32
    %c0_i32_0 = arith.constant 0 : i32
    %c0_i32_1 = arith.constant 0 : i32
    return %c0_i32, %c0_i32_0 : i32, i32
  }
  func.func @transform_10(%arg0: i32) -> (i32, i32, i32) {
    %c0_i32 = arith.constant 0 : i32
    %c0_i32_0 = arith.constant 0 : i32
    %c0_i32_1 = arith.constant 0 : i32
    return %c0_i32, %arg0, %c0_i32_0 : i32, i32, i32
  }
  func.func @transform_11(%arg0: i32) -> (i32, i32) {
    %c0_i32 = arith.constant 0 : i32
    %c0_i32_0 = arith.constant 0 : i32
    return %arg0, %c0_i32 : i32, i32
  }
}

</mosaic_0001>

<llo_original>
// kernel: forward.5
$region0: #{forward.5}
  #allocation0 [shape = 'u32[]', space=smem, size = 0x4, offset = 0x4, fixed_abs, tag = 'smem constant byte address 0x4 - core index']
  #allocation1 [shape = 'u32[72,128]{1,0:T(1,128)}', space=vmem, size = 0x9000, scoped, tag = 'internal scratch']
  %s0 = inlined_call_operand.vmem [shape: f32[8,64], index: 0, kind: input, shape index: {}]
  %s1 = inlined_call_operand.vmem [shape: f32[64,4], index: 1, kind: input, shape index: {}]
  %s2 = inlined_call_operand.vmem [shape: f32[1,4], index: 2, kind: input, shape index: {}]
  %s3 = inlined_call_operand.vmem [shape: f32[8,4], index: 3, kind: output, shape index: {}]
  %s4 = sld [smem:[#allocation0]]
  $region22: #{forward.5} parent=0
    _
  %s6 = ssub.s32 1, %s4
  %s7 = scalar_select 0, %s6, %s4
  // Predicated region
  $region2: #{forward.5} parent=0 // pred_check
    _
  $region3: #{forward.5} parent=0 // pred_check_branch
    %9 = sbr.rel (0) target = $region5
  $region4: #{forward.5} parent=0 // pred_region
    _
  $region5: #{forward.5} parent=0 // pred_fallthru
    _
  // Predicated region
  $region6: #{forward.5} parent=0 // pred_check
    _
  $region7: #{forward.5} parent=0 // pred_check_branch
    %11 = sbr.rel (0) target = $region9
  $region8: #{forward.5} parent=0 // pred_region
    _
  $region9: #{forward.5} parent=0 // pred_fallthru
    _
  // Predicated region
  $region10: #{forward.5} parent=0 // pred_check
    _
  $region11: #{forward.5} parent=0 // pred_check_branch
    %13 = sbr.rel (0) target = $region13
  $region12: #{forward.5} parent=0 // pred_region
    _
  $region13: #{forward.5} parent=0 // pred_fallthru
    _
  %v14 = vld [vmem:[%s0] sm:$0xff]
  %v15 = vtanh.pop %v14
  %v16 = vld [vmem:[%s1] sm:$0xff]
  %v17 = vld [vmem:[%s1 + $0x8] sm:$0xff]
  %v18 = vld [vmem:[%s1 + $0x10] sm:$0xff]
  %v19 = vld [vmem:[%s1 + $0x18] sm:$0xff]
  %v20 = vld [vmem:[%s1 + $0x20] sm:$0xff]
  %v21 = vld [vmem:[%s1 + $0x28] sm:$0xff]
  %v22 = vld [vmem:[%s1 + $0x30] sm:$0xff]
  %v23 = vld [vmem:[%s1 + $0x38] sm:$0xff]
  %v24 = vld [vmem:[%s2] sm:$0x1]
  %v26 = vperm.slane %v24, 0
  %vm28 = vcmask 523264
  %v30 = vsel %vm28, %v15, 0
  %32 = vmatpush.msra.mxu0 0.0
  %33 = vmatpush.msra.mxu0 0.0
  %34 = vmatpush.msra.mxu0 0.0
  %35 = vmatpush.msra.mxu0 0.0
  %36 = vmatpush.msra.mxu0 0.0
  %37 = vmatpush.msra.mxu0 0.0
  %38 = vmatpush.msra.mxu0 0.0
  %39 = vmatpush.msra.mxu0 0.0
  %40 = vmatpush.msra.mxu0 %v23
  %41 = vmatpush.msra.mxu0 %v22
  %42 = vmatpush.msra.mxu0 %v21
  %43 = vmatpush.msra.mxu0 %v20
  %44 = vmatpush.msra.mxu0 %v19
  %45 = vmatpush.msra.mxu0 %v18
  %46 = vmatpush.msra.mxu0 %v17
  %47 = vmatpush.msra.mxu0 %v16
  %48 = vmatmul.f32.gmra.mxu0 %v30
  %v49 = vpop.f32.mrf.mxu0
  %v50 = vadd.f32 %v26, %v49
  %51 = vdwg.mxu0
  %vm52 = vcmask 31744
  %53 = vst.msk [vmem:[%s3] sm:$0xff] %vm52, %v50
  // Predicated region
  $region14: #{forward.5} parent=0 // pred_check
    _
  $region15: #{forward.5} parent=0 // pred_check_branch
    %55 = sbr.rel (0) target = $region17
  $region16: #{forward.5} parent=0 // pred_region
    _
  $region17: #{forward.5} parent=0 // pred_fallthru
    _
  // Predicated region
  $region18: #{forward.5} parent=0 // pred_check
    _
  $region19: #{forward.5} parent=0 // pred_check_branch
    %57 = sbr.rel (0) target = $region21
  $region20: #{forward.5} parent=0 // pred_region
    _
  $region21: #{forward.5} parent=0 // pred_fallthru
    _

// kernel: forward.4
$region0: #{forward.4}
  #allocation0 [shape = 'u32[]', space=smem, size = 0x4, offset = 0x4, fixed_abs, tag = 'smem constant byte address 0x4 - core index']
  #allocation1 [shape = 'u32[72,128]{1,0:T(1,128)}', space=vmem, size = 0x9000, scoped, tag = 'internal scratch']
  #allocation2 [shape = 'f32[8,8,96]{2,1,0:T(8,128)}', space=vmem, size = 0x8000, scoped, tag = 'scratch operand']
  #allocation3 [shape = 'f32[8,8,96]{2,1,0:T(8,128)}', space=vmem, size = 0x8000, scoped, tag = 'scratch operand']
  %s0 = inlined_call_operand.vmem [shape: f32[8,8,64], index: 0, kind: input, shape index: {}]
  %s1 = inlined_call_operand.vmem [shape: s32[8,1], index: 1, kind: input, shape index: {}]
  %s2 = inlined_call_operand.vmem [shape: f32[64,96], index: 2, kind: input, shape index: {}]
  %s3 = inlined_call_operand.vmem [shape: f32[32,96], index: 3, kind: input, shape index: {}]
  %s4 = inlined_call_operand.hbm [shape: f32[1,96], index: 4, kind: input, shape index: {}]
  %s5 = inlined_call_operand.vmem [shape: f32[1,32], index: 5, kind: input, shape index: {}]
  %s6 = inlined_call_operand.vmem [shape: f32[64,96], index: 6, kind: input, shape index: {}]
  %s7 = inlined_call_operand.vmem [shape: f32[32,96], index: 7, kind: input, shape index: {}]
  %s8 = inlined_call_operand.vmem [shape: f32[1,96], index: 8, kind: input, shape index: {}]
  %s9 = inlined_call_operand.vmem [shape: f32[1,32], index: 9, kind: input, shape index: {}]
  %s10 = inlined_call_operand.vmem [shape: f32[8,64], index: 10, kind: output, shape index: {}]
  %s11 = sld [smem:[#allocation0]]
  $region54: #{forward.4} parent=0
    _
  %s13 = ssub.s32 1, %s11
  %s14 = scalar_select 0, %s13, %s11
  $region1: #{forward.4} parent=0
    #allocation4 [shape = 'u8[512]{0}', space=vmem, size = 0x400, scoped, tag = 'input window, operand 4, single buffered']
    #allocation5 [shape = 's32[1]{0}', space=sflag, size = 0x4, scoped, tag = 'scoped memory for forward.4']
    %15 = vsyncpa [#allocation5], 0
    // Predicated region
    $region2: #{forward.4} parent=1 // pred_check
      _
    $region3: #{forward.4} parent=1 // pred_check_branch
      %17 = sbr.rel (0) target = $region5
    $region4: #{forward.4} parent=1 // pred_region
      _
    $region5: #{forward.4} parent=1 // pred_fallthru
      _
    // Predicated region
    $region6: #{forward.4} parent=1 // pred_check
      _
    $region7: #{forward.4} parent=1 // pred_check_branch
      %19 = sbr.rel (0) target = $region9
    $region8: #{forward.4} parent=1 // pred_region
      _
    $region9: #{forward.4} parent=1 // pred_fallthru
      _
    // Predicated region
    $region10: #{forward.4} parent=1 // pred_check
      _
    $region11: #{forward.4} parent=1 // pred_check_branch
      %21 = sbr.rel (0) target = $region13
    $region12: #{forward.4} parent=1 // pred_region
      _
    $region13: #{forward.4} parent=1 // pred_fallthru
      _
    // Predicated region
    $region14: #{forward.4} parent=1 // pred_check
      _
    $region15: #{forward.4} parent=1 // pred_check_branch
      %23 = sbr.rel (0) target = $region17
    $region16: #{forward.4} parent=1 // pred_region
      _
    $region17: #{forward.4} parent=1 // pred_fallthru
      _
    // Predicated region
    $region18: #{forward.4} parent=1 // pred_check
      _
    $region19: #{forward.4} parent=1 // pred_check_branch
      %25 = sbr.rel (0) target = $region21
    $region20: #{forward.4} parent=1 // pred_region
      %27 = vsyncadd [#allocation5], 0
      %s29 = sshll.u32 %s4, 4
      %s30 = int_to_ptr.hbm [resolvable:$true] %s29
      %s31 = sshll.u32 [#allocation4], 4
      %s32 = int_to_ptr.vmem [resolvable:$true] %s31
      %34 = dma.hbm_to_vmem [thread:$0]  %s30, 16, %s32, [#allocation5]
    $region21: #{forward.4} parent=1 // pred_fallthru
      _
    // Predicated region
    $region22: #{forward.4} parent=1 // pred_check
      _
    $region23: #{forward.4} parent=1 // pred_check_branch
      %36 = sbr.rel (0) target = $region25
    $region24: #{forward.4} parent=1 // pred_region
      _
    $region25: #{forward.4} parent=1 // pred_fallthru
      _
    // Predicated region
    $region26: #{forward.4} parent=1 // pred_check
      _
    $region27: #{forward.4} parent=1 // pred_check_branch
      %38 = sbr.rel (0) target = $region29
    $region28: #{forward.4} parent=1 // pred_region
      _
    $region29: #{forward.4} parent=1 // pred_fallthru
      _
    // Predicated region
    $region30: #{forward.4} parent=1 // pred_check
      _
    $region31: #{forward.4} parent=1 // pred_check_branch
      %40 = sbr.rel (0) target = $region33
    $region32: #{forward.4} parent=1 // pred_region
      _
    $region33: #{forward.4} parent=1 // pred_fallthru
      _
    // Predicated region
    $region34: #{forward.4} parent=1 // pred_check
      _
    $region35: #{forward.4} parent=1 // pred_check_branch
      %42 = sbr.rel (0) target = $region37
    $region36: #{forward.4} parent=1 // pred_region
      _
    $region37: #{forward.4} parent=1 // pred_fallthru
      _
    // Predicated region
    $region38: #{forward.4} parent=1 // pred_check
      _
    $region39: #{forward.4} parent=1 // pred_check_branch
      %44 = sbr.rel (0) target = $region41
    $region40: #{forward.4} parent=1 // pred_region
      _
    $region41: #{forward.4} parent=1 // pred_fallthru
      _
    // Predicated region
    $region42: #{forward.4} parent=1 // pred_check
      _
    $region43: #{forward.4} parent=1 // pred_check_branch
      %46 = sbr.rel (0) target = $region45
    $region44: #{forward.4} parent=1 // pred_region
      %48 = dma.done [#allocation5], 16
    $region45: #{forward.4} parent=1 // pred_fallthru
      _
    %v49 = vld [vmem:[%s0] sm:$0xff]
    %v50 = vld [vmem:[%s0 + $0x8] sm:$0xff]
    %v51 = vld [vmem:[%s0 + $0x10] sm:$0xff]
    %v52 = vld [vmem:[%s0 + $0x18] sm:$0xff]
    %v53 = vld [vmem:[%s0 + $0x20] sm:$0xff]
    %v54 = vld [vmem:[%s0 + $0x28] sm:$0xff]
    %v55 = vld [vmem:[%s0 + $0x30] sm:$0xff]
    %v56 = vld [vmem:[%s0 + $0x38] sm:$0xff]
    %v57 = vld [vmem:[%s2] sm:$0xff]
    %v58 = vld [vmem:[%s2 + $0x8] sm:$0xff]
    %v59 = vld [vmem:[%s2 + $0x10] sm:$0xff]
    %v60 = vld [vmem:[%s2 + $0x18] sm:$0xff]
    %v61 = vld [vmem:[%s2 + $0x20] sm:$0xff]
    %v62 = vld [vmem:[%s2 + $0x28] sm:$0xff]
    %v63 = vld [vmem:[%s2 + $0x30] sm:$0xff]
    %v64 = vld [vmem:[%s2 + $0x38] sm:$0xff]
    %v65 = vld [vmem:[#allocation4] sm:$0x1]
    %v67 = vperm.slane %v65, 0
    %vm69 = vcmask 523264
    %v71 = vsel %vm69, %v49, 0
    %v74 = vsel %vm69, %v50, 0
    %v77 = vsel %vm69, %v51, 0
    %v80 = vsel %vm69, %v52, 0
    %v83 = vsel %vm69, %v53, 0
    %v86 = vsel %vm69, %v54, 0
    %v89 = vsel %vm69, %v55, 0
    %v92 = vsel %vm69, %v56, 0
    %94 = vmatpush.msra.mxu0 0.0
    %95 = vmatpush.msra.mxu0 0.0
    %96 = vmatpush.msra.mxu0 0.0
    %97 = vmatpush.msra.mxu0 0.0
    %98 = vmatpush.msra.mxu0 0.0
    %99 = vmatpush.msra.mxu0 0.0
    %100 = vmatpush.msra.mxu0 0.0
    %101 = vmatpush.msra.mxu0 0.0
    %102 = vmatpush.msra.mxu0 %v64
    %103 = vmatpush.msra.mxu0 %v63
    %104 = vmatpush.msra.mxu0 %v62
    %105 = vmatpush.msra.mxu0 %v61
    %106 = vmatpush.msra.mxu0 %v60
    %107 = vmatpush.msra.mxu0 %v59
    %108 = vmatpush.msra.mxu0 %v58
    %109 = vmatpush.msra.mxu0 %v57
    %110 = vmatmul.f32.gmra.mxu0 %v71
    %v111 = vpop.f32.mrf.mxu0
    %v112 = vadd.f32 %v67, %v111
    %113 = vmatmul.f32.gmra.mxu0 %v74
    %v114 = vpop.f32.mrf.mxu0
    %v115 = vadd.f32 %v67, %v114
    %116 = vmatmul.f32.gmra.mxu0 %v77
    %v117 = vpop.f32.mrf.mxu0
    %v118 = vadd.f32 %v67, %v117
    %119 = vmatmul.f32.gmra.mxu0 %v80
    %v120 = vpop.f32.mrf.mxu0
    %v121 = vadd.f32 %v67, %v120
    %122 = vmatmul.f32.gmra.mxu0 %v83
    %v123 = vpop.f32.mrf.mxu0
    %v124 = vadd.f32 %v67, %v123
    %125 = vmatmul.f32.gmra.mxu0 %v86
    %v126 = vpop.f32.mrf.mxu0
    %v127 = vadd.f32 %v67, %v126
    %128 = vmatmul.f32.gmra.mxu0 %v89
    %v129 = vpop.f32.mrf.mxu0
    %v130 = vadd.f32 %v67, %v129
    %131 = vmatmul.f32.gmra.mxu0 %v92
    %v132 = vpop.f32.mrf.mxu0
    %v133 = vadd.f32 %v67, %v132
    %134 = vdwg.mxu0
    %vm135 = vcmask 785408
    %136 = vst.msk [vmem:[#allocation2] sm:$0xff] %vm135, %v112
    %137 = vst.msk [vmem:[#allocation2 + $0x8] sm:$0xff] %vm135, %v115
    %138 = vst.msk [vmem:[#allocation2 + $0x10] sm:$0xff] %vm135, %v118
    %139 = vst.msk [vmem:[#allocation2 + $0x18] sm:$0xff] %vm135, %v121
    %140 = vst.msk [vmem:[#allocation2 + $0x20] sm:$0xff] %vm135, %v124
    %141 = vst.msk [vmem:[#allocation2 + $0x28] sm:$0xff] %vm135, %v127
    %142 = vst.msk [vmem:[#allocation2 + $0x30] sm:$0xff] %vm135, %v130
    %143 = vst.msk [vmem:[#allocation2 + $0x38] sm:$0xff] %vm135, %v133
    %v144 = vld [vmem:[%s6] sm:$0xff]
    %v145 = vld [vmem:[%s6 + $0x8] sm:$0xff]
    %v146 = vld [vmem:[%s6 + $0x10] sm:$0xff]
    %v147 = vld [vmem:[%s6 + $0x18] sm:$0xff]
    %v148 = vld [vmem:[%s6 + $0x20] sm:$0xff]
    %v149 = vld [vmem:[%s6 + $0x28] sm:$0xff]
    %v150 = vld [vmem:[%s6 + $0x30] sm:$0xff]
    %v151 = vld [vmem:[%s6 + $0x38] sm:$0xff]
    %v152 = vld [vmem:[%s8] sm:$0x1]
    %v154 = vperm.slane %v152, 0
    %156 = vmatpush.msra.mxu0 0.0
    %157 = vmatpush.msra.mxu0 0.0
    %158 = vmatpush.msra.mxu0 0.0
    %159 = vmatpush.msra.mxu0 0.0
    %160 = vmatpush.msra.mxu0 0.0
    %161 = vmatpush.msra.mxu0 0.0
    %162 = vmatpush.msra.mxu0 0.0
    %163 = vmatpush.msra.mxu0 0.0
    %164 = vmatpush.msra.mxu0 %v151
    %165 = vmatpush.msra.mxu0 %v150
    %166 = vmatpush.msra.mxu0 %v149
    %167 = vmatpush.msra.mxu0 %v148
    %168 = vmatpush.msra.mxu0 %v147
    %169 = vmatpush.msra.mxu0 %v146
    %170 = vmatpush.msra.mxu0 %v145
    %171 = vmatpush.msra.mxu0 %v144
    %172 = vmatmul.f32.gmra.mxu0 %v71
    %v173 = vpop.f32.mrf.mxu0
    %v174 = vadd.f32 %v154, %v173
    %175 = vmatmul.f32.gmra.mxu0 %v74
    %v176 = vpop.f32.mrf.mxu0
    %v177 = vadd.f32 %v154, %v176
    %178 = vmatmul.f32.gmra.mxu0 %v77
    %v179 = vpop.f32.mrf.mxu0
    %v180 = vadd.f32 %v154, %v179
    %181 = vmatmul.f32.gmra.mxu0 %v80
    %v182 = vpop.f32.mrf.mxu0
    %v183 = vadd.f32 %v154, %v182
    %184 = vmatmul.f32.gmra.mxu0 %v83
    %v185 = vpop.f32.mrf.mxu0
    %v186 = vadd.f32 %v154, %v185
    %187 = vmatmul.f32.gmra.mxu0 %v86
    %v188 = vpop.f32.mrf.mxu0
    %v189 = vadd.f32 %v154, %v188
    %190 = vmatmul.f32.gmra.mxu0 %v89
    %v191 = vpop.f32.mrf.mxu0
    %v192 = vadd.f32 %v154, %v191
    %193 = vmatmul.f32.gmra.mxu0 %v92
    %v194 = vpop.f32.mrf.mxu0
    %v195 = vadd.f32 %v154, %v194
    %196 = vdwg.mxu0
    %197 = vst.msk [vmem:[#allocation3] sm:$0xff] %vm135, %v174
    %198 = vst.msk [vmem:[#allocation3 + $0x8] sm:$0xff] %vm135, %v177
    %199 = vst.msk [vmem:[#allocation3 + $0x10] sm:$0xff] %vm135, %v180
    %200 = vst.msk [vmem:[#allocation3 + $0x18] sm:$0xff] %vm135, %v183
    %201 = vst.msk [vmem:[#allocation3 + $0x20] sm:$0xff] %vm135, %v186
    %202 = vst.msk [vmem:[#allocation3 + $0x28] sm:$0xff] %vm135, %v189
    %203 = vst.msk [vmem:[#allocation3 + $0x30] sm:$0xff] %vm135, %v192
    %204 = vst.msk [vmem:[#allocation3 + $0x38] sm:$0xff] %vm135, %v195
    %v205 = vld [vmem:[%s3] sm:$0xff]
    %v206 = vld [vmem:[%s3 + $0x8] sm:$0xff]
    %v207 = vld [vmem:[%s3 + $0x10] sm:$0xff]
    %v208 = vld [vmem:[%s3 + $0x18] sm:$0xff]
    %v209 = vld [vmem:[%s7] sm:$0xff]
    %v210 = vld [vmem:[%s7 + $0x8] sm:$0xff]
    %v211 = vld [vmem:[%s7 + $0x10] sm:$0xff]
    %v212 = vld [vmem:[%s7 + $0x18] sm:$0xff]
    %v213 = vld [vmem:[%s5] sm:$0x1]
    %v215 = vperm.slane %v213, 0
    %v216 = vld [vmem:[%s9] sm:$0x1]
    %v218 = vperm.slane %v216, 0
    %v219 = vld [vmem:[%s1] sm:$0xff]
    %v220 = vld [vmem:[#allocation2] sm:$0xff]
    %vm221 = vcmask 261120
    %v223 = vsel %vm221, 0.0, 0
    %225 = vmatpush.msra.mxu0 0.0
    %226 = vmatpush.msra.mxu0 0.0
    %227 = vmatpush.msra.mxu0 0.0
    %228 = vmatpush.msra.mxu0 0.0
    %229 = vmatpush.msra.mxu0 0.0
    %230 = vmatpush.msra.mxu0 0.0
    %231 = vmatpush.msra.mxu0 0.0
    %232 = vmatpush.msra.mxu0 0.0
    %233 = vmatpush.msra.mxu0 0.0
    %234 = vmatpush.msra.mxu0 0.0
    %235 = vmatpush.msra.mxu0 0.0
    %236 = vmatpush.msra.mxu0 0.0
    %237 = vmatpush.msra.mxu0 %v208
    %238 = vmatpush.msra.mxu0 %v207
    %239 = vmatpush.msra.mxu0 %v206
    %240 = vmatpush.msra.mxu0 %v205
    %241 = vmatmul.f32.gmra.mxu0 %v223
    %v242 = vpop.f32.mrf.mxu0
    %v243 = vadd.f32 0.0, %v242
    %244 = vdwg.mxu0
    %v245 = vadd.f32 %v220, %v243
    %v246 = vxor.u32 %v245, 2147483648
    %v247 = vmul.f32 %v246, 1.442695
    %v248 = vpow.pop %v247
    %v249 = vadd.f32 %v248, 1.0
    %v250 = vrcp.pop %v249
    %v251 = vmul.f32 %v249, %v250
    %v252 = vsub.f32 1.0, %v251
    %v253 = vmul.f32 %v250, %v252
    %v254 = vadd.f32 %v250, %v253
    %vm255 = vweird.f32 %v249
    %vm256 = vweird.f32 %v250
    %vm257 = vmor %vm255, %vm256
    %v258 = vsel %vm257, %v250, %v254
    %v259 = vand.u32 2147483647, %v249
    %vm260 = vcmp.eq.f32.partialorder %v259, 8.507059e+37
    %v261 = vand.u32 %v249, 2147483648
    %v262 = vor.u32 1.1754944e-38, %v261
    %v263 = vsel %vm260, %v262, %v258
    %v264 = vmul.f32 1.0, %v263
    %265 = vrot.lane.b32.xlu0 %v215, 64
    %v266 = vpop.permute.xlu0 %265
    %v268 = vadd.f32 %v243, %v266
    %270 = vrot.lane.b32.xlu0 %v268, 64
    %v271 = vpop.permute.xlu0 %270
    %v273 = vmul.f32 %v264, %v271
    %275 = vrot.lane.b32.xlu0 %v273, 64
    %v276 = vpop.permute.xlu0 %275
    %v278 = vadd.f32 %v220, %v276
    %v279 = vtanh.pop %v278
    %v280 = vsub.f32 1.0, %v264
    %282 = vrot.lane.b32.xlu0 %v279, 96
    %v283 = vpop.permute.xlu0 %282
    %v285 = vmul.f32 %v280, %v283
    %v286 = vmul.f32 %v264, 0.0
    %v287 = vadd.f32 %v285, %v286
    %vm288 = vcmp.gt.s32.totalorder %v219, 0
    %v289 = vsel %vm288, 1, 0
    %290 = vset.pattern.permute.xlu0 0
    %291 = vperm.xlu0 %290, %v289
    %v292 = vpop.permute.xlu0 %291
    %vm293 = vcmp.eq.s32.totalorder %v292, 1
    %v294 = vsel %vm293, %v287, 0.0
    %s295 = scalar_lea.vmem [#allocation3], 56
    %v296 = vld [vmem:[%s295] sm:$0xff]
    %297 = vmatpush.msra.mxu0 0.0
    %298 = vmatpush.msra.mxu0 0.0
    %299 = vmatpush.msra.mxu0 0.0
    %300 = vmatpush.msra.mxu0 0.0
    %301 = vmatpush.msra.mxu0 0.0
    %302 = vmatpush.msra.mxu0 0.0
    %303 = vmatpush.msra.mxu0 0.0
    %304 = vmatpush.msra.mxu0 0.0
    %305 = vmatpush.msra.mxu0 0.0
    %306 = vmatpush.msra.mxu0 0.0
    %307 = vmatpush.msra.mxu0 0.0
    %308 = vmatpush.msra.mxu0 0.0
    %309 = vmatpush.msra.mxu0 %v212
    %310 = vmatpush.msra.mxu0 %v211
    %311 = vmatpush.msra.mxu0 %v210
    %312 = vmatpush.msra.mxu0 %v209
    %313 = vmatmul.f32.gmra.mxu0 %v223
    %v314 = vpop.f32.mrf.mxu0
    %v315 = vadd.f32 0.0, %v314
    %316 = vdwg.mxu0
    %v317 = vadd.f32 %v296, %v315
    %v318 = vxor.u32 %v317, 2147483648
    %v319 = vmul.f32 %v318, 1.442695
    %v320 = vpow.pop %v319
    %v321 = vadd.f32 %v320, 1.0
    %v322 = vrcp.pop %v321
    %v323 = vmul.f32 %v321, %v322
    %v324 = vsub.f32 1.0, %v323
    %v325 = vmul.f32 %v322, %v324
    %v326 = vadd.f32 %v322, %v325
    %vm327 = vweird.f32 %v321
    %vm328 = vweird.f32 %v322
    %vm329 = vmor %vm327, %vm328
    %v330 = vsel %vm329, %v322, %v326
    %v331 = vand.u32 2147483647, %v321
    %vm332 = vcmp.eq.f32.partialorder %v331, 8.507059e+37
    %v333 = vand.u32 %v321, 2147483648
    %v334 = vor.u32 1.1754944e-38, %v333
    %v335 = vsel %vm332, %v334, %v330
    %v336 = vmul.f32 1.0, %v335
    %337 = vrot.lane.b32.xlu0 %v218, 64
    %v338 = vpop.permute.xlu0 %337
    %v340 = vadd.f32 %v315, %v338
    %342 = vrot.lane.b32.xlu0 %v340, 64
    %v343 = vpop.permute.xlu0 %342
    %v345 = vmul.f32 %v336, %v343
    %347 = vrot.lane.b32.xlu0 %v345, 64
    %v348 = vpop.permute.xlu0 %347
    %v350 = vadd.f32 %v296, %v348
    %v351 = vtanh.pop %v350
    %v352 = vsub.f32 1.0, %v336
    %354 = vrot.lane.b32.xlu0 %v351, 96
    %v355 = vpop.permute.xlu0 %354
    %v357 = vmul.f32 %v352, %v355
    %v358 = vmul.f32 %v336, 0.0
    %v359 = vadd.f32 %v357, %v358
    %vm360 = vcmp.gt.s32.totalorder %v219, 7
    %v361 = vsel %vm360, 1, 0
    %362 = vset.pattern.permute.xlu0 0
    %363 = vperm.xlu0 %362, %v361
    %v364 = vpop.permute.xlu0 %363
    %vm365 = vcmp.eq.s32.totalorder %v364, 1
    %v366 = vsel %vm365, %v359, 0.0
    %s367 = scalar_lea.vmem [#allocation2], 8
    %v368 = vld [vmem:[%s367] sm:$0xff]
    %370 = vrot.lane.b32.xlu0 %v294, 96
    %v371 = vpop.permute.xlu0 %370
    %v372 = vsel %vm221, %v371, 0
    %374 = vmatpush.msra.mxu0 0.0
    %375 = vmatpush.msra.mxu0 0.0
    %376 = vmatpush.msra.mxu0 0.0
    %377 = vmatpush.msra.mxu0 0.0
    %378 = vmatpush.msra.mxu0 0.0
    %379 = vmatpush.msra.mxu0 0.0
    %380 = vmatpush.msra.mxu0 0.0
    %381 = vmatpush.msra.mxu0 0.0
    %382 = vmatpush.msra.mxu0 0.0
    %383 = vmatpush.msra.mxu0 0.0
    %384 = vmatpush.msra.mxu0 0.0
    %385 = vmatpush.msra.mxu0 0.0
    %386 = vmatpush.msra.mxu0 %v208
    %387 = vmatpush.msra.mxu0 %v207
    %388 = vmatpush.msra.mxu0 %v206
    %389 = vmatpush.msra.mxu0 %v205
    %390 = vmatmul.f32.gmra.mxu0 %v372
    %v391 = vpop.f32.mrf.mxu0
    %v392 = vadd.f32 0.0, %v391
    %393 = vdwg.mxu0
    %v394 = vadd.f32 %v368, %v392
    %v395 = vxor.u32 %v394, 2147483648
    %v396 = vmul.f32 %v395, 1.442695
    %v397 = vpow.pop %v396
    %v398 = vadd.f32 %v397, 1.0
    %v399 = vrcp.pop %v398
    %v400 = vmul.f32 %v398, %v399
    %v401 = vsub.f32 1.0, %v400
    %v402 = vmul.f32 %v399, %v401
    %v403 = vadd.f32 %v399, %v402
    %vm404 = vweird.f32 %v398
    %vm405 = vweird.f32 %v399
    %vm406 = vmor %vm404, %vm405
    %v407 = vsel %vm406, %v399, %v403
    %v408 = vand.u32 2147483647, %v398
    %vm409 = vcmp.eq.f32.partialorder %v408, 8.507059e+37
    %v410 = vand.u32 %v398, 2147483648
    %v411 = vor.u32 1.1754944e-38, %v410
    %v412 = vsel %vm409, %v411, %v407
    %v413 = vmul.f32 1.0, %v412
    %v414 = vadd.f32 %v392, %v266
    %416 = vrot.lane.b32.xlu0 %v414, 64
    %v417 = vpop.permute.xlu0 %416
    %v419 = vmul.f32 %v413, %v417
    %421 = vrot.lane.b32.xlu0 %v419, 64
    %v422 = vpop.permute.xlu0 %421
    %v424 = vadd.f32 %v368, %v422
    %v425 = vtanh.pop %v424
    %v426 = vsub.f32 1.0, %v413
    %428 = vrot.lane.b32.xlu0 %v425, 96
    %v429 = vpop.permute.xlu0 %428
    %v431 = vmul.f32 %v426, %v429
    %v432 = vmul.f32 %v413, %v294
    %v433 = vadd.f32 %v431, %v432
    %vm434 = vcmp.gt.s32.totalorder %v219, 1
    %v435 = vsel %vm434, 1, 0
    %436 = vset.pattern.permute.xlu0 0
    %437 = vperm.xlu0 %436, %v435
    %v438 = vpop.permute.xlu0 %437
    %vm439 = vcmp.eq.s32.totalorder %v438, 1
    %v440 = vsel %vm439, %v433, %v294
    %s441 = scalar_lea.vmem [#allocation3], 48
    %v442 = vld [vmem:[%s441] sm:$0xff]
    %444 = vrot.lane.b32.xlu0 %v366, 96
    %v445 = vpop.permute.xlu0 %444
    %v446 = vsel %vm221, %v445, 0
    %448 = vmatpush.msra.mxu0 0.0
    %449 = vmatpush.msra.mxu0 0.0
    %450 = vmatpush.msra.mxu0 0.0
    %451 = vmatpush.msra.mxu0 0.0
    %452 = vmatpush.msra.mxu0 0.0
    %453 = vmatpush.msra.mxu0 0.0
    %454 = vmatpush.msra.mxu0 0.0
    %455 = vmatpush.msra.mxu0 0.0
    %456 = vmatpush.msra.mxu0 0.0
    %457 = vmatpush.msra.mxu0 0.0
    %458 = vmatpush.msra.mxu0 0.0
    %459 = vmatpush.msra.mxu0 0.0
    %460 = vmatpush.msra.mxu0 %v212
    %461 = vmatpush.msra.mxu0 %v211
    %462 = vmatpush.msra.mxu0 %v210
    %463 = vmatpush.msra.mxu0 %v209
    %464 = vmatmul.f32.gmra.mxu0 %v446
    %v465 = vpop.f32.mrf.mxu0
    %v466 = vadd.f32 0.0, %v465
    %467 = vdwg.mxu0
    %v468 = vadd.f32 %v442, %v466
    %v469 = vxor.u32 %v468, 2147483648
    %v470 = vmul.f32 %v469, 1.442695
    %v471 = vpow.pop %v470
    %v472 = vadd.f32 %v471, 1.0
    %v473 = vrcp.pop %v472
    %v474 = vmul.f32 %v472, %v473
    %v475 = vsub.f32 1.0, %v474
    %v476 = vmul.f32 %v473, %v475
    %v477 = vadd.f32 %v473, %v476
    %vm478 = vweird.f32 %v472
    %vm479 = vweird.f32 %v473
    %vm480 = vmor %vm478, %vm479
    %v481 = vsel %vm480, %v473, %v477
    %v482 = vand.u32 2147483647, %v472
    %vm483 = vcmp.eq.f32.partialorder %v482, 8.507059e+37
    %v484 = vand.u32 %v472, 2147483648
    %v485 = vor.u32 1.1754944e-38, %v484
    %v486 = vsel %vm483, %v485, %v481
    %v487 = vmul.f32 1.0, %v486
    %v488 = vadd.f32 %v466, %v338
    %490 = vrot.lane.b32.xlu0 %v488, 64
    %v491 = vpop.permute.xlu0 %490
    %v493 = vmul.f32 %v487, %v491
    %495 = vrot.lane.b32.xlu0 %v493, 64
    %v496 = vpop.permute.xlu0 %495
    %v498 = vadd.f32 %v442, %v496
    %v499 = vtanh.pop %v498
    %v500 = vsub.f32 1.0, %v487
    %502 = vrot.lane.b32.xlu0 %v499, 96
    %v503 = vpop.permute.xlu0 %502
    %v505 = vmul.f32 %v500, %v503
    %v506 = vmul.f32 %v487, %v366
    %v507 = vadd.f32 %v505, %v506
    %vm508 = vcmp.gt.s32.totalorder %v219, 6
    %v509 = vsel %vm508, 1, 0
    %510 = vset.pattern.permute.xlu0 0
    %511 = vperm.xlu0 %510, %v509
    %v512 = vpop.permute.xlu0 %511
    %vm513 = vcmp.eq.s32.totalorder %v512, 1
    %v514 = vsel %vm513, %v507, %v366
    %s515 = scalar_lea.vmem [#allocation2], 16
    %v516 = vld [vmem:[%s515] sm:$0xff]
    %518 = vrot.lane.b32.xlu0 %v440, 96
    %v519 = vpop.permute.xlu0 %518
    %v520 = vsel %vm221, %v519, 0
    %522 = vmatpush.msra.mxu0 0.0
    %523 = vmatpush.msra.mxu0 0.0
    %524 = vmatpush.msra.mxu0 0.0
    %525 = vmatpush.msra.mxu0 0.0
    %526 = vmatpush.msra.mxu0 0.0
    %527 = vmatpush.msra.mxu0 0.0
    %528 = vmatpush.msra.mxu0 0.0
    %529 = vmatpush.msra.mxu0 0.0
    %530 = vmatpush.msra.mxu0 0.0
    %531 = vmatpush.msra.mxu0 0.0
    %532 = vmatpush.msra.mxu0 0.0
    %533 = vmatpush.msra.mxu0 0.0
    %534 = vmatpush.msra.mxu0 %v208
    %535 = vmatpush.msra.mxu0 %v207
    %536 = vmatpush.msra.mxu0 %v206
    %537 = vmatpush.msra.mxu0 %v205
    %538 = vmatmul.f32.gmra.mxu0 %v520
    %v539 = vpop.f32.mrf.mxu0
    %v540 = vadd.f32 0.0, %v539
    %541 = vdwg.mxu0
    %v542 = vadd.f32 %v516, %v540
    %v543 = vxor.u32 %v542, 2147483648
    %v544 = vmul.f32 %v543, 1.442695
    %v545 = vpow.pop %v544
    %v546 = vadd.f32 %v545, 1.0
    %v547 = vrcp.pop %v546
    %v548 = vmul.f32 %v546, %v547
    %v549 = vsub.f32 1.0, %v548
    %v550 = vmul.f32 %v547, %v549
    %v551 = vadd.f32 %v547, %v550
    %vm552 = vweird.f32 %v546
    %vm553 = vweird.f32 %v547
    %vm554 = vmor %vm552, %vm553
    %v555 = vsel %vm554, %v547, %v551
    %v556 = vand.u32 2147483647, %v546
    %vm557 = vcmp.eq.f32.partialorder %v556, 8.507059e+37
    %v558 = vand.u32 %v546, 2147483648
    %v559 = vor.u32 1.1754944e-38, %v558
    %v560 = vsel %vm557, %v559, %v555
    %v561 = vmul.f32 1.0, %v560
    %v562 = vadd.f32 %v540, %v266
    %564 = vrot.lane.b32.xlu0 %v562, 64
    %v565 = vpop.permute.xlu0 %564
    %v567 = vmul.f32 %v561, %v565
    %569 = vrot.lane.b32.xlu0 %v567, 64
    %v570 = vpop.permute.xlu0 %569
    %v572 = vadd.f32 %v516, %v570
    %v573 = vtanh.pop %v572
    %v574 = vsub.f32 1.0, %v561
    %576 = vrot.lane.b32.xlu0 %v573, 96
    %v577 = vpop.permute.xlu0 %576
    %v579 = vmul.f32 %v574, %v577
    %v580 = vmul.f32 %v561, %v440
    %v581 = vadd.f32 %v579, %v580
    %vm582 = vcmp.gt.s32.totalorder %v219, 2
    %v583 = vsel %vm582, 1, 0
    %584 = vset.pattern.permute.xlu0 0
    %585 = vperm.xlu0 %584, %v583
    %v586 = vpop.permute.xlu0 %585
    %vm587 = vcmp.eq.s32.totalorder %v586, 1
    %v588 = vsel %vm587, %v581, %v440
    %s589 = scalar_lea.vmem [#allocation3], 40
    %v590 = vld [vmem:[%s589] sm:$0xff]
    %592 = vrot.lane.b32.xlu0 %v514, 96
    %v593 = vpop.permute.xlu0 %592
    %v594 = vsel %vm221, %v593, 0
    %596 = vmatpush.msra.mxu0 0.0
    %597 = vmatpush.msra.mxu0 0.0
    %598 = vmatpush.msra.mxu0 0.0
    %599 = vmatpush.msra.mxu0 0.0
    %600 = vmatpush.msra.mxu0 0.0
    %601 = vmatpush.msra.mxu0 0.0
    %602 = vmatpush.msra.mxu0 0.0
    %603 = vmatpush.msra.mxu0 0.0
    %604 = vmatpush.msra.mxu0 0.0
    %605 = vmatpush.msra.mxu0 0.0
    %606 = vmatpush.msra.mxu0 0.0
    %607 = vmatpush.msra.mxu0 0.0
    %608 = vmatpush.msra.mxu0 %v212
    %609 = vmatpush.msra.mxu0 %v211
    %610 = vmatpush.msra.mxu0 %v210
    %611 = vmatpush.msra.mxu0 %v209
    %612 = vmatmul.f32.gmra.mxu0 %v594
    %v613 = vpop.f32.mrf.mxu0
    %v614 = vadd.f32 0.0, %v613
    %615 = vdwg.mxu0
    %v616 = vadd.f32 %v590, %v614
    %v617 = vxor.u32 %v616, 2147483648
    %v618 = vmul.f32 %v617, 1.442695
    %v619 = vpow.pop %v618
    %v620 = vadd.f32 %v619, 1.0
    %v621 = vrcp.pop %v620
    %v622 = vmul.f32 %v620, %v621
    %v623 = vsub.f32 1.0, %v622
    %v624 = vmul.f32 %v621, %v623
    %v625 = vadd.f32 %v621, %v624
    %vm626 = vweird.f32 %v620
    %vm627 = vweird.f32 %v621
    %vm628 = vmor %vm626, %vm627
    %v629 = vsel %vm628, %v621, %v625
    %v630 = vand.u32 2147483647, %v620
    %vm631 = vcmp.eq.f32.partialorder %v630, 8.507059e+37
    %v632 = vand.u32 %v620, 2147483648
    %v633 = vor.u32 1.1754944e-38, %v632
    %v634 = vsel %vm631, %v633, %v629
    %v635 = vmul.f32 1.0, %v634
    %v636 = vadd.f32 %v614, %v338
    %638 = vrot.lane.b32.xlu0 %v636, 64
    %v639 = vpop.permute.xlu0 %638
    %v641 = vmul.f32 %v635, %v639
    %643 = vrot.lane.b32.xlu0 %v641, 64
    %v644 = vpop.permute.xlu0 %643
    %v646 = vadd.f32 %v590, %v644
    %v647 = vtanh.pop %v646
    %v648 = vsub.f32 1.0, %v635
    %650 = vrot.lane.b32.xlu0 %v647, 96
    %v651 = vpop.permute.xlu0 %650
    %v653 = vmul.f32 %v648, %v651
    %v654 = vmul.f32 %v635, %v514
    %v655 = vadd.f32 %v653, %v654
    %vm656 = vcmp.gt.s32.totalorder %v219, 5
    %v657 = vsel %vm656, 1, 0
    %658 = vset.pattern.permute.xlu0 0
    %659 = vperm.xlu0 %658, %v657
    %v660 = vpop.permute.xlu0 %659
    %vm661 = vcmp.eq.s32.totalorder %v660, 1
    %v662 = vsel %vm661, %v655, %v514
    %s663 = scalar_lea.vmem [#allocation2], 24
    %v664 = vld [vmem:[%s663] sm:$0xff]
    %666 = vrot.lane.b32.xlu0 %v588, 96
    %v667 = vpop.permute.xlu0 %666
    %v668 = vsel %vm221, %v667, 0
    %670 = vmatpush.msra.mxu0 0.0
    %671 = vmatpush.msra.mxu0 0.0
    %672 = vmatpush.msra.mxu0 0.0
    %673 = vmatpush.msra.mxu0 0.0
    %674 = vmatpush.msra.mxu0 0.0
    %675 = vmatpush.msra.mxu0 0.0
    %676 = vmatpush.msra.mxu0 0.0
    %677 = vmatpush.msra.mxu0 0.0
    %678 = vmatpush.msra.mxu0 0.0
    %679 = vmatpush.msra.mxu0 0.0
    %680 = vmatpush.msra.mxu0 0.0
    %681 = vmatpush.msra.mxu0 0.0
    %682 = vmatpush.msra.mxu0 %v208
    %683 = vmatpush.msra.mxu0 %v207
    %684 = vmatpush.msra.mxu0 %v206
    %685 = vmatpush.msra.mxu0 %v205
    %686 = vmatmul.f32.gmra.mxu0 %v668
    %v687 = vpop.f32.mrf.mxu0
    %v688 = vadd.f32 0.0, %v687
    %689 = vdwg.mxu0
    %v690 = vadd.f32 %v664, %v688
    %v691 = vxor.u32 %v690, 2147483648
    %v692 = vmul.f32 %v691, 1.442695
    %v693 = vpow.pop %v692
    %v694 = vadd.f32 %v693, 1.0
    %v695 = vrcp.pop %v694
    %v696 = vmul.f32 %v694, %v695
    %v697 = vsub.f32 1.0, %v696
    %v698 = vmul.f32 %v695, %v697
    %v699 = vadd.f32 %v695, %v698
    %vm700 = vweird.f32 %v694
    %vm701 = vweird.f32 %v695
    %vm702 = vmor %vm700, %vm701
    %v703 = vsel %vm702, %v695, %v699
    %v704 = vand.u32 2147483647, %v694
    %vm705 = vcmp.eq.f32.partialorder %v704, 8.507059e+37
    %v706 = vand.u32 %v694, 2147483648
    %v707 = vor.u32 1.1754944e-38, %v706
    %v708 = vsel %vm705, %v707, %v703
    %v709 = vmul.f32 1.0, %v708
    %v710 = vadd.f32 %v688, %v266
    %712 = vrot.lane.b32.xlu0 %v710, 64
    %v713 = vpop.permute.xlu0 %712
    %v715 = vmul.f32 %v709, %v713
    %717 = vrot.lane.b32.xlu0 %v715, 64
    %v718 = vpop.permute.xlu0 %717
    %v720 = vadd.f32 %v664, %v718
    %v721 = vtanh.pop %v720
    %v722 = vsub.f32 1.0, %v709
    %724 = vrot.lane.b32.xlu0 %v721, 96
    %v725 = vpop.permute.xlu0 %724
    %v727 = vmul.f32 %v722, %v725
    %v728 = vmul.f32 %v709, %v588
    %v729 = vadd.f32 %v727, %v728
    %vm730 = vcmp.gt.s32.totalorder %v219, 3
    %v731 = vsel %vm730, 1, 0
    %732 = vset.pattern.permute.xlu0 0
    %733 = vperm.xlu0 %732, %v731
    %v734 = vpop.permute.xlu0 %733
    %vm735 = vcmp.eq.s32.totalorder %v734, 1
    %v736 = vsel %vm735, %v729, %v588
    %s737 = scalar_lea.vmem [#allocation3], 32
    %v738 = vld [vmem:[%s737] sm:$0xff]
    %740 = vrot.lane.b32.xlu0 %v662, 96
    %v741 = vpop.permute.xlu0 %740
    %v742 = vsel %vm221, %v741, 0
    %744 = vmatpush.msra.mxu0 0.0
    %745 = vmatpush.msra.mxu0 0.0
    %746 = vmatpush.msra.mxu0 0.0
    %747 = vmatpush.msra.mxu0 0.0
    %748 = vmatpush.msra.mxu0 0.0
    %749 = vmatpush.msra.mxu0 0.0
    %750 = vmatpush.msra.mxu0 0.0
    %751 = vmatpush.msra.mxu0 0.0
    %752 = vmatpush.msra.mxu0 0.0
    %753 = vmatpush.msra.mxu0 0.0
    %754 = vmatpush.msra.mxu0 0.0
    %755 = vmatpush.msra.mxu0 0.0
    %756 = vmatpush.msra.mxu0 %v212
    %757 = vmatpush.msra.mxu0 %v211
    %758 = vmatpush.msra.mxu0 %v210
    %759 = vmatpush.msra.mxu0 %v209
    %760 = vmatmul.f32.gmra.mxu0 %v742
    %v761 = vpop.f32.mrf.mxu0
    %v762 = vadd.f32 0.0, %v761
    %763 = vdwg.mxu0
    %v764 = vadd.f32 %v738, %v762
    %v765 = vxor.u32 %v764, 2147483648
    %v766 = vmul.f32 %v765, 1.442695
    %v767 = vpow.pop %v766
    %v768 = vadd.f32 %v767, 1.0
    %v769 = vrcp.pop %v768
    %v770 = vmul.f32 %v768, %v769
    %v771 = vsub.f32 1.0, %v770
    %v772 = vmul.f32 %v769, %v771
    %v773 = vadd.f32 %v769, %v772
    %vm774 = vweird.f32 %v768
    %vm775 = vweird.f32 %v769
    %vm776 = vmor %vm774, %vm775
    %v777 = vsel %vm776, %v769, %v773
    %v778 = vand.u32 2147483647, %v768
    %vm779 = vcmp.eq.f32.partialorder %v778, 8.507059e+37
    %v780 = vand.u32 %v768, 2147483648
    %v781 = vor.u32 1.1754944e-38, %v780
    %v782 = vsel %vm779, %v781, %v777
    %v783 = vmul.f32 1.0, %v782
    %v784 = vadd.f32 %v762, %v338
    %786 = vrot.lane.b32.xlu0 %v784, 64
    %v787 = vpop.permute.xlu0 %786
    %v789 = vmul.f32 %v783, %v787
    %791 = vrot.lane.b32.xlu0 %v789, 64
    %v792 = vpop.permute.xlu0 %791
    %v794 = vadd.f32 %v738, %v792
    %v795 = vtanh.pop %v794
    %v796 = vsub.f32 1.0, %v783
    %798 = vrot.lane.b32.xlu0 %v795, 96
    %v799 = vpop.permute.xlu0 %798
    %v801 = vmul.f32 %v796, %v799
    %v802 = vmul.f32 %v783, %v662
    %v803 = vadd.f32 %v801, %v802
    %vm804 = vcmp.gt.s32.totalorder %v219, 4
    %v805 = vsel %vm804, 1, 0
    %806 = vset.pattern.permute.xlu0 0
    %807 = vperm.xlu0 %806, %v805
    %v808 = vpop.permute.xlu0 %807
    %vm809 = vcmp.eq.s32.totalorder %v808, 1
    %v810 = vsel %vm809, %v803, %v662
    %s811 = scalar_lea.vmem [#allocation2], 32
    %v812 = vld [vmem:[%s811] sm:$0xff]
    %814 = vrot.lane.b32.xlu0 %v736, 96
    %v815 = vpop.permute.xlu0 %814
    %v816 = vsel %vm221, %v815, 0
    %818 = vmatpush.msra.mxu0 0.0
    %819 = vmatpush.msra.mxu0 0.0
    %820 = vmatpush.msra.mxu0 0.0
    %821 = vmatpush.msra.mxu0 0.0
    %822 = vmatpush.msra.mxu0 0.0
    %823 = vmatpush.msra.mxu0 0.0
    %824 = vmatpush.msra.mxu0 0.0
    %825 = vmatpush.msra.mxu0 0.0
    %826 = vmatpush.msra.mxu0 0.0
    %827 = vmatpush.msra.mxu0 0.0
    %828 = vmatpush.msra.mxu0 0.0
    %829 = vmatpush.msra.mxu0 0.0
    %830 = vmatpush.msra.mxu0 %v208
    %831 = vmatpush.msra.mxu0 %v207
    %832 = vmatpush.msra.mxu0 %v206
    %833 = vmatpush.msra.mxu0 %v205
    %834 = vmatmul.f32.gmra.mxu0 %v816
    %v835 = vpop.f32.mrf.mxu0
    %v836 = vadd.f32 0.0, %v835
    %837 = vdwg.mxu0
    %v838 = vadd.f32 %v812, %v836
    %v839 = vxor.u32 %v838, 2147483648
    %v840 = vmul.f32 %v839, 1.442695
    %v841 = vpow.pop %v840
    %v842 = vadd.f32 %v841, 1.0
    %v843 = vrcp.pop %v842
    %v844 = vmul.f32 %v842, %v843
    %v845 = vsub.f32 1.0, %v844
    %v846 = vmul.f32 %v843, %v845
    %v847 = vadd.f32 %v843, %v846
    %vm848 = vweird.f32 %v842
    %vm849 = vweird.f32 %v843
    %vm850 = vmor %vm848, %vm849
    %v851 = vsel %vm850, %v843, %v847
    %v852 = vand.u32 2147483647, %v842
    %vm853 = vcmp.eq.f32.partialorder %v852, 8.507059e+37
    %v854 = vand.u32 %v842, 2147483648
    %v855 = vor.u32 1.1754944e-38, %v854
    %v856 = vsel %vm853, %v855, %v851
    %v857 = vmul.f32 1.0, %v856
    %v858 = vadd.f32 %v836, %v266
    %860 = vrot.lane.b32.xlu0 %v858, 64
    %v861 = vpop.permute.xlu0 %860
    %v863 = vmul.f32 %v857, %v861
    %865 = vrot.lane.b32.xlu0 %v863, 64
    %v866 = vpop.permute.xlu0 %865
    %v868 = vadd.f32 %v812, %v866
    %v869 = vtanh.pop %v868
    %v870 = vsub.f32 1.0, %v857
    %872 = vrot.lane.b32.xlu0 %v869, 96
    %v873 = vpop.permute.xlu0 %872
    %v875 = vmul.f32 %v870, %v873
    %v876 = vmul.f32 %v857, %v736
    %v877 = vadd.f32 %v875, %v876
    %v878 = vsel %vm809, %v877, %v736
    %s879 = scalar_lea.vmem [#allocation3], 24
    %v880 = vld [vmem:[%s879] sm:$0xff]
    %882 = vrot.lane.b32.xlu0 %v810, 96
    %v883 = vpop.permute.xlu0 %882
    %v884 = vsel %vm221, %v883, 0
    %886 = vmatpush.msra.mxu0 0.0
    %887 = vmatpush.msra.mxu0 0.0
    %888 = vmatpush.msra.mxu0 0.0
    %889 = vmatpush.msra.mxu0 0.0
    %890 = vmatpush.msra.mxu0 0.0
    %891 = vmatpush.msra.mxu0 0.0
    %892 = vmatpush.msra.mxu0 0.0
    %893 = vmatpush.msra.mxu0 0.0
    %894 = vmatpush.msra.mxu0 0.0
    %895 = vmatpush.msra.mxu0 0.0
    %896 = vmatpush.msra.mxu0 0.0
    %897 = vmatpush.msra.mxu0 0.0
    %898 = vmatpush.msra.mxu0 %v212
    %899 = vmatpush.msra.mxu0 %v211
    %900 = vmatpush.msra.mxu0 %v210
    %901 = vmatpush.msra.mxu0 %v209
    %902 = vmatmul.f32.gmra.mxu0 %v884
    %v903 = vpop.f32.mrf.mxu0
    %v904 = vadd.f32 0.0, %v903
    %905 = vdwg.mxu0
    %v906 = vadd.f32 %v880, %v904
    %v907 = vxor.u32 %v906, 2147483648
    %v908 = vmul.f32 %v907, 1.442695
    %v909 = vpow.pop %v908
    %v910 = vadd.f32 %v909, 1.0
    %v911 = vrcp.pop %v910
    %v912 = vmul.f32 %v910, %v911
    %v913 = vsub.f32 1.0, %v912
    %v914 = vmul.f32 %v911, %v913
    %v915 = vadd.f32 %v911, %v914
    %vm916 = vweird.f32 %v910
    %vm917 = vweird.f32 %v911
    %vm918 = vmor %vm916, %vm917
    %v919 = vsel %vm918, %v911, %v915
    %v920 = vand.u32 2147483647, %v910
    %vm921 = vcmp.eq.f32.partialorder %v920, 8.507059e+37
    %v922 = vand.u32 %v910, 2147483648
    %v923 = vor.u32 1.1754944e-38, %v922
    %v924 = vsel %vm921, %v923, %v919
    %v925 = vmul.f32 1.0, %v924
    %v926 = vadd.f32 %v904, %v338
    %928 = vrot.lane.b32.xlu0 %v926, 64
    %v929 = vpop.permute.xlu0 %928
    %v931 = vmul.f32 %v925, %v929
    %933 = vrot.lane.b32.xlu0 %v931, 64
    %v934 = vpop.permute.xlu0 %933
    %v936 = vadd.f32 %v880, %v934
    %v937 = vtanh.pop %v936
    %v938 = vsub.f32 1.0, %v925
    %940 = vrot.lane.b32.xlu0 %v937, 96
    %v941 = vpop.permute.xlu0 %940
    %v943 = vmul.f32 %v938, %v941
    %v944 = vmul.f32 %v925, %v810
    %v945 = vadd.f32 %v943, %v944
    %v946 = vsel %vm735, %v945, %v810
    %s947 = scalar_lea.vmem [#allocation2], 40
    %v948 = vld [vmem:[%s947] sm:$0xff]
    %950 = vrot.lane.b32.xlu0 %v878, 96
    %v951 = vpop.permute.xlu0 %950
    %v952 = vsel %vm221, %v951, 0
    %954 = vmatpush.msra.mxu0 0.0
    %955 = vmatpush.msra.mxu0 0.0
    %956 = vmatpush.msra.mxu0 0.0
    %957 = vmatpush.msra.mxu0 0.0
    %958 = vmatpush.msra.mxu0 0.0
    %959 = vmatpush.msra.mxu0 0.0
    %960 = vmatpush.msra.mxu0 0.0
    %961 = vmatpush.msra.mxu0 0.0
    %962 = vmatpush.msra.mxu0 0.0
    %963 = vmatpush.msra.mxu0 0.0
    %964 = vmatpush.msra.mxu0 0.0
    %965 = vmatpush.msra.mxu0 0.0
    %966 = vmatpush.msra.mxu0 %v208
    %967 = vmatpush.msra.mxu0 %v207
    %968 = vmatpush.msra.mxu0 %v206
    %969 = vmatpush.msra.mxu0 %v205
    %970 = vmatmul.f32.gmra.mxu0 %v952
    %v971 = vpop.f32.mrf.mxu0
    %v972 = vadd.f32 0.0, %v971
    %973 = vdwg.mxu0
    %v974 = vadd.f32 %v948, %v972
    %v975 = vxor.u32 %v974, 2147483648
    %v976 = vmul.f32 %v975, 1.442695
    %v977 = vpow.pop %v976
    %v978 = vadd.f32 %v977, 1.0
    %v979 = vrcp.pop %v978
    %v980 = vmul.f32 %v978, %v979
    %v981 = vsub.f32 1.0, %v980
    %v982 = vmul.f32 %v979, %v981
    %v983 = vadd.f32 %v979, %v982
    %vm984 = vweird.f32 %v978
    %vm985 = vweird.f32 %v979
    %vm986 = vmor %vm984, %vm985
    %v987 = vsel %vm986, %v979, %v983
    %v988 = vand.u32 2147483647, %v978
    %vm989 = vcmp.eq.f32.partialorder %v988, 8.507059e+37
    %v990 = vand.u32 %v978, 2147483648
    %v991 = vor.u32 1.1754944e-38, %v990
    %v992 = vsel %vm989, %v991, %v987
    %v993 = vmul.f32 1.0, %v992
    %v994 = vadd.f32 %v972, %v266
    %996 = vrot.lane.b32.xlu0 %v994, 64
    %v997 = vpop.permute.xlu0 %996
    %v999 = vmul.f32 %v993, %v997
    %1001 = vrot.lane.b32.xlu0 %v999, 64
    %v1002 = vpop.permute.xlu0 %1001
    %v1004 = vadd.f32 %v948, %v1002
    %v1005 = vtanh.pop %v1004
    %v1006 = vsub.f32 1.0, %v993
    %1008 = vrot.lane.b32.xlu0 %v1005, 96
    %v1009 = vpop.permute.xlu0 %1008
    %v1011 = vmul.f32 %v1006, %v1009
    %v1012 = vmul.f32 %v993, %v878
    %v1013 = vadd.f32 %v1011, %v1012
    %v1014 = vsel %vm661, %v1013, %v878
    %s1015 = scalar_lea.vmem [#allocation3], 16
    %v1016 = vld [vmem:[%s1015] sm:$0xff]
    %1018 = vrot.lane.b32.xlu0 %v946, 96
    %v1019 = vpop.permute.xlu0 %1018
    %v1020 = vsel %vm221, %v1019, 0
    %1022 = vmatpush.msra.mxu0 0.0
    %1023 = vmatpush.msra.mxu0 0.0
    %1024 = vmatpush.msra.mxu0 0.0
    %1025 = vmatpush.msra.mxu0 0.0
    %1026 = vmatpush.msra.mxu0 0.0
    %1027 = vmatpush.msra.mxu0 0.0
    %1028 = vmatpush.msra.mxu0 0.0
    %1029 = vmatpush.msra.mxu0 0.0
    %1030 = vmatpush.msra.mxu0 0.0
    %1031 = vmatpush.msra.mxu0 0.0
    %1032 = vmatpush.msra.mxu0 0.0
    %1033 = vmatpush.msra.mxu0 0.0
    %1034 = vmatpush.msra.mxu0 %v212
    %1035 = vmatpush.msra.mxu0 %v211
    %1036 = vmatpush.msra.mxu0 %v210
    %1037 = vmatpush.msra.mxu0 %v209
    %1038 = vmatmul.f32.gmra.mxu0 %v1020
    %v1039 = vpop.f32.mrf.mxu0
    %v1040 = vadd.f32 0.0, %v1039
    %1041 = vdwg.mxu0
    %v1042 = vadd.f32 %v1016, %v1040
    %v1043 = vxor.u32 %v1042, 2147483648
    %v1044 = vmul.f32 %v1043, 1.442695
    %v1045 = vpow.pop %v1044
    %v1046 = vadd.f32 %v1045, 1.0
    %v1047 = vrcp.pop %v1046
    %v1048 = vmul.f32 %v1046, %v1047
    %v1049 = vsub.f32 1.0, %v1048
    %v1050 = vmul.f32 %v1047, %v1049
    %v1051 = vadd.f32 %v1047, %v1050
    %vm1052 = vweird.f32 %v1046
    %vm1053 = vweird.f32 %v1047
    %vm1054 = vmor %vm1052, %vm1053
    %v1055 = vsel %vm1054, %v1047, %v1051
    %v1056 = vand.u32 2147483647, %v1046
    %vm1057 = vcmp.eq.f32.partialorder %v1056, 8.507059e+37
    %v1058 = vand.u32 %v1046, 2147483648
    %v1059 = vor.u32 1.1754944e-38, %v1058
    %v1060 = vsel %vm1057, %v1059, %v1055
    %v1061 = vmul.f32 1.0, %v1060
    %v1062 = vadd.f32 %v1040, %v338
    %1064 = vrot.lane.b32.xlu0 %v1062, 64
    %v1065 = vpop.permute.xlu0 %1064
    %v1067 = vmul.f32 %v1061, %v1065
    %1069 = vrot.lane.b32.xlu0 %v1067, 64
    %v1070 = vpop.permute.xlu0 %1069
    %v1072 = vadd.f32 %v1016, %v1070
    %v1073 = vtanh.pop %v1072
    %v1074 = vsub.f32 1.0, %v1061
    %1076 = vrot.lane.b32.xlu0 %v1073, 96
    %v1077 = vpop.permute.xlu0 %1076
    %v1079 = vmul.f32 %v1074, %v1077
    %v1080 = vmul.f32 %v1061, %v946
    %v1081 = vadd.f32 %v1079, %v1080
    %v1082 = vsel %vm587, %v1081, %v946
    %s1083 = scalar_lea.vmem [#allocation2], 48
    %v1084 = vld [vmem:[%s1083] sm:$0xff]
    %1086 = vrot.lane.b32.xlu0 %v1014, 96
    %v1087 = vpop.permute.xlu0 %1086
    %v1088 = vsel %vm221, %v1087, 0
    %1090 = vmatpush.msra.mxu0 0.0
    %1091 = vmatpush.msra.mxu0 0.0
    %1092 = vmatpush.msra.mxu0 0.0
    %1093 = vmatpush.msra.mxu0 0.0
    %1094 = vmatpush.msra.mxu0 0.0
    %1095 = vmatpush.msra.mxu0 0.0
    %1096 = vmatpush.msra.mxu0 0.0
    %1097 = vmatpush.msra.mxu0 0.0
    %1098 = vmatpush.msra.mxu0 0.0
    %1099 = vmatpush.msra.mxu0 0.0
    %1100 = vmatpush.msra.mxu0 0.0
    %1101 = vmatpush.msra.mxu0 0.0
    %1102 = vmatpush.msra.mxu0 %v208
    %1103 = vmatpush.msra.mxu0 %v207
    %1104 = vmatpush.msra.mxu0 %v206
    %1105 = vmatpush.msra.mxu0 %v205
    %1106 = vmatmul.f32.gmra.mxu0 %v1088
    %v1107 = vpop.f32.mrf.mxu0
    %v1108 = vadd.f32 0.0, %v1107
    %1109 = vdwg.mxu0
    %v1110 = vadd.f32 %v1084, %v1108
    %v1111 = vxor.u32 %v1110, 2147483648
    %v1112 = vmul.f32 %v1111, 1.442695
    %v1113 = vpow.pop %v1112
    %v1114 = vadd.f32 %v1113, 1.0
    %v1115 = vrcp.pop %v1114
    %v1116 = vmul.f32 %v1114, %v1115
    %v1117 = vsub.f32 1.0, %v1116
    %v1118 = vmul.f32 %v1115, %v1117
    %v1119 = vadd.f32 %v1115, %v1118
    %vm1120 = vweird.f32 %v1114
    %vm1121 = vweird.f32 %v1115
    %vm1122 = vmor %vm1120, %vm1121
    %v1123 = vsel %vm1122, %v1115, %v1119
    %v1124 = vand.u32 2147483647, %v1114
    %vm1125 = vcmp.eq.f32.partialorder %v1124, 8.507059e+37
    %v1126 = vand.u32 %v1114, 2147483648
    %v1127 = vor.u32 1.1754944e-38, %v1126
    %v1128 = vsel %vm1125, %v1127, %v1123
    %v1129 = vmul.f32 1.0, %v1128
    %v1130 = vadd.f32 %v1108, %v266
    %1132 = vrot.lane.b32.xlu0 %v1130, 64
    %v1133 = vpop.permute.xlu0 %1132
    %v1135 = vmul.f32 %v1129, %v1133
    %1137 = vrot.lane.b32.xlu0 %v1135, 64
    %v1138 = vpop.permute.xlu0 %1137
    %v1140 = vadd.f32 %v1084, %v1138
    %v1141 = vtanh.pop %v1140
    %v1142 = vsub.f32 1.0, %v1129
    %1144 = vrot.lane.b32.xlu0 %v1141, 96
    %v1145 = vpop.permute.xlu0 %1144
    %v1147 = vmul.f32 %v1142, %v1145
    %v1148 = vmul.f32 %v1129, %v1014
    %v1149 = vadd.f32 %v1147, %v1148
    %v1150 = vsel %vm513, %v1149, %v1014
    %s1151 = scalar_lea.vmem [#allocation3], 8
    %v1152 = vld [vmem:[%s1151] sm:$0xff]
    %1154 = vrot.lane.b32.xlu0 %v1082, 96
    %v1155 = vpop.permute.xlu0 %1154
    %v1156 = vsel %vm221, %v1155, 0
    %1158 = vmatpush.msra.mxu0 0.0
    %1159 = vmatpush.msra.mxu0 0.0
    %1160 = vmatpush.msra.mxu0 0.0
    %1161 = vmatpush.msra.mxu0 0.0
    %1162 = vmatpush.msra.mxu0 0.0
    %1163 = vmatpush.msra.mxu0 0.0
    %1164 = vmatpush.msra.mxu0 0.0
    %1165 = vmatpush.msra.mxu0 0.0
    %1166 = vmatpush.msra.mxu0 0.0
    %1167 = vmatpush.msra.mxu0 0.0
    %1168 = vmatpush.msra.mxu0 0.0
    %1169 = vmatpush.msra.mxu0 0.0
    %1170 = vmatpush.msra.mxu0 %v212
    %1171 = vmatpush.msra.mxu0 %v211
    %1172 = vmatpush.msra.mxu0 %v210
    %1173 = vmatpush.msra.mxu0 %v209
    %1174 = vmatmul.f32.gmra.mxu0 %v1156
    %v1175 = vpop.f32.mrf.mxu0
    %v1176 = vadd.f32 0.0, %v1175
    %1177 = vdwg.mxu0
    %v1178 = vadd.f32 %v1152, %v1176
    %v1179 = vxor.u32 %v1178, 2147483648
    %v1180 = vmul.f32 %v1179, 1.442695
    %v1181 = vpow.pop %v1180
    %v1182 = vadd.f32 %v1181, 1.0
    %v1183 = vrcp.pop %v1182
    %v1184 = vmul.f32 %v1182, %v1183
    %v1185 = vsub.f32 1.0, %v1184
    %v1186 = vmul.f32 %v1183, %v1185
    %v1187 = vadd.f32 %v1183, %v1186
    %vm1188 = vweird.f32 %v1182
    %vm1189 = vweird.f32 %v1183
    %vm1190 = vmor %vm1188, %vm1189
    %v1191 = vsel %vm1190, %v1183, %v1187
    %v1192 = vand.u32 2147483647, %v1182
    %vm1193 = vcmp.eq.f32.partialorder %v1192, 8.507059e+37
    %v1194 = vand.u32 %v1182, 2147483648
    %v1195 = vor.u32 1.1754944e-38, %v1194
    %v1196 = vsel %vm1193, %v1195, %v1191
    %v1197 = vmul.f32 1.0, %v1196
    %v1198 = vadd.f32 %v1176, %v338
    %1200 = vrot.lane.b32.xlu0 %v1198, 64
    %v1201 = vpop.permute.xlu0 %1200
    %v1203 = vmul.f32 %v1197, %v1201
    %1205 = vrot.lane.b32.xlu0 %v1203, 64
    %v1206 = vpop.permute.xlu0 %1205
    %v1208 = vadd.f32 %v1152, %v1206
    %v1209 = vtanh.pop %v1208
    %v1210 = vsub.f32 1.0, %v1197
    %1212 = vrot.lane.b32.xlu0 %v1209, 96
    %v1213 = vpop.permute.xlu0 %1212
    %v1215 = vmul.f32 %v1210, %v1213
    %v1216 = vmul.f32 %v1197, %v1082
    %v1217 = vadd.f32 %v1215, %v1216
    %v1218 = vsel %vm439, %v1217, %v1082
    %s1219 = scalar_lea.vmem [#allocation2], 56
    %v1220 = vld [vmem:[%s1219] sm:$0xff]
    %1222 = vrot.lane.b32.xlu0 %v1150, 96
    %v1223 = vpop.permute.xlu0 %1222
    %v1224 = vsel %vm221, %v1223, 0
    %1226 = vmatpush.msra.mxu0 0.0
    %1227 = vmatpush.msra.mxu0 0.0
    %1228 = vmatpush.msra.mxu0 0.0
    %1229 = vmatpush.msra.mxu0 0.0
    %1230 = vmatpush.msra.mxu0 0.0
    %1231 = vmatpush.msra.mxu0 0.0
    %1232 = vmatpush.msra.mxu0 0.0
    %1233 = vmatpush.msra.mxu0 0.0
    %1234 = vmatpush.msra.mxu0 0.0
    %1235 = vmatpush.msra.mxu0 0.0
    %1236 = vmatpush.msra.mxu0 0.0
    %1237 = vmatpush.msra.mxu0 0.0
    %1238 = vmatpush.msra.mxu0 %v208
    %1239 = vmatpush.msra.mxu0 %v207
    %1240 = vmatpush.msra.mxu0 %v206
    %1241 = vmatpush.msra.mxu0 %v205
    %1242 = vmatmul.f32.gmra.mxu0 %v1224
    %v1243 = vpop.f32.mrf.mxu0
    %v1244 = vadd.f32 0.0, %v1243
    %1245 = vdwg.mxu0
    %v1246 = vadd.f32 %v1220, %v1244
    %v1247 = vxor.u32 %v1246, 2147483648
    %v1248 = vmul.f32 %v1247, 1.442695
    %v1249 = vpow.pop %v1248
    %v1250 = vadd.f32 %v1249, 1.0
    %v1251 = vrcp.pop %v1250
    %v1252 = vmul.f32 %v1250, %v1251
    %v1253 = vsub.f32 1.0, %v1252
    %v1254 = vmul.f32 %v1251, %v1253
    %v1255 = vadd.f32 %v1251, %v1254
    %vm1256 = vweird.f32 %v1250
    %vm1257 = vweird.f32 %v1251
    %vm1258 = vmor %vm1256, %vm1257
    %v1259 = vsel %vm1258, %v1251, %v1255
    %v1260 = vand.u32 2147483647, %v1250
    %vm1261 = vcmp.eq.f32.partialorder %v1260, 8.507059e+37
    %v1262 = vand.u32 %v1250, 2147483648
    %v1263 = vor.u32 1.1754944e-38, %v1262
    %v1264 = vsel %vm1261, %v1263, %v1259
    %v1265 = vmul.f32 1.0, %v1264
    %v1266 = vadd.f32 %v1244, %v266
    %1268 = vrot.lane.b32.xlu0 %v1266, 64
    %v1269 = vpop.permute.xlu0 %1268
    %v1271 = vmul.f32 %v1265, %v1269
    %1273 = vrot.lane.b32.xlu0 %v1271, 64
    %v1274 = vpop.permute.xlu0 %1273
    %v1276 = vadd.f32 %v1220, %v1274
    %v1277 = vtanh.pop %v1276
    %v1278 = vsub.f32 1.0, %v1265
    %1280 = vrot.lane.b32.xlu0 %v1277, 96
    %v1281 = vpop.permute.xlu0 %1280
    %v1283 = vmul.f32 %v1278, %v1281
    %v1284 = vmul.f32 %v1265, %v1150
    %v1285 = vadd.f32 %v1283, %v1284
    %v1286 = vsel %vm365, %v1285, %v1150
    %v1287 = vld [vmem:[#allocation3] sm:$0xff]
    %1289 = vrot.lane.b32.xlu0 %v1218, 96
    %v1290 = vpop.permute.xlu0 %1289
    %v1291 = vsel %vm221, %v1290, 0
    %1293 = vmatpush.msra.mxu0 0.0
    %1294 = vmatpush.msra.mxu0 0.0
    %1295 = vmatpush.msra.mxu0 0.0
    %1296 = vmatpush.msra.mxu0 0.0
    %1297 = vmatpush.msra.mxu0 0.0
    %1298 = vmatpush.msra.mxu0 0.0
    %1299 = vmatpush.msra.mxu0 0.0
    %1300 = vmatpush.msra.mxu0 0.0
    %1301 = vmatpush.msra.mxu0 0.0
    %1302 = vmatpush.msra.mxu0 0.0
    %1303 = vmatpush.msra.mxu0 0.0
    %1304 = vmatpush.msra.mxu0 0.0
    %1305 = vmatpush.msra.mxu0 %v212
    %1306 = vmatpush.msra.mxu0 %v211
    %1307 = vmatpush.msra.mxu0 %v210
    %1308 = vmatpush.msra.mxu0 %v209
    %1309 = vmatmul.f32.gmra.mxu0 %v1291
    %v1310 = vpop.f32.mrf.mxu0
    %v1311 = vadd.f32 0.0, %v1310
    %1312 = vdwg.mxu0
    %v1313 = vadd.f32 %v1287, %v1311
    %v1314 = vxor.u32 %v1313, 2147483648
    %v1315 = vmul.f32 %v1314, 1.442695
    %v1316 = vpow.pop %v1315
    %v1317 = vadd.f32 %v1316, 1.0
    %v1318 = vrcp.pop %v1317
    %v1319 = vmul.f32 %v1317, %v1318
    %v1320 = vsub.f32 1.0, %v1319
    %v1321 = vmul.f32 %v1318, %v1320
    %v1322 = vadd.f32 %v1318, %v1321
    %vm1323 = vweird.f32 %v1317
    %vm1324 = vweird.f32 %v1318
    %vm1325 = vmor %vm1323, %vm1324
    %v1326 = vsel %vm1325, %v1318, %v1322
    %v1327 = vand.u32 2147483647, %v1317
    %vm1328 = vcmp.eq.f32.partialorder %v1327, 8.507059e+37
    %v1329 = vand.u32 %v1317, 2147483648
    %v1330 = vor.u32 1.1754944e-38, %v1329
    %v1331 = vsel %vm1328, %v1330, %v1326
    %v1332 = vmul.f32 1.0, %v1331
    %v1333 = vadd.f32 %v1311, %v338
    %1335 = vrot.lane.b32.xlu0 %v1333, 64
    %v1336 = vpop.permute.xlu0 %1335
    %v1338 = vmul.f32 %v1332, %v1336
    %1340 = vrot.lane.b32.xlu0 %v1338, 64
    %v1341 = vpop.permute.xlu0 %1340
    %v1343 = vadd.f32 %v1287, %v1341
    %v1344 = vtanh.pop %v1343
    %v1345 = vsub.f32 1.0, %v1332
    %1347 = vrot.lane.b32.xlu0 %v1344, 96
    %v1348 = vpop.permute.xlu0 %1347
    %v1350 = vmul.f32 %v1345, %v1348
    %v1351 = vmul.f32 %v1332, %v1218
    %v1352 = vadd.f32 %v1350, %v1351
    %v1353 = vsel %vm293, %v1352, %v1218
    %1355 = vrot.lane.b32.xlu0 %v1286, 96
    %v1356 = vpop.permute.xlu0 %1355
    %1358 = vst.msk [vmem:[%s10] sm:$0xff] %vm221, %v1356
    %vm1359 = vcmask 523520
    %1360 = vst.msk [vmem:[%s10] sm:$0xff] %vm1359, %v1353
    // Predicated region
    $region46: #{forward.4} parent=1 // pred_check
      _
    $region47: #{forward.4} parent=1 // pred_check_branch
      %1362 = sbr.rel (0) target = $region49
    $region48: #{forward.4} parent=1 // pred_region
      _
    $region49: #{forward.4} parent=1 // pred_fallthru
      _
    // Predicated region
    $region50: #{forward.4} parent=1 // pred_check
      _
    $region51: #{forward.4} parent=1 // pred_check_branch
      %1364 = sbr.rel (0) target = $region53
    $region52: #{forward.4} parent=1 // pred_region
      _
    $region53: #{forward.4} parent=1 // pred_fallthru
      _
    %1365 = vsyncpa [#allocation5], 1

// kernel: forward.3
$region0: #{forward.3}
  #allocation0 [shape = 'u32[]', space=smem, size = 0x4, offset = 0x4, fixed_abs, tag = 'smem constant byte address 0x4 - core index']
  #allocation1 [shape = 'u32[72,128]{1,0:T(1,128)}', space=vmem, size = 0x9000, scoped, tag = 'internal scratch']
  #allocation2 [shape = 'f32[8,8,96]{2,1,0:T(8,128)}', space=vmem, size = 0x8000, scoped, tag = 'scratch operand']
  #allocation3 [shape = 'f32[8,8,96]{2,1,0:T(8,128)}', space=vmem, size = 0x8000, scoped, tag = 'scratch operand']
  %s0 = inlined_call_operand.vmem [shape: f32[8,8,32], index: 0, kind: input, shape index: {}]
  %s1 = inlined_call_operand.vmem [shape: s32[8,1], index: 1, kind: input, shape index: {}]
  %s2 = inlined_call_operand.hbm [shape: f32[32,96], index: 2, kind: input, shape index: {}]
  %s3 = inlined_call_operand.hbm [shape: f32[32,96], index: 3, kind: input, shape index: {}]
  %s4 = inlined_call_operand.vmem [shape: f32[1,96], index: 4, kind: input, shape index: {}]
  %s5 = inlined_call_operand.vmem [shape: f32[1,32], index: 5, kind: input, shape index: {}]
  %s6 = inlined_call_operand.hbm [shape: f32[32,96], index: 6, kind: input, shape index: {}]
  %s7 = inlined_call_operand.hbm [shape: f32[32,96], index: 7, kind: input, shape index: {}]
  %s8 = inlined_call_operand.vmem [shape: f32[1,96], index: 8, kind: input, shape index: {}]
  %s9 = inlined_call_operand.vmem [shape: f32[1,32], index: 9, kind: input, shape index: {}]
  %s10 = inlined_call_operand.vmem [shape: f32[8,8,64], index: 10, kind: output, shape index: {0}]
  %s11 = inlined_call_operand.hbm [shape: f32[8,64], index: 11, kind: output, shape index: {1}]
  %12 = xla_tuple %s10, %s11
  %s13 = sld [smem:[#allocation0]]
  $region74: #{forward.3} parent=0
    _
  %s15 = ssub.s32 1, %s13
  %s16 = scalar_select 0, %s15, %s13
  $region1: #{forward.3} parent=0
    #allocation4 [shape = 'u8[16384]{0}', space=vmem, size = 0x4000, scoped, tag = 'input window, operand 2, single buffered']
    #allocation5 [shape = 's32[1]{0}', space=sflag, size = 0x4, scoped, tag = 'scoped memory for forward.3']
    #allocation6 [shape = 's32[1]{0}', space=sflag, size = 0x4, scoped, tag = 'scoped memory for forward.3']
    #allocation7 [shape = 'u8[16384]{0}', space=vmem, size = 0x4000, scoped, tag = 'input window, operand 3, single buffered']
    #allocation8 [shape = 's32[1]{0}', space=sflag, size = 0x4, scoped, tag = 'scoped memory for forward.3']
    #allocation9 [shape = 'u8[16384]{0}', space=vmem, size = 0x4000, scoped, tag = 'input window, operand 6, single buffered']
    #allocation10 [shape = 'u8[16384]{0}', space=vmem, size = 0x4000, scoped, tag = 'input window, operand 7, single buffered']
    #allocation11 [shape = 's32[1]{0}', space=sflag, size = 0x4, scoped, tag = 'scoped memory for forward.3']
    #allocation12 [shape = 'u8[4096]{0}', space=vmem, size = 0x1000, scoped, tag = 'output window, operand 1, single buffered']
    %17 = vsyncpa [#allocation5], 0
    %18 = vsyncpa [#allocation8], 0
    %19 = vsyncpa [#allocation11], 0
    %20 = vsyncpa [#allocation6], 0
    // Predicated region
    $region2: #{forward.3} parent=1 // pred_check
      _
    $region3: #{forward.3} parent=1 // pred_check_branch
      %22 = sbr.rel (0) target = $region5
    $region4: #{forward.3} parent=1 // pred_region
      _
    $region5: #{forward.3} parent=1 // pred_fallthru
      _
    // Predicated region
    $region6: #{forward.3} parent=1 // pred_check
      _
    $region7: #{forward.3} parent=1 // pred_check_branch
      %24 = sbr.rel (0) target = $region9
    $region8: #{forward.3} parent=1 // pred_region
      _
    $region9: #{forward.3} parent=1 // pred_fallthru
      _
    // Predicated region
    $region10: #{forward.3} parent=1 // pred_check
      _
    $region11: #{forward.3} parent=1 // pred_check_branch
      %26 = sbr.rel (0) target = $region13
    $region12: #{forward.3} parent=1 // pred_region
      %28 = vsyncadd [#allocation5], 0
      %s29 = sshll.u32 %s2, 4
      %s30 = int_to_ptr.hbm [resolvable:$true] %s29
      %s31 = sshll.u32 [#allocation4], 4
      %s32 = int_to_ptr.vmem [resolvable:$true] %s31
      %37 = dma.hbm_to_vmem [thread:$0]  %s30, 512, %s32, [#allocation5], 128, 128, 8
    $region13: #{forward.3} parent=1 // pred_fallthru
      _
    // Predicated region
    $region14: #{forward.3} parent=1 // pred_check
      _
    $region15: #{forward.3} parent=1 // pred_check_branch
      %39 = sbr.rel (0) target = $region17
    $region16: #{forward.3} parent=1 // pred_region
      %41 = vsyncadd [#allocation8], 0
      %s42 = sshll.u32 %s3, 4
      %s43 = int_to_ptr.hbm [resolvable:$true] %s42
      %s44 = sshll.u32 [#allocation7], 4
      %s45 = int_to_ptr.vmem [resolvable:$true] %s44
      %50 = dma.hbm_to_vmem [thread:$0]  %s43, 512, %s45, [#allocation8], 128, 128, 8
    $region17: #{forward.3} parent=1 // pred_fallthru
      _
    // Predicated region
    $region18: #{forward.3} parent=1 // pred_check
      _
    $region19: #{forward.3} parent=1 // pred_check_branch
      %52 = sbr.rel (0) target = $region21
    $region20: #{forward.3} parent=1 // pred_region
      _
    $region21: #{forward.3} parent=1 // pred_fallthru
      _
    // Predicated region
    $region22: #{forward.3} parent=1 // pred_check
      _
    $region23: #{forward.3} parent=1 // pred_check_branch
      %54 = sbr.rel (0) target = $region25
    $region24: #{forward.3} parent=1 // pred_region
      _
    $region25: #{forward.3} parent=1 // pred_fallthru
      _
    // Predicated region
    $region26: #{forward.3} parent=1 // pred_check
      _
    $region27: #{forward.3} parent=1 // pred_check_branch
      %56 = sbr.rel (0) target = $region29
    $region28: #{forward.3} parent=1 // pred_region
      %58 = vsyncadd [#allocation8], 0
      %s59 = sshll.u32 %s6, 4
      %s60 = int_to_ptr.hbm [resolvable:$true] %s59
      %s61 = sshll.u32 [#allocation9], 4
      %s62 = int_to_ptr.vmem [resolvable:$true] %s61
      %67 = dma.hbm_to_vmem [thread:$0]  %s60, 512, %s62, [#allocation8], 128, 128, 8
    $region29: #{forward.3} parent=1 // pred_fallthru
      _
    // Predicated region
    $region30: #{forward.3} parent=1 // pred_check
      _
    $region31: #{forward.3} parent=1 // pred_check_branch
      %69 = sbr.rel (0) target = $region33
    $region32: #{forward.3} parent=1 // pred_region
      %71 = vsyncadd [#allocation11], 0
      %s72 = sshll.u32 %s7, 4
      %s73 = int_to_ptr.hbm [resolvable:$true] %s72
      %s74 = sshll.u32 [#allocation10], 4
      %s75 = int_to_ptr.vmem [resolvable:$true] %s74
      %80 = dma.hbm_to_vmem [thread:$0]  %s73, 512, %s75, [#allocation11], 128, 128, 8
    $region33: #{forward.3} parent=1 // pred_fallthru
      _
    // Predicated region
    $region34: #{forward.3} parent=1 // pred_check
      _
    $region35: #{forward.3} parent=1 // pred_check_branch
      %82 = sbr.rel (0) target = $region37
    $region36: #{forward.3} parent=1 // pred_region
      _
    $region37: #{forward.3} parent=1 // pred_fallthru
      _
    // Predicated region
    $region38: #{forward.3} parent=1 // pred_check
      _
    $region39: #{forward.3} parent=1 // pred_check_branch
      %84 = sbr.rel (0) target = $region41
    $region40: #{forward.3} parent=1 // pred_region
      _
    $region41: #{forward.3} parent=1 // pred_fallthru
      _
    // Predicated region
    $region42: #{forward.3} parent=1 // pred_check
      _
    $region43: #{forward.3} parent=1 // pred_check_branch
      %86 = sbr.rel (0) target = $region45
    $region44: #{forward.3} parent=1 // pred_region
      %88 = dma.done [#allocation5], 512
    $region45: #{forward.3} parent=1 // pred_fallthru
      _
    // Predicated region
    $region46: #{forward.3} parent=1 // pred_check
      _
    $region47: #{forward.3} parent=1 // pred_check_branch
      %90 = sbr.rel (0) target = $region49
    $region48: #{forward.3} parent=1 // pred_region
      %92 = dma.done [#allocation8], 512
    $region49: #{forward.3} parent=1 // pred_fallthru
      _
    // Predicated region
    $region50: #{forward.3} parent=1 // pred_check
      _
    $region51: #{forward.3} parent=1 // pred_check_branch
      %94 = sbr.rel (0) target = $region53
    $region52: #{forward.3} parent=1 // pred_region
      %96 = dma.done [#allocation8], 512
    $region53: #{forward.3} parent=1 // pred_fallthru
      _
    // Predicated region
    $region54: #{forward.3} parent=1 // pred_check
      _
    $region55: #{forward.3} parent=1 // pred_check_branch
      %98 = sbr.rel (0) target = $region57
    $region56: #{forward.3} parent=1 // pred_region
      %100 = dma.done [#allocation11], 512
    $region57: #{forward.3} parent=1 // pred_fallthru
      _
    %v101 = vld [vmem:[%s0] sm:$0xff]
    %v102 = vld [vmem:[%s0 + $0x8] sm:$0xff]
    %v103 = vld [vmem:[%s0 + $0x10] sm:$0xff]
    %v104 = vld [vmem:[%s0 + $0x18] sm:$0xff]
    %v105 = vld [vmem:[%s0 + $0x20] sm:$0xff]
    %v106 = vld [vmem:[%s0 + $0x28] sm:$0xff]
    %v107 = vld [vmem:[%s0 + $0x30] sm:$0xff]
    %v108 = vld [vmem:[%s0 + $0x38] sm:$0xff]
    %v109 = vld [vmem:[#allocation4] sm:$0xff]
    %v110 = vld [vmem:[#allocation4 + $0x8] sm:$0xff]
    %v111 = vld [vmem:[#allocation4 + $0x10] sm:$0xff]
    %v112 = vld [vmem:[#allocation4 + $0x18] sm:$0xff]
    %v113 = vld [vmem:[%s4] sm:$0x1]
    %v115 = vperm.slane %v113, 0
    %vm117 = vcmask 261120
    %v119 = vsel %vm117, %v101, 0
    %v122 = vsel %vm117, %v102, 0
    %v125 = vsel %vm117, %v103, 0
    %v128 = vsel %vm117, %v104, 0
    %v131 = vsel %vm117, %v105, 0
    %v134 = vsel %vm117, %v106, 0
    %v137 = vsel %vm117, %v107, 0
    %v140 = vsel %vm117, %v108, 0
    %142 = vmatpush.msra.mxu0 0.0
    %143 = vmatpush.msra.mxu0 0.0
    %144 = vmatpush.msra.mxu0 0.0
    %145 = vmatpush.msra.mxu0 0.0
    %146 = vmatpush.msra.mxu0 0.0
    %147 = vmatpush.msra.mxu0 0.0
    %148 = vmatpush.msra.mxu0 0.0
    %149 = vmatpush.msra.mxu0 0.0
    %150 = vmatpush.msra.mxu0 0.0
    %151 = vmatpush.msra.mxu0 0.0
    %152 = vmatpush.msra.mxu0 0.0
    %153 = vmatpush.msra.mxu0 0.0
    %154 = vmatpush.msra.mxu0 %v112
    %155 = vmatpush.msra.mxu0 %v111
    %156 = vmatpush.msra.mxu0 %v110
    %157 = vmatpush.msra.mxu0 %v109
    %158 = vmatmul.f32.gmra.mxu0 %v119
    %v159 = vpop.f32.mrf.mxu0
    %v160 = vadd.f32 %v115, %v159
    %161 = vmatmul.f32.gmra.mxu0 %v122
    %v162 = vpop.f32.mrf.mxu0
    %v163 = vadd.f32 %v115, %v162
    %164 = vmatmul.f32.gmra.mxu0 %v125
    %v165 = vpop.f32.mrf.mxu0
    %v166 = vadd.f32 %v115, %v165
    %167 = vmatmul.f32.gmra.mxu0 %v128
    %v168 = vpop.f32.mrf.mxu0
    %v169 = vadd.f32 %v115, %v168
    %170 = vmatmul.f32.gmra.mxu0 %v131
    %v171 = vpop.f32.mrf.mxu0
    %v172 = vadd.f32 %v115, %v171
    %173 = vmatmul.f32.gmra.mxu0 %v134
    %v174 = vpop.f32.mrf.mxu0
    %v175 = vadd.f32 %v115, %v174
    %176 = vmatmul.f32.gmra.mxu0 %v137
    %v177 = vpop.f32.mrf.mxu0
    %v178 = vadd.f32 %v115, %v177
    %179 = vmatmul.f32.gmra.mxu0 %v140
    %v180 = vpop.f32.mrf.mxu0
    %v181 = vadd.f32 %v115, %v180
    %182 = vdwg.mxu0
    %vm183 = vcmask 785408
    %184 = vst.msk [vmem:[#allocation2] sm:$0xff] %vm183, %v160
    %185 = vst.msk [vmem:[#allocation2 + $0x8] sm:$0xff] %vm183, %v163
    %186 = vst.msk [vmem:[#allocation2 + $0x10] sm:$0xff] %vm183, %v166
    %187 = vst.msk [vmem:[#allocation2 + $0x18] sm:$0xff] %vm183, %v169
    %188 = vst.msk [vmem:[#allocation2 + $0x20] sm:$0xff] %vm183, %v172
    %189 = vst.msk [vmem:[#allocation2 + $0x28] sm:$0xff] %vm183, %v175
    %190 = vst.msk [vmem:[#allocation2 + $0x30] sm:$0xff] %vm183, %v178
    %191 = vst.msk [vmem:[#allocation2 + $0x38] sm:$0xff] %vm183, %v181
    %v192 = vld [vmem:[#allocation9] sm:$0xff]
    %v193 = vld [vmem:[#allocation9 + $0x8] sm:$0xff]
    %v194 = vld [vmem:[#allocation9 + $0x10] sm:$0xff]
    %v195 = vld [vmem:[#allocation9 + $0x18] sm:$0xff]
    %v196 = vld [vmem:[%s8] sm:$0x1]
    %v198 = vperm.slane %v196, 0
    %200 = vmatpush.msra.mxu0 0.0
    %201 = vmatpush.msra.mxu0 0.0
    %202 = vmatpush.msra.mxu0 0.0
    %203 = vmatpush.msra.mxu0 0.0
    %204 = vmatpush.msra.mxu0 0.0
    %205 = vmatpush.msra.mxu0 0.0
    %206 = vmatpush.msra.mxu0 0.0
    %207 = vmatpush.msra.mxu0 0.0
    %208 = vmatpush.msra.mxu0 0.0
    %209 = vmatpush.msra.mxu0 0.0
    %210 = vmatpush.msra.mxu0 0.0
    %211 = vmatpush.msra.mxu0 0.0
    %212 = vmatpush.msra.mxu0 %v195
    %213 = vmatpush.msra.mxu0 %v194
    %214 = vmatpush.msra.mxu0 %v193
    %215 = vmatpush.msra.mxu0 %v192
    %216 = vmatmul.f32.gmra.mxu0 %v119
    %v217 = vpop.f32.mrf.mxu0
    %v218 = vadd.f32 %v198, %v217
    %219 = vmatmul.f32.gmra.mxu0 %v122
    %v220 = vpop.f32.mrf.mxu0
    %v221 = vadd.f32 %v198, %v220
    %222 = vmatmul.f32.gmra.mxu0 %v125
    %v223 = vpop.f32.mrf.mxu0
    %v224 = vadd.f32 %v198, %v223
    %225 = vmatmul.f32.gmra.mxu0 %v128
    %v226 = vpop.f32.mrf.mxu0
    %v227 = vadd.f32 %v198, %v226
    %228 = vmatmul.f32.gmra.mxu0 %v131
    %v229 = vpop.f32.mrf.mxu0
    %v230 = vadd.f32 %v198, %v229
    %231 = vmatmul.f32.gmra.mxu0 %v134
    %v232 = vpop.f32.mrf.mxu0
    %v233 = vadd.f32 %v198, %v232
    %234 = vmatmul.f32.gmra.mxu0 %v137
    %v235 = vpop.f32.mrf.mxu0
    %v236 = vadd.f32 %v198, %v235
    %237 = vmatmul.f32.gmra.mxu0 %v140
    %v238 = vpop.f32.mrf.mxu0
    %v239 = vadd.f32 %v198, %v238
    %240 = vdwg.mxu0
    %241 = vst.msk [vmem:[#allocation3] sm:$0xff] %vm183, %v218
    %242 = vst.msk [vmem:[#allocation3 + $0x8] sm:$0xff] %vm183, %v221
    %243 = vst.msk [vmem:[#allocation3 + $0x10] sm:$0xff] %vm183, %v224
    %244 = vst.msk [vmem:[#allocation3 + $0x18] sm:$0xff] %vm183, %v227
    %245 = vst.msk [vmem:[#allocation3 + $0x20] sm:$0xff] %vm183, %v230
    %246 = vst.msk [vmem:[#allocation3 + $0x28] sm:$0xff] %vm183, %v233
    %247 = vst.msk [vmem:[#allocation3 + $0x30] sm:$0xff] %vm183, %v236
    %248 = vst.msk [vmem:[#allocation3 + $0x38] sm:$0xff] %vm183, %v239
    %v249 = vld [vmem:[#allocation7] sm:$0xff]
    %v250 = vld [vmem:[#allocation7 + $0x8] sm:$0xff]
    %v251 = vld [vmem:[#allocation7 + $0x10] sm:$0xff]
    %v252 = vld [vmem:[#allocation7 + $0x18] sm:$0xff]
    %v253 = vld [vmem:[#allocation10] sm:$0xff]
    %v254 = vld [vmem:[#allocation10 + $0x8] sm:$0xff]
    %v255 = vld [vmem:[#allocation10 + $0x10] sm:$0xff]
    %v256 = vld [vmem:[#allocation10 + $0x18] sm:$0xff]
    %v257 = vld [vmem:[%s5] sm:$0x1]
    %v259 = vperm.slane %v257, 0
    %v260 = vld [vmem:[%s9] sm:$0x1]
    %v262 = vperm.slane %v260, 0
    %v263 = vld [vmem:[%s1] sm:$0xff]
    %v264 = vld [vmem:[#allocation2] sm:$0xff]
    %v266 = vsel %vm117, 0.0, 0
    %268 = vmatpush.msra.mxu0 0.0
    %269 = vmatpush.msra.mxu0 0.0
    %270 = vmatpush.msra.mxu0 0.0
    %271 = vmatpush.msra.mxu0 0.0
    %272 = vmatpush.msra.mxu0 0.0
    %273 = vmatpush.msra.mxu0 0.0
    %274 = vmatpush.msra.mxu0 0.0
    %275 = vmatpush.msra.mxu0 0.0
    %276 = vmatpush.msra.mxu0 0.0
    %277 = vmatpush.msra.mxu0 0.0
    %278 = vmatpush.msra.mxu0 0.0
    %279 = vmatpush.msra.mxu0 0.0
    %280 = vmatpush.msra.mxu0 %v252
    %281 = vmatpush.msra.mxu0 %v251
    %282 = vmatpush.msra.mxu0 %v250
    %283 = vmatpush.msra.mxu0 %v249
    %284 = vmatmul.f32.gmra.mxu0 %v266
    %v285 = vpop.f32.mrf.mxu0
    %v286 = vadd.f32 0.0, %v285
    %287 = vdwg.mxu0
    %v288 = vadd.f32 %v264, %v286
    %v289 = vxor.u32 %v288, 2147483648
    %v290 = vmul.f32 %v289, 1.442695
    %v291 = vpow.pop %v290
    %v292 = vadd.f32 %v291, 1.0
    %v293 = vrcp.pop %v292
    %v294 = vmul.f32 %v292, %v293
    %v295 = vsub.f32 1.0, %v294
    %v296 = vmul.f32 %v293, %v295
    %v297 = vadd.f32 %v293, %v296
    %vm298 = vweird.f32 %v292
    %vm299 = vweird.f32 %v293
    %vm300 = vmor %vm298, %vm299
    %v301 = vsel %vm300, %v293, %v297
    %v302 = vand.u32 2147483647, %v292
    %vm303 = vcmp.eq.f32.partialorder %v302, 8.507059e+37
    %v304 = vand.u32 %v292, 2147483648
    %v305 = vor.u32 1.1754944e-38, %v304
    %v306 = vsel %vm303, %v305, %v301
    %v307 = vmul.f32 1.0, %v306
    %308 = vrot.lane.b32.xlu0 %v259, 64
    %v309 = vpop.permute.xlu0 %308
    %v311 = vadd.f32 %v286, %v309
    %313 = vrot.lane.b32.xlu0 %v311, 64
    %v314 = vpop.permute.xlu0 %313
    %v316 = vmul.f32 %v307, %v314
    %318 = vrot.lane.b32.xlu0 %v316, 64
    %v319 = vpop.permute.xlu0 %318
    %v321 = vadd.f32 %v264, %v319
    %v322 = vtanh.pop %v321
    %v323 = vsub.f32 1.0, %v307
    %325 = vrot.lane.b32.xlu0 %v322, 96
    %v326 = vpop.permute.xlu0 %325
    %v328 = vmul.f32 %v323, %v326
    %v329 = vmul.f32 %v307, 0.0
    %v330 = vadd.f32 %v328, %v329
    %vm331 = vcmp.gt.s32.totalorder %v263, 0
    %v332 = vsel %vm331, 1, 0
    %333 = vset.pattern.permute.xlu0 0
    %334 = vperm.xlu0 %333, %v332
    %v335 = vpop.permute.xlu0 %334
    %vm336 = vcmp.eq.s32.totalorder %v335, 1
    %v337 = vsel %vm336, %v330, 0.0
    %s338 = scalar_lea.vmem [#allocation3], 56
    %v339 = vld [vmem:[%s338] sm:$0xff]
    %340 = vmatpush.msra.mxu0 0.0
    %341 = vmatpush.msra.mxu0 0.0
    %342 = vmatpush.msra.mxu0 0.0
    %343 = vmatpush.msra.mxu0 0.0
    %344 = vmatpush.msra.mxu0 0.0
    %345 = vmatpush.msra.mxu0 0.0
    %346 = vmatpush.msra.mxu0 0.0
    %347 = vmatpush.msra.mxu0 0.0
    %348 = vmatpush.msra.mxu0 0.0
    %349 = vmatpush.msra.mxu0 0.0
    %350 = vmatpush.msra.mxu0 0.0
    %351 = vmatpush.msra.mxu0 0.0
    %352 = vmatpush.msra.mxu0 %v256
    %353 = vmatpush.msra.mxu0 %v255
    %354 = vmatpush.msra.mxu0 %v254
    %355 = vmatpush.msra.mxu0 %v253
    %356 = vmatmul.f32.gmra.mxu0 %v266
    %v357 = vpop.f32.mrf.mxu0
    %v358 = vadd.f32 0.0, %v357
    %359 = vdwg.mxu0
    %v360 = vadd.f32 %v339, %v358
    %v361 = vxor.u32 %v360, 2147483648
    %v362 = vmul.f32 %v361, 1.442695
    %v363 = vpow.pop %v362
    %v364 = vadd.f32 %v363, 1.0
    %v365 = vrcp.pop %v364
    %v366 = vmul.f32 %v364, %v365
    %v367 = vsub.f32 1.0, %v366
    %v368 = vmul.f32 %v365, %v367
    %v369 = vadd.f32 %v365, %v368
    %vm370 = vweird.f32 %v364
    %vm371 = vweird.f32 %v365
    %vm372 = vmor %vm370, %vm371
    %v373 = vsel %vm372, %v365, %v369
    %v374 = vand.u32 2147483647, %v364
    %vm375 = vcmp.eq.f32.partialorder %v374, 8.507059e+37
    %v376 = vand.u32 %v364, 2147483648
    %v377 = vor.u32 1.1754944e-38, %v376
    %v378 = vsel %vm375, %v377, %v373
    %v379 = vmul.f32 1.0, %v378
    %380 = vrot.lane.b32.xlu0 %v262, 64
    %v381 = vpop.permute.xlu0 %380
    %v383 = vadd.f32 %v358, %v381
    %385 = vrot.lane.b32.xlu0 %v383, 64
    %v386 = vpop.permute.xlu0 %385
    %v388 = vmul.f32 %v379, %v386
    %390 = vrot.lane.b32.xlu0 %v388, 64
    %v391 = vpop.permute.xlu0 %390
    %v393 = vadd.f32 %v339, %v391
    %v394 = vtanh.pop %v393
    %v395 = vsub.f32 1.0, %v379
    %397 = vrot.lane.b32.xlu0 %v394, 96
    %v398 = vpop.permute.xlu0 %397
    %v400 = vmul.f32 %v395, %v398
    %v401 = vmul.f32 %v379, 0.0
    %v402 = vadd.f32 %v400, %v401
    %vm403 = vcmp.gt.s32.totalorder %v263, 7
    %v404 = vsel %vm403, 1, 0
    %405 = vset.pattern.permute.xlu0 0
    %406 = vperm.xlu0 %405, %v404
    %v407 = vpop.permute.xlu0 %406
    %vm408 = vcmp.eq.s32.totalorder %v407, 1
    %v409 = vsel %vm408, %v402, 0.0
    %411 = vrot.lane.b32.xlu0 %v337, 96
    %v412 = vpop.permute.xlu0 %411
    %414 = vst.msk [vmem:[%s10] sm:$0xff] %vm117, %v412
    %s415 = scalar_lea.vmem %s10, 56
    %vm416 = vcmask 523520
    %417 = vst.msk [vmem:[%s415] sm:$0xff] %vm416, %v409
    %s418 = scalar_lea.vmem [#allocation2], 8
    %v419 = vld [vmem:[%s418] sm:$0xff]
    %v420 = vsel %vm117, %v412, 0
    %422 = vmatpush.msra.mxu0 0.0
    %423 = vmatpush.msra.mxu0 0.0
    %424 = vmatpush.msra.mxu0 0.0
    %425 = vmatpush.msra.mxu0 0.0
    %426 = vmatpush.msra.mxu0 0.0
    %427 = vmatpush.msra.mxu0 0.0
    %428 = vmatpush.msra.mxu0 0.0
    %429 = vmatpush.msra.mxu0 0.0
    %430 = vmatpush.msra.mxu0 0.0
    %431 = vmatpush.msra.mxu0 0.0
    %432 = vmatpush.msra.mxu0 0.0
    %433 = vmatpush.msra.mxu0 0.0
    %434 = vmatpush.msra.mxu0 %v252
    %435 = vmatpush.msra.mxu0 %v251
    %436 = vmatpush.msra.mxu0 %v250
    %437 = vmatpush.msra.mxu0 %v249
    %438 = vmatmul.f32.gmra.mxu0 %v420
    %v439 = vpop.f32.mrf.mxu0
    %v440 = vadd.f32 0.0, %v439
    %441 = vdwg.mxu0
    %v442 = vadd.f32 %v419, %v440
    %v443 = vxor.u32 %v442, 2147483648
    %v444 = vmul.f32 %v443, 1.442695
    %v445 = vpow.pop %v444
    %v446 = vadd.f32 %v445, 1.0
    %v447 = vrcp.pop %v446
    %v448 = vmul.f32 %v446, %v447
    %v449 = vsub.f32 1.0, %v448
    %v450 = vmul.f32 %v447, %v449
    %v451 = vadd.f32 %v447, %v450
    %vm452 = vweird.f32 %v446
    %vm453 = vweird.f32 %v447
    %vm454 = vmor %vm452, %vm453
    %v455 = vsel %vm454, %v447, %v451
    %v456 = vand.u32 2147483647, %v446
    %vm457 = vcmp.eq.f32.partialorder %v456, 8.507059e+37
    %v458 = vand.u32 %v446, 2147483648
    %v459 = vor.u32 1.1754944e-38, %v458
    %v460 = vsel %vm457, %v459, %v455
    %v461 = vmul.f32 1.0, %v460
    %v462 = vadd.f32 %v440, %v309
    %464 = vrot.lane.b32.xlu0 %v462, 64
    %v465 = vpop.permute.xlu0 %464
    %v467 = vmul.f32 %v461, %v465
    %469 = vrot.lane.b32.xlu0 %v467, 64
    %v470 = vpop.permute.xlu0 %469
    %v472 = vadd.f32 %v419, %v470
    %v473 = vtanh.pop %v472
    %v474 = vsub.f32 1.0, %v461
    %476 = vrot.lane.b32.xlu0 %v473, 96
    %v477 = vpop.permute.xlu0 %476
    %v479 = vmul.f32 %v474, %v477
    %v480 = vmul.f32 %v461, %v337
    %v481 = vadd.f32 %v479, %v480
    %vm482 = vcmp.gt.s32.totalorder %v263, 1
    %v483 = vsel %vm482, 1, 0
    %484 = vset.pattern.permute.xlu0 0
    %485 = vperm.xlu0 %484, %v483
    %v486 = vpop.permute.xlu0 %485
    %vm487 = vcmp.eq.s32.totalorder %v486, 1
    %v488 = vsel %vm487, %v481, %v337
    %s489 = scalar_lea.vmem [#allocation3], 48
    %v490 = vld [vmem:[%s489] sm:$0xff]
    %492 = vrot.lane.b32.xlu0 %v409, 96
    %v493 = vpop.permute.xlu0 %492
    %v494 = vsel %vm117, %v493, 0
    %496 = vmatpush.msra.mxu0 0.0
    %497 = vmatpush.msra.mxu0 0.0
    %498 = vmatpush.msra.mxu0 0.0
    %499 = vmatpush.msra.mxu0 0.0
    %500 = vmatpush.msra.mxu0 0.0
    %501 = vmatpush.msra.mxu0 0.0
    %502 = vmatpush.msra.mxu0 0.0
    %503 = vmatpush.msra.mxu0 0.0
    %504 = vmatpush.msra.mxu0 0.0
    %505 = vmatpush.msra.mxu0 0.0
    %506 = vmatpush.msra.mxu0 0.0
    %507 = vmatpush.msra.mxu0 0.0
    %508 = vmatpush.msra.mxu0 %v256
    %509 = vmatpush.msra.mxu0 %v255
    %510 = vmatpush.msra.mxu0 %v254
    %511 = vmatpush.msra.mxu0 %v253
    %512 = vmatmul.f32.gmra.mxu0 %v494
    %v513 = vpop.f32.mrf.mxu0
    %v514 = vadd.f32 0.0, %v513
    %515 = vdwg.mxu0
    %v516 = vadd.f32 %v490, %v514
    %v517 = vxor.u32 %v516, 2147483648
    %v518 = vmul.f32 %v517, 1.442695
    %v519 = vpow.pop %v518
    %v520 = vadd.f32 %v519, 1.0
    %v521 = vrcp.pop %v520
    %v522 = vmul.f32 %v520, %v521
    %v523 = vsub.f32 1.0, %v522
    %v524 = vmul.f32 %v521, %v523
    %v525 = vadd.f32 %v521, %v524
    %vm526 = vweird.f32 %v520
    %vm527 = vweird.f32 %v521
    %vm528 = vmor %vm526, %vm527
    %v529 = vsel %vm528, %v521, %v525
    %v530 = vand.u32 2147483647, %v520
    %vm531 = vcmp.eq.f32.partialorder %v530, 8.507059e+37
    %v532 = vand.u32 %v520, 2147483648
    %v533 = vor.u32 1.1754944e-38, %v532
    %v534 = vsel %vm531, %v533, %v529
    %v535 = vmul.f32 1.0, %v534
    %v536 = vadd.f32 %v514, %v381
    %538 = vrot.lane.b32.xlu0 %v536, 64
    %v539 = vpop.permute.xlu0 %538
    %v541 = vmul.f32 %v535, %v539
    %543 = vrot.lane.b32.xlu0 %v541, 64
    %v544 = vpop.permute.xlu0 %543
    %v546 = vadd.f32 %v490, %v544
    %v547 = vtanh.pop %v546
    %v548 = vsub.f32 1.0, %v535
    %550 = vrot.lane.b32.xlu0 %v547, 96
    %v551 = vpop.permute.xlu0 %550
    %v553 = vmul.f32 %v548, %v551
    %v554 = vmul.f32 %v535, %v409
    %v555 = vadd.f32 %v553, %v554
    %vm556 = vcmp.gt.s32.totalorder %v263, 6
    %v557 = vsel %vm556, 1, 0
    %558 = vset.pattern.permute.xlu0 0
    %559 = vperm.xlu0 %558, %v557
    %v560 = vpop.permute.xlu0 %559
    %vm561 = vcmp.eq.s32.totalorder %v560, 1
    %v562 = vsel %vm561, %v555, %v409
    %564 = vrot.lane.b32.xlu0 %v488, 96
    %v565 = vpop.permute.xlu0 %564
    %s567 = scalar_lea.vmem %s10, 8
    %568 = vst.msk [vmem:[%s567] sm:$0xff] %vm117, %v565
    %s569 = scalar_lea.vmem %s10, 48
    %570 = vst.msk [vmem:[%s569] sm:$0xff] %vm416, %v562
    %s571 = scalar_lea.vmem [#allocation2], 16
    %v572 = vld [vmem:[%s571] sm:$0xff]
    %v573 = vsel %vm117, %v565, 0
    %575 = vmatpush.msra.mxu0 0.0
    %576 = vmatpush.msra.mxu0 0.0
    %577 = vmatpush.msra.mxu0 0.0
    %578 = vmatpush.msra.mxu0 0.0
    %579 = vmatpush.msra.mxu0 0.0
    %580 = vmatpush.msra.mxu0 0.0
    %581 = vmatpush.msra.mxu0 0.0
    %582 = vmatpush.msra.mxu0 0.0
    %583 = vmatpush.msra.mxu0 0.0
    %584 = vmatpush.msra.mxu0 0.0
    %585 = vmatpush.msra.mxu0 0.0
    %586 = vmatpush.msra.mxu0 0.0
    %587 = vmatpush.msra.mxu0 %v252
    %588 = vmatpush.msra.mxu0 %v251
    %589 = vmatpush.msra.mxu0 %v250
    %590 = vmatpush.msra.mxu0 %v249
    %591 = vmatmul.f32.gmra.mxu0 %v573
    %v592 = vpop.f32.mrf.mxu0
    %v593 = vadd.f32 0.0, %v592
    %594 = vdwg.mxu0
    %v595 = vadd.f32 %v572, %v593
    %v596 = vxor.u32 %v595, 2147483648
    %v597 = vmul.f32 %v596, 1.442695
    %v598 = vpow.pop %v597
    %v599 = vadd.f32 %v598, 1.0
    %v600 = vrcp.pop %v599
    %v601 = vmul.f32 %v599, %v600
    %v602 = vsub.f32 1.0, %v601
    %v603 = vmul.f32 %v600, %v602
    %v604 = vadd.f32 %v600, %v603
    %vm605 = vweird.f32 %v599
    %vm606 = vweird.f32 %v600
    %vm607 = vmor %vm605, %vm606
    %v608 = vsel %vm607, %v600, %v604
    %v609 = vand.u32 2147483647, %v599
    %vm610 = vcmp.eq.f32.partialorder %v609, 8.507059e+37
    %v611 = vand.u32 %v599, 2147483648
    %v612 = vor.u32 1.1754944e-38, %v611
    %v613 = vsel %vm610, %v612, %v608
    %v614 = vmul.f32 1.0, %v613
    %v615 = vadd.f32 %v593, %v309
    %617 = vrot.lane.b32.xlu0 %v615, 64
    %v618 = vpop.permute.xlu0 %617
    %v620 = vmul.f32 %v614, %v618
    %622 = vrot.lane.b32.xlu0 %v620, 64
    %v623 = vpop.permute.xlu0 %622
    %v625 = vadd.f32 %v572, %v623
    %v626 = vtanh.pop %v625
    %v627 = vsub.f32 1.0, %v614
    %629 = vrot.lane.b32.xlu0 %v626, 96
    %v630 = vpop.permute.xlu0 %629
    %v632 = vmul.f32 %v627, %v630
    %v633 = vmul.f32 %v614, %v488
    %v634 = vadd.f32 %v632, %v633
    %vm635 = vcmp.gt.s32.totalorder %v263, 2
    %v636 = vsel %vm635, 1, 0
    %637 = vset.pattern.permute.xlu0 0
    %638 = vperm.xlu0 %637, %v636
    %v639 = vpop.permute.xlu0 %638
    %vm640 = vcmp.eq.s32.totalorder %v639, 1
    %v641 = vsel %vm640, %v634, %v488
    %s642 = scalar_lea.vmem [#allocation3], 40
    %v643 = vld [vmem:[%s642] sm:$0xff]
    %645 = vrot.lane.b32.xlu0 %v562, 96
    %v646 = vpop.permute.xlu0 %645
    %v647 = vsel %vm117, %v646, 0
    %649 = vmatpush.msra.mxu0 0.0
    %650 = vmatpush.msra.mxu0 0.0
    %651 = vmatpush.msra.mxu0 0.0
    %652 = vmatpush.msra.mxu0 0.0
    %653 = vmatpush.msra.mxu0 0.0
    %654 = vmatpush.msra.mxu0 0.0
    %655 = vmatpush.msra.mxu0 0.0
    %656 = vmatpush.msra.mxu0 0.0
    %657 = vmatpush.msra.mxu0 0.0
    %658 = vmatpush.msra.mxu0 0.0
    %659 = vmatpush.msra.mxu0 0.0
    %660 = vmatpush.msra.mxu0 0.0
    %661 = vmatpush.msra.mxu0 %v256
    %662 = vmatpush.msra.mxu0 %v255
    %663 = vmatpush.msra.mxu0 %v254
    %664 = vmatpush.msra.mxu0 %v253
    %665 = vmatmul.f32.gmra.mxu0 %v647
    %v666 = vpop.f32.mrf.mxu0
    %v667 = vadd.f32 0.0, %v666
    %668 = vdwg.mxu0
    %v669 = vadd.f32 %v643, %v667
    %v670 = vxor.u32 %v669, 2147483648
    %v671 = vmul.f32 %v670, 1.442695
    %v672 = vpow.pop %v671
    %v673 = vadd.f32 %v672, 1.0
    %v674 = vrcp.pop %v673
    %v675 = vmul.f32 %v673, %v674
    %v676 = vsub.f32 1.0, %v675
    %v677 = vmul.f32 %v674, %v676
    %v678 = vadd.f32 %v674, %v677
    %vm679 = vweird.f32 %v673
    %vm680 = vweird.f32 %v674
    %vm681 = vmor %vm679, %vm680
    %v682 = vsel %vm681, %v674, %v678
    %v683 = vand.u32 2147483647, %v673
    %vm684 = vcmp.eq.f32.partialorder %v683, 8.507059e+37
    %v685 = vand.u32 %v673, 2147483648
    %v686 = vor.u32 1.1754944e-38, %v685
    %v687 = vsel %vm684, %v686, %v682
    %v688 = vmul.f32 1.0, %v687
    %v689 = vadd.f32 %v667, %v381
    %691 = vrot.lane.b32.xlu0 %v689, 64
    %v692 = vpop.permute.xlu0 %691
    %v694 = vmul.f32 %v688, %v692
    %696 = vrot.lane.b32.xlu0 %v694, 64
    %v697 = vpop.permute.xlu0 %696
    %v699 = vadd.f32 %v643, %v697
    %v700 = vtanh.pop %v699
    %v701 = vsub.f32 1.0, %v688
    %703 = vrot.lane.b32.xlu0 %v700, 96
    %v704 = vpop.permute.xlu0 %703
    %v706 = vmul.f32 %v701, %v704
    %v707 = vmul.f32 %v688, %v562
    %v708 = vadd.f32 %v706, %v707
    %vm709 = vcmp.gt.s32.totalorder %v263, 5
    %v710 = vsel %vm709, 1, 0
    %711 = vset.pattern.permute.xlu0 0
    %712 = vperm.xlu0 %711, %v710
    %v713 = vpop.permute.xlu0 %712
    %vm714 = vcmp.eq.s32.totalorder %v713, 1
    %v715 = vsel %vm714, %v708, %v562
    %717 = vrot.lane.b32.xlu0 %v641, 96
    %v718 = vpop.permute.xlu0 %717
    %s720 = scalar_lea.vmem %s10, 16
    %721 = vst.msk [vmem:[%s720] sm:$0xff] %vm117, %v718
    %s722 = scalar_lea.vmem %s10, 40
    %723 = vst.msk [vmem:[%s722] sm:$0xff] %vm416, %v715
    %s724 = scalar_lea.vmem [#allocation2], 24
    %v725 = vld [vmem:[%s724] sm:$0xff]
    %v726 = vsel %vm117, %v718, 0
    %728 = vmatpush.msra.mxu0 0.0
    %729 = vmatpush.msra.mxu0 0.0
    %730 = vmatpush.msra.mxu0 0.0
    %731 = vmatpush.msra.mxu0 0.0
    %732 = vmatpush.msra.mxu0 0.0
    %733 = vmatpush.msra.mxu0 0.0
    %734 = vmatpush.msra.mxu0 0.0
    %735 = vmatpush.msra.mxu0 0.0
    %736 = vmatpush.msra.mxu0 0.0
    %737 = vmatpush.msra.mxu0 0.0
    %738 = vmatpush.msra.mxu0 0.0
    %739 = vmatpush.msra.mxu0 0.0
    %740 = vmatpush.msra.mxu0 %v252
    %741 = vmatpush.msra.mxu0 %v251
    %742 = vmatpush.msra.mxu0 %v250
    %743 = vmatpush.msra.mxu0 %v249
    %744 = vmatmul.f32.gmra.mxu0 %v726
    %v745 = vpop.f32.mrf.mxu0
    %v746 = vadd.f32 0.0, %v745
    %747 = vdwg.mxu0
    %v748 = vadd.f32 %v725, %v746
    %v749 = vxor.u32 %v748, 2147483648
    %v750 = vmul.f32 %v749, 1.442695
    %v751 = vpow.pop %v750
    %v752 = vadd.f32 %v751, 1.0
    %v753 = vrcp.pop %v752
    %v754 = vmul.f32 %v752, %v753
    %v755 = vsub.f32 1.0, %v754
    %v756 = vmul.f32 %v753, %v755
    %v757 = vadd.f32 %v753, %v756
    %vm758 = vweird.f32 %v752
    %vm759 = vweird.f32 %v753
    %vm760 = vmor %vm758, %vm759
    %v761 = vsel %vm760, %v753, %v757
    %v762 = vand.u32 2147483647, %v752
    %vm763 = vcmp.eq.f32.partialorder %v762, 8.507059e+37
    %v764 = vand.u32 %v752, 2147483648
    %v765 = vor.u32 1.1754944e-38, %v764
    %v766 = vsel %vm763, %v765, %v761
    %v767 = vmul.f32 1.0, %v766
    %v768 = vadd.f32 %v746, %v309
    %770 = vrot.lane.b32.xlu0 %v768, 64
    %v771 = vpop.permute.xlu0 %770
    %v773 = vmul.f32 %v767, %v771
    %775 = vrot.lane.b32.xlu0 %v773, 64
    %v776 = vpop.permute.xlu0 %775
    %v778 = vadd.f32 %v725, %v776
    %v779 = vtanh.pop %v778
    %v780 = vsub.f32 1.0, %v767
    %782 = vrot.lane.b32.xlu0 %v779, 96
    %v783 = vpop.permute.xlu0 %782
    %v785 = vmul.f32 %v780, %v783
    %v786 = vmul.f32 %v767, %v641
    %v787 = vadd.f32 %v785, %v786
    %vm788 = vcmp.gt.s32.totalorder %v263, 3
    %v789 = vsel %vm788, 1, 0
    %790 = vset.pattern.permute.xlu0 0
    %791 = vperm.xlu0 %790, %v789
    %v792 = vpop.permute.xlu0 %791
    %vm793 = vcmp.eq.s32.totalorder %v792, 1
    %v794 = vsel %vm793, %v787, %v641
    %s795 = scalar_lea.vmem [#allocation3], 32
    %v796 = vld [vmem:[%s795] sm:$0xff]
    %798 = vrot.lane.b32.xlu0 %v715, 96
    %v799 = vpop.permute.xlu0 %798
    %v800 = vsel %vm117, %v799, 0
    %802 = vmatpush.msra.mxu0 0.0
    %803 = vmatpush.msra.mxu0 0.0
    %804 = vmatpush.msra.mxu0 0.0
    %805 = vmatpush.msra.mxu0 0.0
    %806 = vmatpush.msra.mxu0 0.0
    %807 = vmatpush.msra.mxu0 0.0
    %808 = vmatpush.msra.mxu0 0.0
    %809 = vmatpush.msra.mxu0 0.0
    %810 = vmatpush.msra.mxu0 0.0
    %811 = vmatpush.msra.mxu0 0.0
    %812 = vmatpush.msra.mxu0 0.0
    %813 = vmatpush.msra.mxu0 0.0
    %814 = vmatpush.msra.mxu0 %v256
    %815 = vmatpush.msra.mxu0 %v255
    %816 = vmatpush.msra.mxu0 %v254
    %817 = vmatpush.msra.mxu0 %v253
    %818 = vmatmul.f32.gmra.mxu0 %v800
    %v819 = vpop.f32.mrf.mxu0
    %v820 = vadd.f32 0.0, %v819
    %821 = vdwg.mxu0
    %v822 = vadd.f32 %v796, %v820
    %v823 = vxor.u32 %v822, 2147483648
    %v824 = vmul.f32 %v823, 1.442695
    %v825 = vpow.pop %v824
    %v826 = vadd.f32 %v825, 1.0
    %v827 = vrcp.pop %v826
    %v828 = vmul.f32 %v826, %v827
    %v829 = vsub.f32 1.0, %v828
    %v830 = vmul.f32 %v827, %v829
    %v831 = vadd.f32 %v827, %v830
    %vm832 = vweird.f32 %v826
    %vm833 = vweird.f32 %v827
    %vm834 = vmor %vm832, %vm833
    %v835 = vsel %vm834, %v827, %v831
    %v836 = vand.u32 2147483647, %v826
    %vm837 = vcmp.eq.f32.partialorder %v836, 8.507059e+37
    %v838 = vand.u32 %v826, 2147483648
    %v839 = vor.u32 1.1754944e-38, %v838
    %v840 = vsel %vm837, %v839, %v835
    %v841 = vmul.f32 1.0, %v840
    %v842 = vadd.f32 %v820, %v381
    %844 = vrot.lane.b32.xlu0 %v842, 64
    %v845 = vpop.permute.xlu0 %844
    %v847 = vmul.f32 %v841, %v845
    %849 = vrot.lane.b32.xlu0 %v847, 64
    %v850 = vpop.permute.xlu0 %849
    %v852 = vadd.f32 %v796, %v850
    %v853 = vtanh.pop %v852
    %v854 = vsub.f32 1.0, %v841
    %856 = vrot.lane.b32.xlu0 %v853, 96
    %v857 = vpop.permute.xlu0 %856
    %v859 = vmul.f32 %v854, %v857
    %v860 = vmul.f32 %v841, %v715
    %v861 = vadd.f32 %v859, %v860
    %vm862 = vcmp.gt.s32.totalorder %v263, 4
    %v863 = vsel %vm862, 1, 0
    %864 = vset.pattern.permute.xlu0 0
    %865 = vperm.xlu0 %864, %v863
    %v866 = vpop.permute.xlu0 %865
    %vm867 = vcmp.eq.s32.totalorder %v866, 1
    %v868 = vsel %vm867, %v861, %v715
    %870 = vrot.lane.b32.xlu0 %v794, 96
    %v871 = vpop.permute.xlu0 %870
    %s873 = scalar_lea.vmem %s10, 24
    %874 = vst.msk [vmem:[%s873] sm:$0xff] %vm117, %v871
    %s875 = scalar_lea.vmem %s10, 32
    %876 = vst.msk [vmem:[%s875] sm:$0xff] %vm416, %v868
    %s877 = scalar_lea.vmem [#allocation2], 32
    %v878 = vld [vmem:[%s877] sm:$0xff]
    %v879 = vsel %vm117, %v871, 0
    %881 = vmatpush.msra.mxu0 0.0
    %882 = vmatpush.msra.mxu0 0.0
    %883 = vmatpush.msra.mxu0 0.0
    %884 = vmatpush.msra.mxu0 0.0
    %885 = vmatpush.msra.mxu0 0.0
    %886 = vmatpush.msra.mxu0 0.0
    %887 = vmatpush.msra.mxu0 0.0
    %888 = vmatpush.msra.mxu0 0.0
    %889 = vmatpush.msra.mxu0 0.0
    %890 = vmatpush.msra.mxu0 0.0
    %891 = vmatpush.msra.mxu0 0.0
    %892 = vmatpush.msra.mxu0 0.0
    %893 = vmatpush.msra.mxu0 %v252
    %894 = vmatpush.msra.mxu0 %v251
    %895 = vmatpush.msra.mxu0 %v250
    %896 = vmatpush.msra.mxu0 %v249
    %897 = vmatmul.f32.gmra.mxu0 %v879
    %v898 = vpop.f32.mrf.mxu0
    %v899 = vadd.f32 0.0, %v898
    %900 = vdwg.mxu0
    %v901 = vadd.f32 %v878, %v899
    %v902 = vxor.u32 %v901, 2147483648
    %v903 = vmul.f32 %v902, 1.442695
    %v904 = vpow.pop %v903
    %v905 = vadd.f32 %v904, 1.0
    %v906 = vrcp.pop %v905
    %v907 = vmul.f32 %v905, %v906
    %v908 = vsub.f32 1.0, %v907
    %v909 = vmul.f32 %v906, %v908
    %v910 = vadd.f32 %v906, %v909
    %vm911 = vweird.f32 %v905
    %vm912 = vweird.f32 %v906
    %vm913 = vmor %vm911, %vm912
    %v914 = vsel %vm913, %v906, %v910
    %v915 = vand.u32 2147483647, %v905
    %vm916 = vcmp.eq.f32.partialorder %v915, 8.507059e+37
    %v917 = vand.u32 %v905, 2147483648
    %v918 = vor.u32 1.1754944e-38, %v917
    %v919 = vsel %vm916, %v918, %v914
    %v920 = vmul.f32 1.0, %v919
    %v921 = vadd.f32 %v899, %v309
    %923 = vrot.lane.b32.xlu0 %v921, 64
    %v924 = vpop.permute.xlu0 %923
    %v926 = vmul.f32 %v920, %v924
    %928 = vrot.lane.b32.xlu0 %v926, 64
    %v929 = vpop.permute.xlu0 %928
    %v931 = vadd.f32 %v878, %v929
    %v932 = vtanh.pop %v931
    %v933 = vsub.f32 1.0, %v920
    %935 = vrot.lane.b32.xlu0 %v932, 96
    %v936 = vpop.permute.xlu0 %935
    %v938 = vmul.f32 %v933, %v936
    %v939 = vmul.f32 %v920, %v794
    %v940 = vadd.f32 %v938, %v939
    %v941 = vsel %vm867, %v940, %v794
    %s942 = scalar_lea.vmem [#allocation3], 24
    %v943 = vld [vmem:[%s942] sm:$0xff]
    %945 = vrot.lane.b32.xlu0 %v868, 96
    %v946 = vpop.permute.xlu0 %945
    %v947 = vsel %vm117, %v946, 0
    %949 = vmatpush.msra.mxu0 0.0
    %950 = vmatpush.msra.mxu0 0.0
    %951 = vmatpush.msra.mxu0 0.0
    %952 = vmatpush.msra.mxu0 0.0
    %953 = vmatpush.msra.mxu0 0.0
    %954 = vmatpush.msra.mxu0 0.0
    %955 = vmatpush.msra.mxu0 0.0
    %956 = vmatpush.msra.mxu0 0.0
    %957 = vmatpush.msra.mxu0 0.0
    %958 = vmatpush.msra.mxu0 0.0
    %959 = vmatpush.msra.mxu0 0.0
    %960 = vmatpush.msra.mxu0 0.0
    %961 = vmatpush.msra.mxu0 %v256
    %962 = vmatpush.msra.mxu0 %v255
    %963 = vmatpush.msra.mxu0 %v254
    %964 = vmatpush.msra.mxu0 %v253
    %965 = vmatmul.f32.gmra.mxu0 %v947
    %v966 = vpop.f32.mrf.mxu0
    %v967 = vadd.f32 0.0, %v966
    %968 = vdwg.mxu0
    %v969 = vadd.f32 %v943, %v967
    %v970 = vxor.u32 %v969, 2147483648
    %v971 = vmul.f32 %v970, 1.442695
    %v972 = vpow.pop %v971
    %v973 = vadd.f32 %v972, 1.0
    %v974 = vrcp.pop %v973
    %v975 = vmul.f32 %v973, %v974
    %v976 = vsub.f32 1.0, %v975
    %v977 = vmul.f32 %v974, %v976
    %v978 = vadd.f32 %v974, %v977
    %vm979 = vweird.f32 %v973
    %vm980 = vweird.f32 %v974
    %vm981 = vmor %vm979, %vm980
    %v982 = vsel %vm981, %v974, %v978
    %v983 = vand.u32 2147483647, %v973
    %vm984 = vcmp.eq.f32.partialorder %v983, 8.507059e+37
    %v985 = vand.u32 %v973, 2147483648
    %v986 = vor.u32 1.1754944e-38, %v985
    %v987 = vsel %vm984, %v986, %v982
    %v988 = vmul.f32 1.0, %v987
    %v989 = vadd.f32 %v967, %v381
    %991 = vrot.lane.b32.xlu0 %v989, 64
    %v992 = vpop.permute.xlu0 %991
    %v994 = vmul.f32 %v988, %v992
    %996 = vrot.lane.b32.xlu0 %v994, 64
    %v997 = vpop.permute.xlu0 %996
    %v999 = vadd.f32 %v943, %v997
    %v1000 = vtanh.pop %v999
    %v1001 = vsub.f32 1.0, %v988
    %1003 = vrot.lane.b32.xlu0 %v1000, 96
    %v1004 = vpop.permute.xlu0 %1003
    %v1006 = vmul.f32 %v1001, %v1004
    %v1007 = vmul.f32 %v988, %v868
    %v1008 = vadd.f32 %v1006, %v1007
    %v1009 = vsel %vm793, %v1008, %v868
    %1011 = vrot.lane.b32.xlu0 %v941, 96
    %v1012 = vpop.permute.xlu0 %1011
    %1014 = vst.msk [vmem:[%s875] sm:$0xff] %vm117, %v1012
    %1015 = vst.msk [vmem:[%s873] sm:$0xff] %vm416, %v1009
    %s1016 = scalar_lea.vmem [#allocation2], 40
    %v1017 = vld [vmem:[%s1016] sm:$0xff]
    %v1018 = vsel %vm117, %v1012, 0
    %1020 = vmatpush.msra.mxu0 0.0
    %1021 = vmatpush.msra.mxu0 0.0
    %1022 = vmatpush.msra.mxu0 0.0
    %1023 = vmatpush.msra.mxu0 0.0
    %1024 = vmatpush.msra.mxu0 0.0
    %1025 = vmatpush.msra.mxu0 0.0
    %1026 = vmatpush.msra.mxu0 0.0
    %1027 = vmatpush.msra.mxu0 0.0
    %1028 = vmatpush.msra.mxu0 0.0
    %1029 = vmatpush.msra.mxu0 0.0
    %1030 = vmatpush.msra.mxu0 0.0
    %1031 = vmatpush.msra.mxu0 0.0
    %1032 = vmatpush.msra.mxu0 %v252
    %1033 = vmatpush.msra.mxu0 %v251
    %1034 = vmatpush.msra.mxu0 %v250
    %1035 = vmatpush.msra.mxu0 %v249
    %1036 = vmatmul.f32.gmra.mxu0 %v1018
    %v1037 = vpop.f32.mrf.mxu0
    %v1038 = vadd.f32 0.0, %v1037
    %1039 = vdwg.mxu0
    %v1040 = vadd.f32 %v1017, %v1038
    %v1041 = vxor.u32 %v1040, 2147483648
    %v1042 = vmul.f32 %v1041, 1.442695
    %v1043 = vpow.pop %v1042
    %v1044 = vadd.f32 %v1043, 1.0
    %v1045 = vrcp.pop %v1044
    %v1046 = vmul.f32 %v1044, %v1045
    %v1047 = vsub.f32 1.0, %v1046
    %v1048 = vmul.f32 %v1045, %v1047
    %v1049 = vadd.f32 %v1045, %v1048
    %vm1050 = vweird.f32 %v1044
    %vm1051 = vweird.f32 %v1045
    %vm1052 = vmor %vm1050, %vm1051
    %v1053 = vsel %vm1052, %v1045, %v1049
    %v1054 = vand.u32 2147483647, %v1044
    %vm1055 = vcmp.eq.f32.partialorder %v1054, 8.507059e+37
    %v1056 = vand.u32 %v1044, 2147483648
    %v1057 = vor.u32 1.1754944e-38, %v1056
    %v1058 = vsel %vm1055, %v1057, %v1053
    %v1059 = vmul.f32 1.0, %v1058
    %v1060 = vadd.f32 %v1038, %v309
    %1062 = vrot.lane.b32.xlu0 %v1060, 64
    %v1063 = vpop.permute.xlu0 %1062
    %v1065 = vmul.f32 %v1059, %v1063
    %1067 = vrot.lane.b32.xlu0 %v1065, 64
    %v1068 = vpop.permute.xlu0 %1067
    %v1070 = vadd.f32 %v1017, %v1068
    %v1071 = vtanh.pop %v1070
    %v1072 = vsub.f32 1.0, %v1059
    %1074 = vrot.lane.b32.xlu0 %v1071, 96
    %v1075 = vpop.permute.xlu0 %1074
    %v1077 = vmul.f32 %v1072, %v1075
    %v1078 = vmul.f32 %v1059, %v941
    %v1079 = vadd.f32 %v1077, %v1078
    %v1080 = vsel %vm714, %v1079, %v941
    %s1081 = scalar_lea.vmem [#allocation3], 16
    %v1082 = vld [vmem:[%s1081] sm:$0xff]
    %1084 = vrot.lane.b32.xlu0 %v1009, 96
    %v1085 = vpop.permute.xlu0 %1084
    %v1086 = vsel %vm117, %v1085, 0
    %1088 = vmatpush.msra.mxu0 0.0
    %1089 = vmatpush.msra.mxu0 0.0
    %1090 = vmatpush.msra.mxu0 0.0
    %1091 = vmatpush.msra.mxu0 0.0
    %1092 = vmatpush.msra.mxu0 0.0
    %1093 = vmatpush.msra.mxu0 0.0
    %1094 = vmatpush.msra.mxu0 0.0
    %1095 = vmatpush.msra.mxu0 0.0
    %1096 = vmatpush.msra.mxu0 0.0
    %1097 = vmatpush.msra.mxu0 0.0
    %1098 = vmatpush.msra.mxu0 0.0
    %1099 = vmatpush.msra.mxu0 0.0
    %1100 = vmatpush.msra.mxu0 %v256
    %1101 = vmatpush.msra.mxu0 %v255
    %1102 = vmatpush.msra.mxu0 %v254
    %1103 = vmatpush.msra.mxu0 %v253
    %1104 = vmatmul.f32.gmra.mxu0 %v1086
    %v1105 = vpop.f32.mrf.mxu0
    %v1106 = vadd.f32 0.0, %v1105
    %1107 = vdwg.mxu0
    %v1108 = vadd.f32 %v1082, %v1106
    %v1109 = vxor.u32 %v1108, 2147483648
    %v1110 = vmul.f32 %v1109, 1.442695
    %v1111 = vpow.pop %v1110
    %v1112 = vadd.f32 %v1111, 1.0
    %v1113 = vrcp.pop %v1112
    %v1114 = vmul.f32 %v1112, %v1113
    %v1115 = vsub.f32 1.0, %v1114
    %v1116 = vmul.f32 %v1113, %v1115
    %v1117 = vadd.f32 %v1113, %v1116
    %vm1118 = vweird.f32 %v1112
    %vm1119 = vweird.f32 %v1113
    %vm1120 = vmor %vm1118, %vm1119
    %v1121 = vsel %vm1120, %v1113, %v1117
    %v1122 = vand.u32 2147483647, %v1112
    %vm1123 = vcmp.eq.f32.partialorder %v1122, 8.507059e+37
    %v1124 = vand.u32 %v1112, 2147483648
    %v1125 = vor.u32 1.1754944e-38, %v1124
    %v1126 = vsel %vm1123, %v1125, %v1121
    %v1127 = vmul.f32 1.0, %v1126
    %v1128 = vadd.f32 %v1106, %v381
    %1130 = vrot.lane.b32.xlu0 %v1128, 64
    %v1131 = vpop.permute.xlu0 %1130
    %v1133 = vmul.f32 %v1127, %v1131
    %1135 = vrot.lane.b32.xlu0 %v1133, 64
    %v1136 = vpop.permute.xlu0 %1135
    %v1138 = vadd.f32 %v1082, %v1136
    %v1139 = vtanh.pop %v1138
    %v1140 = vsub.f32 1.0, %v1127
    %1142 = vrot.lane.b32.xlu0 %v1139, 96
    %v1143 = vpop.permute.xlu0 %1142
    %v1145 = vmul.f32 %v1140, %v1143
    %v1146 = vmul.f32 %v1127, %v1009
    %v1147 = vadd.f32 %v1145, %v1146
    %v1148 = vsel %vm640, %v1147, %v1009
    %1150 = vrot.lane.b32.xlu0 %v1080, 96
    %v1151 = vpop.permute.xlu0 %1150
    %1153 = vst.msk [vmem:[%s722] sm:$0xff] %vm117, %v1151
    %1154 = vst.msk [vmem:[%s720] sm:$0xff] %vm416, %v1148
    %s1155 = scalar_lea.vmem [#allocation2], 48
    %v1156 = vld [vmem:[%s1155] sm:$0xff]
    %v1157 = vsel %vm117, %v1151, 0
    %1159 = vmatpush.msra.mxu0 0.0
    %1160 = vmatpush.msra.mxu0 0.0
    %1161 = vmatpush.msra.mxu0 0.0
    %1162 = vmatpush.msra.mxu0 0.0
    %1163 = vmatpush.msra.mxu0 0.0
    %1164 = vmatpush.msra.mxu0 0.0
    %1165 = vmatpush.msra.mxu0 0.0
    %1166 = vmatpush.msra.mxu0 0.0
    %1167 = vmatpush.msra.mxu0 0.0
    %1168 = vmatpush.msra.mxu0 0.0
    %1169 = vmatpush.msra.mxu0 0.0
    %1170 = vmatpush.msra.mxu0 0.0
    %1171 = vmatpush.msra.mxu0 %v252
    %1172 = vmatpush.msra.mxu0 %v251
    %1173 = vmatpush.msra.mxu0 %v250
    %1174 = vmatpush.msra.mxu0 %v249
    %1175 = vmatmul.f32.gmra.mxu0 %v1157
    %v1176 = vpop.f32.mrf.mxu0
    %v1177 = vadd.f32 0.0, %v1176
    %1178 = vdwg.mxu0
    %v1179 = vadd.f32 %v1156, %v1177
    %v1180 = vxor.u32 %v1179, 2147483648
    %v1181 = vmul.f32 %v1180, 1.442695
    %v1182 = vpow.pop %v1181
    %v1183 = vadd.f32 %v1182, 1.0
    %v1184 = vrcp.pop %v1183
    %v1185 = vmul.f32 %v1183, %v1184
    %v1186 = vsub.f32 1.0, %v1185
    %v1187 = vmul.f32 %v1184, %v1186
    %v1188 = vadd.f32 %v1184, %v1187
    %vm1189 = vweird.f32 %v1183
    %vm1190 = vweird.f32 %v1184
    %vm1191 = vmor %vm1189, %vm1190
    %v1192 = vsel %vm1191, %v1184, %v1188
    %v1193 = vand.u32 2147483647, %v1183
    %vm1194 = vcmp.eq.f32.partialorder %v1193, 8.507059e+37
    %v1195 = vand.u32 %v1183, 2147483648
    %v1196 = vor.u32 1.1754944e-38, %v1195
    %v1197 = vsel %vm1194, %v1196, %v1192
    %v1198 = vmul.f32 1.0, %v1197
    %v1199 = vadd.f32 %v1177, %v309
    %1201 = vrot.lane.b32.xlu0 %v1199, 64
    %v1202 = vpop.permute.xlu0 %1201
    %v1204 = vmul.f32 %v1198, %v1202
    %1206 = vrot.lane.b32.xlu0 %v1204, 64
    %v1207 = vpop.permute.xlu0 %1206
    %v1209 = vadd.f32 %v1156, %v1207
    %v1210 = vtanh.pop %v1209
    %v1211 = vsub.f32 1.0, %v1198
    %1213 = vrot.lane.b32.xlu0 %v1210, 96
    %v1214 = vpop.permute.xlu0 %1213
    %v1216 = vmul.f32 %v1211, %v1214
    %v1217 = vmul.f32 %v1198, %v1080
    %v1218 = vadd.f32 %v1216, %v1217
    %v1219 = vsel %vm561, %v1218, %v1080
    %s1220 = scalar_lea.vmem [#allocation3], 8
    %v1221 = vld [vmem:[%s1220] sm:$0xff]
    %1223 = vrot.lane.b32.xlu0 %v1148, 96
    %v1224 = vpop.permute.xlu0 %1223
    %v1225 = vsel %vm117, %v1224, 0
    %1227 = vmatpush.msra.mxu0 0.0
    %1228 = vmatpush.msra.mxu0 0.0
    %1229 = vmatpush.msra.mxu0 0.0
    %1230 = vmatpush.msra.mxu0 0.0
    %1231 = vmatpush.msra.mxu0 0.0
    %1232 = vmatpush.msra.mxu0 0.0
    %1233 = vmatpush.msra.mxu0 0.0
    %1234 = vmatpush.msra.mxu0 0.0
    %1235 = vmatpush.msra.mxu0 0.0
    %1236 = vmatpush.msra.mxu0 0.0
    %1237 = vmatpush.msra.mxu0 0.0
    %1238 = vmatpush.msra.mxu0 0.0
    %1239 = vmatpush.msra.mxu0 %v256
    %1240 = vmatpush.msra.mxu0 %v255
    %1241 = vmatpush.msra.mxu0 %v254
    %1242 = vmatpush.msra.mxu0 %v253
    %1243 = vmatmul.f32.gmra.mxu0 %v1225
    %v1244 = vpop.f32.mrf.mxu0
    %v1245 = vadd.f32 0.0, %v1244
    %1246 = vdwg.mxu0
    %v1247 = vadd.f32 %v1221, %v1245
    %v1248 = vxor.u32 %v1247, 2147483648
    %v1249 = vmul.f32 %v1248, 1.442695
    %v1250 = vpow.pop %v1249
    %v1251 = vadd.f32 %v1250, 1.0
    %v1252 = vrcp.pop %v1251
    %v1253 = vmul.f32 %v1251, %v1252
    %v1254 = vsub.f32 1.0, %v1253
    %v1255 = vmul.f32 %v1252, %v1254
    %v1256 = vadd.f32 %v1252, %v1255
    %vm1257 = vweird.f32 %v1251
    %vm1258 = vweird.f32 %v1252
    %vm1259 = vmor %vm1257, %vm1258
    %v1260 = vsel %vm1259, %v1252, %v1256
    %v1261 = vand.u32 2147483647, %v1251
    %vm1262 = vcmp.eq.f32.partialorder %v1261, 8.507059e+37
    %v1263 = vand.u32 %v1251, 2147483648
    %v1264 = vor.u32 1.1754944e-38, %v1263
    %v1265 = vsel %vm1262, %v1264, %v1260
    %v1266 = vmul.f32 1.0, %v1265
    %v1267 = vadd.f32 %v1245, %v381
    %1269 = vrot.lane.b32.xlu0 %v1267, 64
    %v1270 = vpop.permute.xlu0 %1269
    %v1272 = vmul.f32 %v1266, %v1270
    %1274 = vrot.lane.b32.xlu0 %v1272, 64
    %v1275 = vpop.permute.xlu0 %1274
    %v1277 = vadd.f32 %v1221, %v1275
    %v1278 = vtanh.pop %v1277
    %v1279 = vsub.f32 1.0, %v1266
    %1281 = vrot.lane.b32.xlu0 %v1278, 96
    %v1282 = vpop.permute.xlu0 %1281
    %v1284 = vmul.f32 %v1279, %v1282
    %v1285 = vmul.f32 %v1266, %v1148
    %v1286 = vadd.f32 %v1284, %v1285
    %v1287 = vsel %vm487, %v1286, %v1148
    %1289 = vrot.lane.b32.xlu0 %v1219, 96
    %v1290 = vpop.permute.xlu0 %1289
    %1292 = vst.msk [vmem:[%s569] sm:$0xff] %vm117, %v1290
    %1293 = vst.msk [vmem:[%s567] sm:$0xff] %vm416, %v1287
    %s1294 = scalar_lea.vmem [#allocation2], 56
    %v1295 = vld [vmem:[%s1294] sm:$0xff]
    %v1296 = vsel %vm117, %v1290, 0
    %1298 = vmatpush.msra.mxu0 0.0
    %1299 = vmatpush.msra.mxu0 0.0
    %1300 = vmatpush.msra.mxu0 0.0
    %1301 = vmatpush.msra.mxu0 0.0
    %1302 = vmatpush.msra.mxu0 0.0
    %1303 = vmatpush.msra.mxu0 0.0
    %1304 = vmatpush.msra.mxu0 0.0
    %1305 = vmatpush.msra.mxu0 0.0
    %1306 = vmatpush.msra.mxu0 0.0
    %1307 = vmatpush.msra.mxu0 0.0
    %1308 = vmatpush.msra.mxu0 0.0
    %1309 = vmatpush.msra.mxu0 0.0
    %1310 = vmatpush.msra.mxu0 %v252
    %1311 = vmatpush.msra.mxu0 %v251
    %1312 = vmatpush.msra.mxu0 %v250
    %1313 = vmatpush.msra.mxu0 %v249
    %1314 = vmatmul.f32.gmra.mxu0 %v1296
    %v1315 = vpop.f32.mrf.mxu0
    %v1316 = vadd.f32 0.0, %v1315
    %1317 = vdwg.mxu0
    %v1318 = vadd.f32 %v1295, %v1316
    %v1319 = vxor.u32 %v1318, 2147483648
    %v1320 = vmul.f32 %v1319, 1.442695
    %v1321 = vpow.pop %v1320
    %v1322 = vadd.f32 %v1321, 1.0
    %v1323 = vrcp.pop %v1322
    %v1324 = vmul.f32 %v1322, %v1323
    %v1325 = vsub.f32 1.0, %v1324
    %v1326 = vmul.f32 %v1323, %v1325
    %v1327 = vadd.f32 %v1323, %v1326
    %vm1328 = vweird.f32 %v1322
    %vm1329 = vweird.f32 %v1323
    %vm1330 = vmor %vm1328, %vm1329
    %v1331 = vsel %vm1330, %v1323, %v1327
    %v1332 = vand.u32 2147483647, %v1322
    %vm1333 = vcmp.eq.f32.partialorder %v1332, 8.507059e+37
    %v1334 = vand.u32 %v1322, 2147483648
    %v1335 = vor.u32 1.1754944e-38, %v1334
    %v1336 = vsel %vm1333, %v1335, %v1331
    %v1337 = vmul.f32 1.0, %v1336
    %v1338 = vadd.f32 %v1316, %v309
    %1340 = vrot.lane.b32.xlu0 %v1338, 64
    %v1341 = vpop.permute.xlu0 %1340
    %v1343 = vmul.f32 %v1337, %v1341
    %1345 = vrot.lane.b32.xlu0 %v1343, 64
    %v1346 = vpop.permute.xlu0 %1345
    %v1348 = vadd.f32 %v1295, %v1346
    %v1349 = vtanh.pop %v1348
    %v1350 = vsub.f32 1.0, %v1337
    %1352 = vrot.lane.b32.xlu0 %v1349, 96
    %v1353 = vpop.permute.xlu0 %1352
    %v1355 = vmul.f32 %v1350, %v1353
    %v1356 = vmul.f32 %v1337, %v1219
    %v1357 = vadd.f32 %v1355, %v1356
    %v1358 = vsel %vm408, %v1357, %v1219
    %v1359 = vld [vmem:[#allocation3] sm:$0xff]
    %1361 = vrot.lane.b32.xlu0 %v1287, 96
    %v1362 = vpop.permute.xlu0 %1361
    %v1363 = vsel %vm117, %v1362, 0
    %1365 = vmatpush.msra.mxu0 0.0
    %1366 = vmatpush.msra.mxu0 0.0
    %1367 = vmatpush.msra.mxu0 0.0
    %1368 = vmatpush.msra.mxu0 0.0
    %1369 = vmatpush.msra.mxu0 0.0
    %1370 = vmatpush.msra.mxu0 0.0
    %1371 = vmatpush.msra.mxu0 0.0
    %1372 = vmatpush.msra.mxu0 0.0
    %1373 = vmatpush.msra.mxu0 0.0
    %1374 = vmatpush.msra.mxu0 0.0
    %1375 = vmatpush.msra.mxu0 0.0
    %1376 = vmatpush.msra.mxu0 0.0
    %1377 = vmatpush.msra.mxu0 %v256
    %1378 = vmatpush.msra.mxu0 %v255
    %1379 = vmatpush.msra.mxu0 %v254
    %1380 = vmatpush.msra.mxu0 %v253
    %1381 = vmatmul.f32.gmra.mxu0 %v1363
    %v1382 = vpop.f32.mrf.mxu0
    %v1383 = vadd.f32 0.0, %v1382
    %1384 = vdwg.mxu0
    %v1385 = vadd.f32 %v1359, %v1383
    %v1386 = vxor.u32 %v1385, 2147483648
    %v1387 = vmul.f32 %v1386, 1.442695
    %v1388 = vpow.pop %v1387
    %v1389 = vadd.f32 %v1388, 1.0
    %v1390 = vrcp.pop %v1389
    %v1391 = vmul.f32 %v1389, %v1390
    %v1392 = vsub.f32 1.0, %v1391
    %v1393 = vmul.f32 %v1390, %v1392
    %v1394 = vadd.f32 %v1390, %v1393
    %vm1395 = vweird.f32 %v1389
    %vm1396 = vweird.f32 %v1390
    %vm1397 = vmor %vm1395, %vm1396
    %v1398 = vsel %vm1397, %v1390, %v1394
    %v1399 = vand.u32 2147483647, %v1389
    %vm1400 = vcmp.eq.f32.partialorder %v1399, 8.507059e+37
    %v1401 = vand.u32 %v1389, 2147483648
    %v1402 = vor.u32 1.1754944e-38, %v1401
    %v1403 = vsel %vm1400, %v1402, %v1398
    %v1404 = vmul.f32 1.0, %v1403
    %v1405 = vadd.f32 %v1383, %v381
    %1407 = vrot.lane.b32.xlu0 %v1405, 64
    %v1408 = vpop.permute.xlu0 %1407
    %v1410 = vmul.f32 %v1404, %v1408
    %1412 = vrot.lane.b32.xlu0 %v1410, 64
    %v1413 = vpop.permute.xlu0 %1412
    %v1415 = vadd.f32 %v1359, %v1413
    %v1416 = vtanh.pop %v1415
    %v1417 = vsub.f32 1.0, %v1404
    %1419 = vrot.lane.b32.xlu0 %v1416, 96
    %v1420 = vpop.permute.xlu0 %1419
    %v1422 = vmul.f32 %v1417, %v1420
    %v1423 = vmul.f32 %v1404, %v1287
    %v1424 = vadd.f32 %v1422, %v1423
    %v1425 = vsel %vm336, %v1424, %v1287
    %1427 = vrot.lane.b32.xlu0 %v1358, 96
    %v1428 = vpop.permute.xlu0 %1427
    %1430 = vst.msk [vmem:[%s415] sm:$0xff] %vm117, %v1428
    %1431 = vst.msk [vmem:[%s10] sm:$0xff] %vm416, %v1425
    %1432 = vst.msk [vmem:[#allocation12] sm:$0xff] %vm117, %v1428
    %1433 = vst.msk [vmem:[#allocation12] sm:$0xff] %vm416, %v1425
    // Predicated region
    $region58: #{forward.3} parent=1 // pred_check
      _
    $region59: #{forward.3} parent=1 // pred_check_branch
      %1435 = sbr.rel (0) target = $region61
    $region60: #{forward.3} parent=1 // pred_region
      _
    $region61: #{forward.3} parent=1 // pred_fallthru
      _
    // Predicated region
    $region62: #{forward.3} parent=1 // pred_check
      _
    $region63: #{forward.3} parent=1 // pred_check_branch
      %1437 = sbr.rel (0) target = $region65
    $region64: #{forward.3} parent=1 // pred_region
      %1439 = vsyncadd [#allocation6], 0
      %s1441 = sshll.u32 [#allocation12], 4
      %s1442 = int_to_ptr.vmem [resolvable:$true] %s1441
      %s1443 = sshll.u32 %s11, 4
      %s1444 = int_to_ptr.hbm [resolvable:$true] %s1443
      %1446 = dma.vmem_to_hbm [thread:$0]  %s1442, 128, %s1444, [#allocation6]
    $region65: #{forward.3} parent=1 // pred_fallthru
      _
    // Predicated region
    $region66: #{forward.3} parent=1 // pred_check
      _
    $region67: #{forward.3} parent=1 // pred_check_branch
      %1448 = sbr.rel (0) target = $region69
    $region68: #{forward.3} parent=1 // pred_region
      _
    $region69: #{forward.3} parent=1 // pred_fallthru
      _
    // Predicated region
    $region70: #{forward.3} parent=1 // pred_check
      _
    $region71: #{forward.3} parent=1 // pred_check_branch
      %1450 = sbr.rel (0) target = $region73
    $region72: #{forward.3} parent=1 // pred_region
      %1452 = dma.done [#allocation6], 128
    $region73: #{forward.3} parent=1 // pred_fallthru
      _
    %1453 = vsyncpa [#allocation5], 1
    %1454 = vsyncpa [#allocation8], 1
    %1455 = vsyncpa [#allocation11], 1
    %1456 = vsyncpa [#allocation6], 1

</llo_original>
